<compile_context>
chip_gen: v7x
topology: tpu7x:2x2x1
jax: 0.10.0
libtpu: 0.0.40
codegen_flags: <defaults>
</compile_context>

<pallas_src>
import functools

import jax
import jax.numpy as jnp
import numpy as np
from jax import lax
from jax.experimental import pallas as pl
from jax.experimental.pallas import tpu as pltpu

LEAKY_SLOPE = 0.1
BN_EPS = 1e-5
_W_HALO = 8          # left halo width of the padded im2col map (sublane aligned)


def _leaky(v):
    # LeakyReLU(0.1) as mul+max (valid for slopes in (0,1)); 2 VALU ops/elem.
    return jnp.maximum(v, LEAKY_SLOPE * v)


# ---------------------------------------------------------------------------
# Pallas kernel: one (batch block, repeat) grid step.
# ---------------------------------------------------------------------------
def _residual_kernel(x_ref, w1_ref, b1_ref, w2_ref, b2_ref, o_ref, im_ref,
                     *, use_residual):
    # x_ref : (Nb, H, W, C)           input images (read only at repeat == 0)
    # w1_ref: (C, C2)          bf16   1x1 conv weight, BN scale folded in
    # b1_ref: (1, C2)          f32    BN bias, block 1
    # w2_ref: (3, 3*C2, C)     bf16   3x3 conv weight, dx taps along K,
    #                                 BN scale folded in
    # b2_ref: (1, C)           f32    BN bias, block 2
    # o_ref : (Nb, H, W, C)           output block == carried activation
    # im_ref: (Nb, H+2, WT, 3*C2) bf16  zero-bordered im2col hidden scratch
    r = pl.program_id(1)
    nb, hh, ww, c = x_ref.shape
    c2 = w1_ref.shape[1]
    wl = _W_HALO

    @pl.when(r == 0)
    def _init():
        # The carried activation lives in the resident output block.
        o_ref[...] = x_ref[...]
        # Zero only the border cells of the im2col scratch that the window
        # reads touch but the per-repeat stores never overwrite.
        zdt = im_ref.dtype
        zrow = jnp.zeros((nb, 1, ww, 3 * c2), zdt)
        im_ref[:, pl.ds(0, 1), pl.ds(wl, ww), :] = zrow            # top pad row
        im_ref[:, pl.ds(hh + 1, 1), pl.ds(wl, ww), :] = zrow       # bottom pad row
        zcol = jnp.zeros((nb, hh + 2, 1, c2), zdt)
        im_ref[:, :, pl.ds(wl, 1), pl.ds(0, c2)] = zcol            # left pad (dx=0)
        im_ref[:, :, pl.ds(wl + ww - 1, 1), pl.ds(2 * c2, c2)] = zcol  # right (dx=2)

    x = o_ref[...].astype(jnp.float32)                   # (Nb, H, W, C) carry

    # ---- CNNBlock #1: 1x1 conv (MXU, bf16 x bf16 -> f32) -> +bias -> Leaky
    xm = x.reshape(nb * hh * ww, c).astype(jnp.bfloat16)
    h = jnp.dot(xm, w1_ref[...], preferred_element_type=jnp.float32)
    h = _leaky(h + b1_ref[...])                          # (Nb*H*W, C2) f32

    # Scatter the hidden map into the im2col scratch: lane group dx holds the
    # map shifted by (1 - dx) columns, so the 3x3 conv's dx taps become one
    # contiguous, full-lane window read per dy row.
    hbf = h.astype(jnp.bfloat16).reshape(nb, hh, ww, c2)
    for dx in range(3):
        im_ref[:, pl.ds(1, hh), pl.ds(wl + 1 - dx, ww), pl.ds(dx * c2, c2)] = hbf

    # ---- CNNBlock #2: 3x3 conv (padding=1): 3 back-to-back MXU matmuls with
    # K = 3*C2 (dx taps fused), only 2 accumulate adds.
    parts = []
    for dy in range(3):
        win = im_ref[:, pl.ds(dy, hh), pl.ds(wl, ww), :]
        win = win.reshape(nb * hh * ww, 3 * c2)
        parts.append(jnp.dot(win, w2_ref[dy],
                             preferred_element_type=jnp.float32))
    y = _leaky((parts[0] + parts[1] + parts[2]) + b2_ref[...])
    y = y.reshape(nb, hh, ww, c)

    # Residual add + carry; the HBM writeback only happens when the batch
    # block index changes (i.e. once per batch block, after the last repeat).
    o_ref[...] = ((x + y) if use_residual else y).astype(o_ref.dtype)


# ---------------------------------------------------------------------------
# Parameter prep: stack per-repeat params, fold BN scale into the weights.
# ---------------------------------------------------------------------------
def _stack_and_fold_params(params):
    c, c2 = params[0]["w1"].shape
    w1, b1, w2, b2 = [], [], [], []
    for p in params:
        w1.append(p["w1"] * p["s1"][None, :])                      # (C, C2)
        b1.append(p["b1"].reshape(1, c2))
        w2f = p["w2"] * p["s2"][None, None, None, :]               # (3, 3, C2, C)
        w2.append(w2f.reshape(3, 3 * c2, c))                       # dx taps along K
        b2.append(p["b2"].reshape(1, c))
    return (jnp.stack(w1).astype(jnp.bfloat16),
            jnp.stack(b1).astype(jnp.float32),
            jnp.stack(w2).astype(jnp.bfloat16),
            jnp.stack(b2).astype(jnp.float32))


def _vmem_capacity_bytes():
    """Per-TensorCore VMEM capacity; conservative v7x fallback (64 MiB)."""
    try:
        cap = getattr(pltpu.get_tpu_info(), "vmem_capacity_bytes", None)
        if cap:
            return int(cap)
    except Exception:
        pass
    return 64 * 2 ** 20


def _vmem_estimate(nb, h, w, c, c2, wt, act_bytes):
    f32, bf16 = 4, 2
    img = nb * h * w * c * act_bytes                    # one activation block
    wts = (c * c2 + 9 * c2 * c) * bf16 + (c2 + c) * f32
    im2col = nb * (h + 2) * wt * 3 * c2 * bf16
    temps = nb * h * w * (2 * c * f32 + c2 * f32 + 3 * c2 * bf16)
    return 4 * img + 2 * wts + im2col + temps           # in+out double-buffered


# ---------------------------------------------------------------------------
# Wrapper: build the fused pallas_call (NCHW in / NCHW out).
# ---------------------------------------------------------------------------
def residual_block_forward(x_nchw, params, use_residual=True):
    x = jnp.transpose(x_nchw, (0, 2, 3, 1))             # NCHW -> NHWC (C on lanes)
    n, h, w, c = x.shape
    reps = len(params)
    c2 = params[0]["w1"].shape[1]
    wl = _W_HALO
    wt = wl + (-(-(w + 1) // 8) * 8)                    # halo + roundup(W+1, 8)

    w1s, b1s, w2s, b2s = _stack_and_fold_params(params)

    # Batch blocking against the measured per-core VMEM capacity.
    cap = _vmem_capacity_bytes()
    budget = int(0.5 * cap)
    nb = 1
    for cand in range(n, 0, -1):                        # largest divisor that fits
        if n % cand == 0 and _vmem_estimate(cand, h, w, c, c2, wt,
                                            x.dtype.itemsize) <= budget:
            nb = cand
            break
    est = _vmem_estimate(nb, h, w, c, c2, wt, x.dtype.itemsize)
    vmem_limit = int(min(int(0.85 * cap), max(32 * 2 ** 20, 2 * est)))

    kernel = functools.partial(_residual_kernel, use_residual=use_residual)
    out = pl.pallas_call(
        kernel,
        out_shape=jax.ShapeDtypeStruct((n, h, w, c), x.dtype),
        grid_spec=pltpu.PrefetchScalarGridSpec(
            num_scalar_prefetch=0,
            grid=(n // nb, reps),
            in_specs=[
                pl.BlockSpec((nb, h, w, c), lambda i, r: (i, 0, 0, 0)),
                pl.BlockSpec((None, c, c2), lambda i, r: (r, 0, 0)),
                pl.BlockSpec((None, 1, c2), lambda i, r: (r, 0, 0)),
                pl.BlockSpec((None, 3, 3 * c2, c), lambda i, r: (r, 0, 0, 0)),
                pl.BlockSpec((None, 1, c), lambda i, r: (r, 0, 0)),
            ],
            out_specs=pl.BlockSpec((nb, h, w, c), lambda i, r: (i, 0, 0, 0)),
            scratch_shapes=[
                pltpu.VMEM((nb, h + 2, wt, 3 * c2), jnp.bfloat16),
            ],
        ),
        compiler_params=pltpu.CompilerParams(
            dimension_semantics=("parallel", "arbitrary"),
            vmem_limit_bytes=vmem_limit),
    )(x, w1s, b1s, w2s, b2s)
    return jnp.transpose(out, (0, 3, 1, 2))             # NHWC -> NCHW


# ---------------------------------------------------------------------------
# Deterministic parameter construction (mirrors the PyTorch module shapes).
# ---------------------------------------------------------------------------
def _fold_bn(gamma, beta, running_mean, running_var):
    scale = gamma / jnp.sqrt(running_var + BN_EPS)
    bias = beta - running_mean * scale
    return scale, bias


def make_residual_block_params(key, channels, num_repeats):
    c2 = channels // 2
    params = []
    for r in range(num_repeats):
        ks = jax.random.split(jax.random.fold_in(key, r), 10)
        # CNNBlock #1: Conv2d(channels -> c2, k=1, bias=False) + BN
        w1 = 0.3 * jax.random.normal(ks[0], (channels, c2), jnp.float32)
        g1 = 1.0 + 0.1 * jax.random.normal(ks[1], (c2,), jnp.float32)
        be1 = 0.1 * jax.random.normal(ks[2], (c2,), jnp.float32)
        rm1 = 0.1 * jax.random.normal(ks[3], (c2,), jnp.float32)
        rv1 = 0.5 + jnp.abs(jax.random.normal(ks[4], (c2,), jnp.float32))
        s1, b1 = _fold_bn(g1, be1, rm1, rv1)
        # CNNBlock #2: Conv2d(c2 -> channels, k=3, pad=1, bias=False) + BN
        w2 = 0.1 * jax.random.normal(ks[5], (3, 3, c2, channels), jnp.float32)
        g2 = 1.0 + 0.1 * jax.random.normal(ks[6], (channels,), jnp.float32)
        be2 = 0.1 * jax.random.normal(ks[7], (channels,), jnp.float32)
        rm2 = 0.1 * jax.random.normal(ks[8], (channels,), jnp.float32)
        rv2 = 0.5 + jnp.abs(jax.random.normal(ks[9], (channels,), jnp.float32))
        s2, b2 = _fold_bn(g2, be2, rm2, rv2)
        params.append(dict(w1=w1, s1=s1, b1=b1, w2=w2, s2=s2, b2=b2))
    return params


# ---------------------------------------------------------------------------
# Pure-JAX reference (lax.conv) with the same folded-BN / bf16-MXU policy.
# ---------------------------------------------------------------------------
def residual_block_reference(x_nchw, params, use_residual=True):
    w1s, b1s, w2s, b2s = _stack_and_fold_params(params)
    c, c2 = params[0]["w1"].shape
    dn = ("NHWC", "HWIO", "NHWC")
    x = jnp.transpose(x_nchw, (0, 2, 3, 1)).astype(jnp.float32)
    for i in range(len(params)):
        h = lax.conv_general_dilated(
            x.astype(jnp.bfloat16), w1s[i][None, None], (1, 1), "VALID",
            dimension_numbers=dn, preferred_element_type=jnp.float32)
        h = h + b1s[i].reshape(c2)
        h = jnp.maximum(h, LEAKY_SLOPE * h)
        y = lax.conv_general_dilated(
            h.astype(jnp.bfloat16), w2s[i].reshape(3, 3, c2, c), (1, 1), "SAME",
            dimension_numbers=dn, preferred_element_type=jnp.float32)
        y = y + b2s[i].reshape(c)
        y = jnp.maximum(y, LEAKY_SLOPE * y)
        x = x + y if use_residual else y
    return jnp.transpose(x, (0, 3, 1, 2))


if __name__ == "__main__":
    key = jax.random.PRNGKey(0)
    k_x, k_p = jax.random.split(key)

    N, C, H, W = 2, 4, 16, 16      # NCHW, matching the PyTorch module
    num_repeats = 2
    use_residual = True

    x = jax.random.normal(k_x, (N, C, H, W), jnp.float32)
    params = make_residual_block_params(k_p, C, num_repeats)

    out = jax.block_until_ready(
        residual_block_forward(x, params, use_residual=use_residual))
    ref = jax.block_until_ready(
        residual_block_reference(x, params, use_residual=use_residual))

    assert out.shape == (N, C, H, W) and out.dtype == jnp.float32
    np.testing.assert_allclose(np.asarray(out), np.asarray(ref),
                               rtol=2e-3, atol=2e-3)
    print("KERNEL_OK")
</pallas_src>

<mosaic_0001>
module attributes {stable_mosaic.version = 11 : i64} {
  func.func @_residual_kernel(%arg0: i32, %arg1: i32, %arg2: memref<2x16x16x4xf32, #tpu.memory_space<vmem>>, %arg3: memref<1x4x2xbf16, #tpu.memory_space<vmem>>, %arg4: memref<1x1x2xf32, #tpu.memory_space<vmem>>, %arg5: memref<1x3x6x4xbf16, #tpu.memory_space<vmem>>, %arg6: memref<1x1x4xf32, #tpu.memory_space<vmem>>, %arg7: memref<2x16x16x4xf32, #tpu.memory_space<vmem>>, %arg8: memref<2x18x32x6xbf16, #tpu.memory_space<vmem>>) attributes {dimension_semantics = [#tpu.dimension_semantics<parallel>, #tpu.dimension_semantics<arbitrary>], iteration_bounds = array<i64: 1, 2>, scalar_prefetch = 0 : i64, scratch_operands = 1 : i64, tpu.core_type = #tpu.core_type<tc>, window_params = [{transform_indices = @transform_0, window_bounds = array<i64: 2, 16, 16, 4>}, {transform_indices = @transform_1, window_bounds = array<i64: 1, 4, 2>}, {transform_indices = @transform_2, window_bounds = array<i64: 1, 1, 2>}, {transform_indices = @transform_3, window_bounds = array<i64: 1, 3, 6, 4>}, {transform_indices = @transform_4, window_bounds = array<i64: 1, 1, 4>}, {transform_indices = @transform_5, window_bounds = array<i64: 2, 16, 16, 4>}]} {
    %c0_i32 = arith.constant 0 : i32
    %0 = arith.cmpi eq, %arg1, %c0_i32 : i32
    %1 = arith.extui %0 : i1 to i32
    %c0_i32_0 = arith.constant 0 : i32
    %2 = arith.cmpi ne, %1, %c0_i32_0 : i32
    scf.if %2 {
      %c0_52 = arith.constant 0 : index
      %c0_53 = arith.constant 0 : index
      %c0_54 = arith.constant 0 : index
      %c0_55 = arith.constant 0 : index
      %48 = vector.load %arg2[%c0_52, %c0_53, %c0_54, %c0_55] : memref<2x16x16x4xf32, #tpu.memory_space<vmem>>, vector<2x16x16x4xf32>
      %c0_56 = arith.constant 0 : index
      %c0_57 = arith.constant 0 : index
      %c0_58 = arith.constant 0 : index
      %c0_59 = arith.constant 0 : index
      %49 = vector.load %arg7[%c0_56, %c0_57, %c0_58, %c0_59] : memref<2x16x16x4xf32, #tpu.memory_space<vmem>>, vector<2x16x16x4xf32>
      tpu.vector_store %arg7[%c0_56, %c0_57, %c0_58, %c0_59], %48 {strides = array<i32>} : memref<2x16x16x4xf32, #tpu.memory_space<vmem>>, vector<2x16x16x4xf32>,
      %cst_60 = arith.constant 0.000000e+00 : bf16
      %50 = vector.broadcast %cst_60 : bf16 to vector<2x1x16x6xbf16>
      %c0_61 = arith.constant 0 : index
      %c0_62 = arith.constant 0 : index
      %c8_63 = arith.constant 8 : index
      %c0_64 = arith.constant 0 : index
      %51 = vector.load %arg8[%c0_61, %c0_62, %c8_63, %c0_64] : memref<2x18x32x6xbf16, #tpu.memory_space<vmem>>, vector<2x1x16x6xbf16>
      tpu.vector_store %arg8[%c0_61, %c0_62, %c8_63, %c0_64], %50 {strides = array<i32>} : memref<2x18x32x6xbf16, #tpu.memory_space<vmem>>, vector<2x1x16x6xbf16>,
      %c0_65 = arith.constant 0 : index
      %c17 = arith.constant 17 : index
      %c8_66 = arith.constant 8 : index
      %c0_67 = arith.constant 0 : index
      %52 = vector.load %arg8[%c0_65, %c17, %c8_66, %c0_67] : memref<2x18x32x6xbf16, #tpu.memory_space<vmem>>, vector<2x1x16x6xbf16>
      tpu.vector_store %arg8[%c0_65, %c17, %c8_66, %c0_67], %50 {strides = array<i32>} : memref<2x18x32x6xbf16, #tpu.memory_space<vmem>>, vector<2x1x16x6xbf16>,
      %cst_68 = arith.constant 0.000000e+00 : bf16
      %53 = vector.broadcast %cst_68 : bf16 to vector<2x18x1x2xbf16>
      %c0_69 = arith.constant 0 : index
      %c0_70 = arith.constant 0 : index
      %c8_71 = arith.constant 8 : index
      %c0_72 = arith.constant 0 : index
      %54 = vector.load %arg8[%c0_69, %c0_70, %c8_71, %c0_72] : memref<2x18x32x6xbf16, #tpu.memory_space<vmem>>, vector<2x18x1x2xbf16>
      tpu.vector_store %arg8[%c0_69, %c0_70, %c8_71, %c0_72], %53 {strides = array<i32>} : memref<2x18x32x6xbf16, #tpu.memory_space<vmem>>, vector<2x18x1x2xbf16>,
      %c0_73 = arith.constant 0 : index
      %c0_74 = arith.constant 0 : index
      %c23 = arith.constant 23 : index
      %c4_75 = arith.constant 4 : index
      %55 = vector.load %arg8[%c0_73, %c0_74, %c23, %c4_75] : memref<2x18x32x6xbf16, #tpu.memory_space<vmem>>, vector<2x18x1x2xbf16>
      tpu.vector_store %arg8[%c0_73, %c0_74, %c23, %c4_75], %53 {strides = array<i32>} : memref<2x18x32x6xbf16, #tpu.memory_space<vmem>>, vector<2x18x1x2xbf16>,
    } else {
    }
    %c0 = arith.constant 0 : index
    %c0_1 = arith.constant 0 : index
    %c0_2 = arith.constant 0 : index
    %c0_3 = arith.constant 0 : index
    %3 = vector.load %arg7[%c0, %c0_1, %c0_2, %c0_3] : memref<2x16x16x4xf32, #tpu.memory_space<vmem>>, vector<2x16x16x4xf32>
    %4 = vector.shape_cast %3 : vector<2x16x16x4xf32> to vector<512x4xf32>
    %5 = arith.truncf %4 : vector<512x4xf32> to vector<512x4xbf16>
    %c0_4 = arith.constant 0 : index
    %c0_5 = arith.constant 0 : index
    %c0_6 = arith.constant 0 : index
    %6 = vector.load %arg3[%c0_4, %c0_5, %c0_6] : memref<1x4x2xbf16, #tpu.memory_space<vmem>>, vector<1x4x2xbf16>
    %7 = vector.shape_cast %6 : vector<1x4x2xbf16> to vector<4x2xbf16>
    %cst = arith.constant dense<0.000000e+00> : vector<512x2xf32>
    %8 = tpu.matmul %5, %7, %cst {dimension_numbers = #tpu.dot_dimension_numbers<[1], [0], [0], [1], [0, 0, 1, 1], [], []>} : vector<512x4xbf16>, vector<4x2xbf16>, vector<512x2xf32> -> vector<512x2xf32>
    %c0_7 = arith.constant 0 : index
    %c0_8 = arith.constant 0 : index
    %c0_9 = arith.constant 0 : index
    %9 = vector.load %arg4[%c0_7, %c0_8, %c0_9] : memref<1x1x2xf32, #tpu.memory_space<vmem>>, vector<1x1x2xf32>
    %10 = vector.shape_cast %9 : vector<1x1x2xf32> to vector<1x2xf32>
    %11 = vector.broadcast %10 : vector<1x2xf32> to vector<512x2xf32>
    %12 = arith.addf %8, %11 : vector<512x2xf32>
    %cst_10 = arith.constant 1.000000e-01 : f32
    %13 = vector.broadcast %cst_10 : f32 to vector<512x2xf32>
    %14 = arith.mulf %13, %12 : vector<512x2xf32>
    %15 = arith.maximumf %12, %14 : vector<512x2xf32>
    %16 = arith.truncf %15 : vector<512x2xf32> to vector<512x2xbf16>
    %17 = vector.shape_cast %16 : vector<512x2xbf16> to vector<2x16x16x2xbf16>
    %c0_11 = arith.constant 0 : index
    %c1 = arith.constant 1 : index
    %c9 = arith.constant 9 : index
    %c0_12 = arith.constant 0 : index
    %18 = vector.load %arg8[%c0_11, %c1, %c9, %c0_12] : memref<2x18x32x6xbf16, #tpu.memory_space<vmem>>, vector<2x16x16x2xbf16>
    tpu.vector_store %arg8[%c0_11, %c1, %c9, %c0_12], %17 {strides = array<i32>} : memref<2x18x32x6xbf16, #tpu.memory_space<vmem>>, vector<2x16x16x2xbf16>,
    %c0_13 = arith.constant 0 : index
    %c1_14 = arith.constant 1 : index
    %c8 = arith.constant 8 : index
    %c2 = arith.constant 2 : index
    %19 = vector.load %arg8[%c0_13, %c1_14, %c8, %c2] : memref<2x18x32x6xbf16, #tpu.memory_space<vmem>>, vector<2x16x16x2xbf16>
    tpu.vector_store %arg8[%c0_13, %c1_14, %c8, %c2], %17 {strides = array<i32>} : memref<2x18x32x6xbf16, #tpu.memory_space<vmem>>, vector<2x16x16x2xbf16>,
    %c0_15 = arith.constant 0 : index
    %c1_16 = arith.constant 1 : index
    %c7 = arith.constant 7 : index
    %c4 = arith.constant 4 : index
    %20 = vector.load %arg8[%c0_15, %c1_16, %c7, %c4] : memref<2x18x32x6xbf16, #tpu.memory_space<vmem>>, vector<2x16x16x2xbf16>
    tpu.vector_store %arg8[%c0_15, %c1_16, %c7, %c4], %17 {strides = array<i32>} : memref<2x18x32x6xbf16, #tpu.memory_space<vmem>>, vector<2x16x16x2xbf16>,
    %c0_17 = arith.constant 0 : index
    %c0_18 = arith.constant 0 : index
    %c8_19 = arith.constant 8 : index
    %c0_20 = arith.constant 0 : index
    %21 = vector.load %arg8[%c0_17, %c0_18, %c8_19, %c0_20] : memref<2x18x32x6xbf16, #tpu.memory_space<vmem>>, vector<2x16x16x6xbf16>
    %22 = vector.shape_cast %21 : vector<2x16x16x6xbf16> to vector<512x6xbf16>
    %c0_21 = arith.constant 0 : index
    %c0_22 = arith.constant 0 : index
    %c0_23 = arith.constant 0 : index
    %c0_24 = arith.constant 0 : index
    %23 = vector.load %arg5[%c0_21, %c0_22, %c0_23, %c0_24] : memref<1x3x6x4xbf16, #tpu.memory_space<vmem>>, vector<1x1x6x4xbf16>
    %24 = vector.shape_cast %23 : vector<1x1x6x4xbf16> to vector<6x4xbf16>
    %cst_25 = arith.constant dense<0.000000e+00> : vector<512x4xf32>
    %25 = tpu.matmul %22, %24, %cst_25 {dimension_numbers = #tpu.dot_dimension_numbers<[1], [0], [0], [1], [0, 0, 1, 1], [], []>} : vector<512x6xbf16>, vector<6x4xbf16>, vector<512x4xf32> -> vector<512x4xf32>
    %c0_26 = arith.constant 0 : index
    %c1_27 = arith.constant 1 : index
    %c8_28 = arith.constant 8 : index
    %c0_29 = arith.constant 0 : index
    %26 = vector.load %arg8[%c0_26, %c1_27, %c8_28, %c0_29] : memref<2x18x32x6xbf16, #tpu.memory_space<vmem>>, vector<2x16x16x6xbf16>
    %27 = vector.shape_cast %26 : vector<2x16x16x6xbf16> to vector<512x6xbf16>
    %c0_30 = arith.constant 0 : index
    %c1_31 = arith.constant 1 : index
    %c0_32 = arith.constant 0 : index
    %c0_33 = arith.constant 0 : index
    %28 = vector.load %arg5[%c0_30, %c1_31, %c0_32, %c0_33] : memref<1x3x6x4xbf16, #tpu.memory_space<vmem>>, vector<1x1x6x4xbf16>
    %29 = vector.shape_cast %28 : vector<1x1x6x4xbf16> to vector<6x4xbf16>
    %cst_34 = arith.constant dense<0.000000e+00> : vector<512x4xf32>
    %30 = tpu.matmul %27, %29, %cst_34 {dimension_numbers = #tpu.dot_dimension_numbers<[1], [0], [0], [1], [0, 0, 1, 1], [], []>} : vector<512x6xbf16>, vector<6x4xbf16>, vector<512x4xf32> -> vector<512x4xf32>
    %c0_35 = arith.constant 0 : index
    %c2_36 = arith.constant 2 : index
    %c8_37 = arith.constant 8 : index
    %c0_38 = arith.constant 0 : index
    %31 = vector.load %arg8[%c0_35, %c2_36, %c8_37, %c0_38] : memref<2x18x32x6xbf16, #tpu.memory_space<vmem>>, vector<2x16x16x6xbf16>
    %32 = vector.shape_cast %31 : vector<2x16x16x6xbf16> to vector<512x6xbf16>
    %c0_39 = arith.constant 0 : index
    %c2_40 = arith.constant 2 : index
    %c0_41 = arith.constant 0 : index
    %c0_42 = arith.constant 0 : index
    %33 = vector.load %arg5[%c0_39, %c2_40, %c0_41, %c0_42] : memref<1x3x6x4xbf16, #tpu.memory_space<vmem>>, vector<1x1x6x4xbf16>
    %34 = vector.shape_cast %33 : vector<1x1x6x4xbf16> to vector<6x4xbf16>
    %cst_43 = arith.constant dense<0.000000e+00> : vector<512x4xf32>
    %35 = tpu.matmul %32, %34, %cst_43 {dimension_numbers = #tpu.dot_dimension_numbers<[1], [0], [0], [1], [0, 0, 1, 1], [], []>} : vector<512x6xbf16>, vector<6x4xbf16>, vector<512x4xf32> -> vector<512x4xf32>
    %36 = arith.addf %25, %30 : vector<512x4xf32>
    %37 = arith.addf %36, %35 : vector<512x4xf32>
    %c0_44 = arith.constant 0 : index
    %c0_45 = arith.constant 0 : index
    %c0_46 = arith.constant 0 : index
    %38 = vector.load %arg6[%c0_44, %c0_45, %c0_46] : memref<1x1x4xf32, #tpu.memory_space<vmem>>, vector<1x1x4xf32>
    %39 = vector.shape_cast %38 : vector<1x1x4xf32> to vector<1x4xf32>
    %40 = vector.broadcast %39 : vector<1x4xf32> to vector<512x4xf32>
    %41 = arith.addf %37, %40 : vector<512x4xf32>
    %cst_47 = arith.constant 1.000000e-01 : f32
    %42 = vector.broadcast %cst_47 : f32 to vector<512x4xf32>
    %43 = arith.mulf %42, %41 : vector<512x4xf32>
    %44 = arith.maximumf %41, %43 : vector<512x4xf32>
    %45 = vector.shape_cast %44 : vector<512x4xf32> to vector<2x16x16x4xf32>
    %46 = arith.addf %3, %45 : vector<2x16x16x4xf32>
    %c0_48 = arith.constant 0 : index
    %c0_49 = arith.constant 0 : index
    %c0_50 = arith.constant 0 : index
    %c0_51 = arith.constant 0 : index
    %47 = vector.load %arg7[%c0_48, %c0_49, %c0_50, %c0_51] : memref<2x16x16x4xf32, #tpu.memory_space<vmem>>, vector<2x16x16x4xf32>
    tpu.vector_store %arg7[%c0_48, %c0_49, %c0_50, %c0_51], %46 {strides = array<i32>} : memref<2x16x16x4xf32, #tpu.memory_space<vmem>>, vector<2x16x16x4xf32>,
    return
  }
  func.func @transform_0(%arg0: i32, %arg1: i32) -> (i32, i32, i32, i32) {
    %c0_i32 = arith.constant 0 : i32
    %c0_i32_0 = arith.constant 0 : i32
    %c0_i32_1 = arith.constant 0 : i32
    %c0_i32_2 = arith.constant 0 : i32
    return %arg0, %c0_i32, %c0_i32_0, %c0_i32_1 : i32, i32, i32, i32
  }
  func.func @transform_1(%arg0: i32, %arg1: i32) -> (i32, i32, i32) {
    %c0_i32 = arith.constant 0 : i32
    %c0_i32_0 = arith.constant 0 : i32
    %c0_i32_1 = arith.constant 0 : i32
    return %arg1, %c0_i32, %c0_i32_0 : i32, i32, i32
  }
  func.func @transform_2(%arg0: i32, %arg1: i32) -> (i32, i32, i32) {
    %c0_i32 = arith.constant 0 : i32
    %c0_i32_0 = arith.constant 0 : i32
    %c0_i32_1 = arith.constant 0 : i32
    return %arg1, %c0_i32, %c0_i32_0 : i32, i32, i32
  }
  func.func @transform_3(%arg0: i32, %arg1: i32) -> (i32, i32, i32, i32) {
    %c0_i32 = arith.constant 0 : i32
    %c0_i32_0 = arith.constant 0 : i32
    %c0_i32_1 = arith.constant 0 : i32
    %c0_i32_2 = arith.constant 0 : i32
    return %arg1, %c0_i32, %c0_i32_0, %c0_i32_1 : i32, i32, i32, i32
  }
  func.func @transform_4(%arg0: i32, %arg1: i32) -> (i32, i32, i32) {
    %c0_i32 = arith.constant 0 : i32
    %c0_i32_0 = arith.constant 0 : i32
    %c0_i32_1 = arith.constant 0 : i32
    return %arg1, %c0_i32, %c0_i32_0 : i32, i32, i32
  }
  func.func @transform_5(%arg0: i32, %arg1: i32) -> (i32, i32, i32, i32) {
    %c0_i32 = arith.constant 0 : i32
    %c0_i32_0 = arith.constant 0 : i32
    %c0_i32_1 = arith.constant 0 : i32
    %c0_i32_2 = arith.constant 0 : i32
    return %arg0, %c0_i32, %c0_i32_0, %c0_i32_1 : i32, i32, i32, i32
  }
}

</mosaic_0001>

<llo_original>
// kernel: tpu_custom_call.1
$region0: #{tpu_custom_call.1}
  #allocation0 [shape = 'u32[]', space=smem, size = 0x4, offset = 0x4, fixed_abs, tag = 'smem constant byte address 0x4 - core index']
  #allocation1 [shape = 'u32[144,128]{1,0:T(1,128)}', space=vmem, size = 0x12000, scoped, tag = 'internal scratch']
  #allocation2 [shape = 'bf16[2,18,32,6]{3,2,1,0:T(16,128)(2,1)}', space=vmem, size = 0x48000, scoped, tag = 'scratch operand']
  %s0 = inlined_call_operand.vmem [shape: f32[2,16,16,4], index: 0, kind: input, shape index: {}]
  %s1 = inlined_call_operand.vmem [shape: bf16[2,4,2], index: 1, kind: input, shape index: {}]
  %s2 = inlined_call_operand.vmem [shape: f32[2,1,2], index: 2, kind: input, shape index: {}]
  %s3 = inlined_call_operand.vmem [shape: bf16[2,3,6,4], index: 3, kind: input, shape index: {}]
  %s4 = inlined_call_operand.vmem [shape: f32[2,1,4], index: 4, kind: input, shape index: {}]
  %s5 = inlined_call_operand.vmem [shape: f32[2,16,16,4], index: 5, kind: output, shape index: {}]
  %s6 = sld [smem:[#allocation0]]
  $region57: #{tpu_custom_call.1} parent=0
    _
  %s8 = ssub.s32 1, %s6
  %s9 = scalar_select 0, %s8, %s6
  loop: start=0, step=1, limit=4
  $region2: #{tpu_custom_call.1} parent=0 // loop_pre_header
    _
  $region3: #{tpu_custom_call.1} parent=0 // loop_header
    %s11 = sphi 0, %s15
    %p12 = scmp.ge.s32.totalorder %s11, 4
    %s18 = sphi 0, %s30
    %s19 = sphi 0, %s26
    %s20 = sphi 0, %s18
    %s21 = sphi 0, %s19
    %s22 = sphi 0, %s20
    %s23 = sphi 0, %s21
    %s33 = sphi 0, %s35
    %s36 = sphi 0, %s33
    %s37 = sphi 0, %s36
    %s53 = sphi 0, %s37
    %s59 = sphi 0, %s61
    %s62 = sphi 0, %s59
    %s63 = sphi 0, %s62
    %s79 = sphi 0, %s63
    %s85 = sphi 0, %s87
    %s88 = sphi 0, %s85
    %s89 = sphi 0, %s88
    %s105 = sphi 0, %s89
    %s111 = sphi 0, %s113
    %s114 = sphi 0, %s111
    %s115 = sphi 0, %s114
    %s131 = sphi 0, %s115
    %s137 = sphi 0, %s139
    %s140 = sphi 0, %s137
    %s141 = sphi 0, %s140
    %s157 = sphi 0, %s141
    %s163 = sphi 0, %s165
    %s166 = sphi 0, %s163
    %s167 = sphi 0, %s166
    %s183 = sphi 0, %s167
  $region4: #{tpu_custom_call.1} parent=0 // loop_header_branch
    %14 = sbr.rel (%p12) target = $region8
  $region5: #{tpu_custom_call.1} parent=0 // loop_body
    %s16 = ssub.s32 %s11, 1
    %s17 = ssub.s32 %s11, 2
    %s24 = sadd.s32 1, %s19
    %p25 = scmp.ge.s32.totalorder %s24, 2
    %s26 = scalar_select %p25, 0, %s24
    %s27 = sadd.s32 1, %s18
    %s28 = scalar_select %p25, %s27, %s18
    %p29 = scmp.ge.s32.totalorder %s28, 1
    %s30 = scalar_select %p29, 0, %s28
    %s31 = ssub.s32 %s18, %s30
    %p32 = scmp.eq.s32.totalorder %s31, 0
    %s34 = sadd.s32 %s33, 1
    %s35 = scalar_select %p32, %s33, %s34
    %p38 = pneg %p32
    %p39 = scmp.eq.s32.totalorder %s11, 1
    %p40 = por %p38, %p39
    %p41 = scmp.ne.s32.totalorder %s33, %s36
    %p42 = scmp.eq.s32.totalorder %s11, 0
    %p43 = por %p41, %p42
    %p44 = scmp.ne.s32.totalorder %s33, %s36
    %p45 = scmp.eq.s32.totalorder %s16, 1
    %p46 = por %p44, %p45
    %p47 = scmp.ne.s32.totalorder %s36, %s37
    %p48 = scmp.eq.s32.totalorder %s16, 0
    %p49 = por %p47, %p48
    %p50 = scmp.ne.s32.totalorder %s36, %s37
    %p51 = scmp.eq.s32.totalorder %s17, 1
    %p52 = por %p50, %p51
    %p54 = scmp.ne.s32.totalorder %s37, %s53
    %p55 = scmp.eq.s32.totalorder %s17, 0
    %p56 = por %p54, %p55
    %s57 = ssub.s32 %s19, %s26
    %p58 = scmp.eq.s32.totalorder %s57, 0
    %s60 = sadd.s32 %s59, 1
    %s61 = scalar_select %p58, %s59, %s60
    %p64 = pneg %p58
    %p65 = scmp.eq.s32.totalorder %s11, 1
    %p66 = por %p64, %p65
    %p67 = scmp.ne.s32.totalorder %s59, %s62
    %p68 = scmp.eq.s32.totalorder %s11, 0
    %p69 = por %p67, %p68
    %p70 = scmp.ne.s32.totalorder %s59, %s62
    %p71 = scmp.eq.s32.totalorder %s16, 1
    %p72 = por %p70, %p71
    %p73 = scmp.ne.s32.totalorder %s62, %s63
    %p74 = scmp.eq.s32.totalorder %s16, 0
    %p75 = por %p73, %p74
    %p76 = scmp.ne.s32.totalorder %s62, %s63
    %p77 = scmp.eq.s32.totalorder %s17, 1
    %p78 = por %p76, %p77
    %p80 = scmp.ne.s32.totalorder %s63, %s79
    %p81 = scmp.eq.s32.totalorder %s17, 0
    %p82 = por %p80, %p81
    %s83 = ssub.s32 %s19, %s26
    %p84 = scmp.eq.s32.totalorder %s83, 0
    %s86 = sadd.s32 %s85, 1
    %s87 = scalar_select %p84, %s85, %s86
    %p90 = pneg %p84
    %p91 = scmp.eq.s32.totalorder %s11, 1
    %p92 = por %p90, %p91
    %p93 = scmp.ne.s32.totalorder %s85, %s88
    %p94 = scmp.eq.s32.totalorder %s11, 0
    %p95 = por %p93, %p94
    %p96 = scmp.ne.s32.totalorder %s85, %s88
    %p97 = scmp.eq.s32.totalorder %s16, 1
    %p98 = por %p96, %p97
    %p99 = scmp.ne.s32.totalorder %s88, %s89
    %p100 = scmp.eq.s32.totalorder %s16, 0
    %p101 = por %p99, %p100
    %p102 = scmp.ne.s32.totalorder %s88, %s89
    %p103 = scmp.eq.s32.totalorder %s17, 1
    %p104 = por %p102, %p103
    %p106 = scmp.ne.s32.totalorder %s89, %s105
    %p107 = scmp.eq.s32.totalorder %s17, 0
    %p108 = por %p106, %p107
    %s109 = ssub.s32 %s19, %s26
    %p110 = scmp.eq.s32.totalorder %s109, 0
    %s112 = sadd.s32 %s111, 1
    %s113 = scalar_select %p110, %s111, %s112
    %p116 = pneg %p110
    %p117 = scmp.eq.s32.totalorder %s11, 1
    %p118 = por %p116, %p117
    %p119 = scmp.ne.s32.totalorder %s111, %s114
    %p120 = scmp.eq.s32.totalorder %s11, 0
    %p121 = por %p119, %p120
    %p122 = scmp.ne.s32.totalorder %s111, %s114
    %p123 = scmp.eq.s32.totalorder %s16, 1
    %p124 = por %p122, %p123
    %p125 = scmp.ne.s32.totalorder %s114, %s115
    %p126 = scmp.eq.s32.totalorder %s16, 0
    %p127 = por %p125, %p126
    %p128 = scmp.ne.s32.totalorder %s114, %s115
    %p129 = scmp.eq.s32.totalorder %s17, 1
    %p130 = por %p128, %p129
    %p132 = scmp.ne.s32.totalorder %s115, %s131
    %p133 = scmp.eq.s32.totalorder %s17, 0
    %p134 = por %p132, %p133
    %s135 = ssub.s32 %s19, %s26
    %p136 = scmp.eq.s32.totalorder %s135, 0
    %s138 = sadd.s32 %s137, 1
    %s139 = scalar_select %p136, %s137, %s138
    %p142 = pneg %p136
    %p143 = scmp.eq.s32.totalorder %s11, 1
    %p144 = por %p142, %p143
    %p145 = scmp.ne.s32.totalorder %s137, %s140
    %p146 = scmp.eq.s32.totalorder %s11, 0
    %p147 = por %p145, %p146
    %p148 = scmp.ne.s32.totalorder %s137, %s140
    %p149 = scmp.eq.s32.totalorder %s16, 1
    %p150 = por %p148, %p149
    %p151 = scmp.ne.s32.totalorder %s140, %s141
    %p152 = scmp.eq.s32.totalorder %s16, 0
    %p153 = por %p151, %p152
    %p154 = scmp.ne.s32.totalorder %s140, %s141
    %p155 = scmp.eq.s32.totalorder %s17, 1
    %p156 = por %p154, %p155
    %p158 = scmp.ne.s32.totalorder %s141, %s157
    %p159 = scmp.eq.s32.totalorder %s17, 0
    %p160 = por %p158, %p159
    %s161 = ssub.s32 %s18, %s30
    %p162 = scmp.eq.s32.totalorder %s161, 0
    %s164 = sadd.s32 %s163, 1
    %s165 = scalar_select %p162, %s163, %s164
    %p168 = pneg %p162
    %p169 = scmp.eq.s32.totalorder %s11, 1
    %p170 = por %p168, %p169
    %p171 = scmp.ne.s32.totalorder %s163, %s166
    %p172 = scmp.eq.s32.totalorder %s11, 0
    %p173 = por %p171, %p172
    %p174 = scmp.ne.s32.totalorder %s163, %s166
    %p175 = scmp.eq.s32.totalorder %s16, 1
    %p176 = por %p174, %p175
    %p177 = scmp.ne.s32.totalorder %s166, %s167
    %p178 = scmp.eq.s32.totalorder %s16, 0
    %p179 = por %p177, %p178
    %p180 = scmp.ne.s32.totalorder %s166, %s167
    %p181 = scmp.eq.s32.totalorder %s17, 1
    %p182 = por %p180, %p181
    %p184 = scmp.ne.s32.totalorder %s167, %s183
    %p185 = scmp.eq.s32.totalorder %s17, 0
    %p186 = por %p184, %p185
    %p187 = scmp.le.s32.totalorder 1, %s11
    %p188 = scmp.lt.s32.totalorder %s11, 3
    %p189 = pnand %p187, %p188
    %p190 = pneg %p189
    // Predicated region
    $region9: #{tpu_custom_call.1} parent=5 // pred_check
      _
    $region10: #{tpu_custom_call.1} parent=5 // pred_check_branch
      %192 = sbr.rel (%p189) target = $region12
    $region11: #{tpu_custom_call.1} parent=5 // pred_region
      %s193 = ssub.s32 %s11, 1
      // Predicated region
      $region13: #{tpu_custom_call.1} parent=11 // pred_check
        %p194 = pneg %p49
      $region14: #{tpu_custom_call.1} parent=11 // pred_check_branch
        %196 = sbr.rel (%p194) target = $region16
      $region15: #{tpu_custom_call.1} parent=11 // pred_region
        %s197 = smul.u32 2, %s20
        %p198 = scmp.lt.s32.totalorder %s197, 1
        %s199 = scalar_select %p198, %s197, 1
        %s200 = smul.addr %s199, 32
        %s201 = smul.addr %s200, 8
        %s202 = scalar_lea.vmem %s0, %s201
        %s203 = smul.u32 2, %s20
      $region16: #{tpu_custom_call.1} parent=11 // pred_fallthru
        _
    $region12: #{tpu_custom_call.1} parent=5 // pred_fallthru
      _
    %p204 = scmp.lt.s32.totalorder %s11, 2
    // Predicated region
    $region17: #{tpu_custom_call.1} parent=5 // pred_check
      %p205 = pneg %p204
    $region18: #{tpu_custom_call.1} parent=5 // pred_check_branch
      %207 = sbr.rel (%p205) target = $region20
    $region19: #{tpu_custom_call.1} parent=5 // pred_region
      // Predicated region
      $region21: #{tpu_custom_call.1} parent=19 // pred_check
        %p208 = pneg %p69
      $region22: #{tpu_custom_call.1} parent=19 // pred_check_branch
        %210 = sbr.rel (%p208) target = $region24
      $region23: #{tpu_custom_call.1} parent=19 // pred_region
        %p211 = scmp.lt.s32.totalorder %s19, 1
        %s212 = scalar_select %p211, %s19, 1
        %s213 = smul.addr %s212, 2
        %s214 = scalar_lea.vmem %s1, %s213
      $region24: #{tpu_custom_call.1} parent=19 // pred_fallthru
        _
      // Predicated region
      $region25: #{tpu_custom_call.1} parent=19 // pred_check
        %p215 = pneg %p95
      $region26: #{tpu_custom_call.1} parent=19 // pred_check_branch
        %217 = sbr.rel (%p215) target = $region28
      $region27: #{tpu_custom_call.1} parent=19 // pred_region
        %p218 = scmp.lt.s32.totalorder %s19, 1
        %s219 = scalar_select %p218, %s19, 1
        %s220 = scalar_lea.vmem %s2, %s219
      $region28: #{tpu_custom_call.1} parent=19 // pred_fallthru
        _
      // Predicated region
      $region29: #{tpu_custom_call.1} parent=19 // pred_check
        %p221 = pneg %p121
      $region30: #{tpu_custom_call.1} parent=19 // pred_check_branch
        %223 = sbr.rel (%p221) target = $region32
      $region31: #{tpu_custom_call.1} parent=19 // pred_region
        %p224 = scmp.lt.s32.totalorder %s19, 1
        %s225 = scalar_select %p224, %s19, 1
        %s226 = smul.addr %s225, 3
        %s227 = smul.addr %s226, 4
        %s228 = scalar_lea.vmem %s3, %s227
      $region32: #{tpu_custom_call.1} parent=19 // pred_fallthru
        _
      // Predicated region
      $region33: #{tpu_custom_call.1} parent=19 // pred_check
        %p229 = pneg %p147
      $region34: #{tpu_custom_call.1} parent=19 // pred_check_branch
        %231 = sbr.rel (%p229) target = $region36
      $region35: #{tpu_custom_call.1} parent=19 // pred_region
        %p232 = scmp.lt.s32.totalorder %s19, 1
        %s233 = scalar_select %p232, %s19, 1
        %s234 = scalar_lea.vmem %s4, %s233
      $region36: #{tpu_custom_call.1} parent=19 // pred_fallthru
        _
    $region20: #{tpu_custom_call.1} parent=5 // pred_fallthru
      _
    %p235 = scmp.le.s32.totalorder 1, %s11
    %p236 = scmp.lt.s32.totalorder %s11, 3
    %p237 = pnand %p235, %p236
    %p238 = pneg %p237
    // Predicated region
    $region37: #{tpu_custom_call.1} parent=5 // pred_check
      _
    $region38: #{tpu_custom_call.1} parent=5 // pred_check_branch
      %240 = sbr.rel (%p237) target = $region40
    $region39: #{tpu_custom_call.1} parent=5 // pred_region
      %s241 = ssub.s32 %s11, 1
      %s242 = smul.u32 2, %s20
      %p243 = scmp.lt.s32.totalorder %s242, 1
      %s244 = scalar_select %p243, %s242, 1
      %s245 = smul.addr %s244, 32
      %s246 = smul.addr %s245, 8
      %s247 = scalar_lea.vmem %s0, %s246
      %p248 = pneg %p49
      %p249 = pneg %p46
      %p250 = scmp.lt.s32.totalorder %s21, 1
      %s251 = scalar_select %p250, %s21, 1
      %s252 = smul.addr %s251, 2
      %s253 = scalar_lea.vmem %s1, %s252
      %p254 = pneg %p75
      %p255 = pneg %p72
      %p256 = scmp.lt.s32.totalorder %s21, 1
      %s257 = scalar_select %p256, %s21, 1
      %s258 = scalar_lea.vmem %s2, %s257
      %p259 = pneg %p101
      %p260 = pneg %p98
      %p261 = scmp.lt.s32.totalorder %s21, 1
      %s262 = scalar_select %p261, %s21, 1
      %s263 = smul.addr %s262, 3
      %s264 = smul.addr %s263, 4
      %s265 = scalar_lea.vmem %s3, %s264
      %p266 = pneg %p127
      %p267 = pneg %p124
      %p268 = scmp.lt.s32.totalorder %s21, 1
      %s269 = scalar_select %p268, %s21, 1
      %s270 = scalar_lea.vmem %s4, %s269
      %p271 = pneg %p153
      %p272 = pneg %p150
      %p273 = pneg %p179
      %p274 = pneg %p176
      %s275 = smul.u32 2, %s20
      %p276 = scmp.lt.s32.totalorder %s275, 1
      %s277 = scalar_select %p276, %s275, 1
      %s278 = smul.addr %s277, 32
      %s279 = smul.addr %s278, 8
      %s280 = scalar_lea.vmem %s5, %s279
      %s281 = smul.u32 2, %s20
      %p282 = scmp.lt.s32.totalorder %s281, 1
      %s283 = scalar_select %p282, %s281, 1
      %s284 = smul.addr %s283, 32
      %s285 = smul.addr %s284, 8
      %s286 = scalar_lea.vmem %s0, %s285
      %s287 = smul.u32 2, %s20
      %p288 = scmp.lt.s32.totalorder %s21, 1
      %s289 = scalar_select %p288, %s21, 1
      %s290 = smul.addr %s289, 2
      %s291 = scalar_lea.vmem %s1, %s290
      %p292 = scmp.lt.s32.totalorder %s21, 1
      %s293 = scalar_select %p292, %s21, 1
      %s294 = scalar_lea.vmem %s2, %s293
      %p295 = scmp.lt.s32.totalorder %s21, 1
      %s296 = scalar_select %p295, %s21, 1
      %s297 = smul.addr %s296, 3
      %s298 = smul.addr %s297, 4
      %s299 = scalar_lea.vmem %s3, %s298
      %p300 = scmp.lt.s32.totalorder %s21, 1
      %s301 = scalar_select %p300, %s21, 1
      %s302 = scalar_lea.vmem %s4, %s301
      %s303 = smul.u32 2, %s20
      %p304 = scmp.lt.s32.totalorder %s303, 1
      %s305 = scalar_select %p304, %s303, 1
      %s306 = smul.addr %s305, 32
      %s307 = smul.addr %s306, 8
      %s308 = scalar_lea.vmem %s5, %s307
      %s309 = smul.u32 2, %s20
      %p311 = scmp.eq.s32.totalorder %s21, 0
      // Predicated region
      $region41: #{tpu_custom_call.1} parent=39 // pred_check
        %p312 = pneg %p311
      $region42: #{tpu_custom_call.1} parent=39 // pred_check_branch
        %314 = sbr.rel (%p312) target = $region44
      $region43: #{tpu_custom_call.1} parent=39 // pred_region
        %v315 = vld [vmem:[%s286] sm:$0xff]
        %v316 = vld [vmem:[%s286 + $0x8] sm:$0xff]
        %v317 = vld [vmem:[%s286 + $0x10] sm:$0xff]
        %v318 = vld [vmem:[%s286 + $0x18] sm:$0xff]
        %v319 = vld [vmem:[%s286 + $0x20] sm:$0xff]
        %v320 = vld [vmem:[%s286 + $0x28] sm:$0xff]
        %v321 = vld [vmem:[%s286 + $0x30] sm:$0xff]
        %v322 = vld [vmem:[%s286 + $0x38] sm:$0xff]
        %v323 = vld [vmem:[%s286 + $0x40] sm:$0xff]
        %v324 = vld [vmem:[%s286 + $0x48] sm:$0xff]
        %v325 = vld [vmem:[%s286 + $0x50] sm:$0xff]
        %v326 = vld [vmem:[%s286 + $0x58] sm:$0xff]
        %v327 = vld [vmem:[%s286 + $0x60] sm:$0xff]
        %v328 = vld [vmem:[%s286 + $0x68] sm:$0xff]
        %v329 = vld [vmem:[%s286 + $0x70] sm:$0xff]
        %v330 = vld [vmem:[%s286 + $0x78] sm:$0xff]
        %v331 = vld [vmem:[%s286 + $0x80] sm:$0xff]
        %v332 = vld [vmem:[%s286 + $0x88] sm:$0xff]
        %v333 = vld [vmem:[%s286 + $0x90] sm:$0xff]
        %v334 = vld [vmem:[%s286 + $0x98] sm:$0xff]
        %v335 = vld [vmem:[%s286 + $0xa0] sm:$0xff]
        %v336 = vld [vmem:[%s286 + $0xa8] sm:$0xff]
        %v337 = vld [vmem:[%s286 + $0xb0] sm:$0xff]
        %v338 = vld [vmem:[%s286 + $0xb8] sm:$0xff]
        %v339 = vld [vmem:[%s286 + $0xc0] sm:$0xff]
        %v340 = vld [vmem:[%s286 + $0xc8] sm:$0xff]
        %v341 = vld [vmem:[%s286 + $0xd0] sm:$0xff]
        %v342 = vld [vmem:[%s286 + $0xd8] sm:$0xff]
        %v343 = vld [vmem:[%s286 + $0xe0] sm:$0xff]
        %v344 = vld [vmem:[%s286 + $0xe8] sm:$0xff]
        %v345 = vld [vmem:[%s286 + $0xf0] sm:$0xff]
        %v346 = vld [vmem:[%s286 + $0xf8] sm:$0xff]
        %v347 = vld [vmem:[%s286 + $0x100] sm:$0xff]
        %v348 = vld [vmem:[%s286 + $0x108] sm:$0xff]
        %v349 = vld [vmem:[%s286 + $0x110] sm:$0xff]
        %v350 = vld [vmem:[%s286 + $0x118] sm:$0xff]
        %v351 = vld [vmem:[%s286 + $0x120] sm:$0xff]
        %v352 = vld [vmem:[%s286 + $0x128] sm:$0xff]
        %v353 = vld [vmem:[%s286 + $0x130] sm:$0xff]
        %v354 = vld [vmem:[%s286 + $0x138] sm:$0xff]
        %v355 = vld [vmem:[%s286 + $0x140] sm:$0xff]
        %v356 = vld [vmem:[%s286 + $0x148] sm:$0xff]
        %v357 = vld [vmem:[%s286 + $0x150] sm:$0xff]
        %v358 = vld [vmem:[%s286 + $0x158] sm:$0xff]
        %v359 = vld [vmem:[%s286 + $0x160] sm:$0xff]
        %v360 = vld [vmem:[%s286 + $0x168] sm:$0xff]
        %v361 = vld [vmem:[%s286 + $0x170] sm:$0xff]
        %v362 = vld [vmem:[%s286 + $0x178] sm:$0xff]
        %v363 = vld [vmem:[%s286 + $0x180] sm:$0xff]
        %v364 = vld [vmem:[%s286 + $0x188] sm:$0xff]
        %v365 = vld [vmem:[%s286 + $0x190] sm:$0xff]
        %v366 = vld [vmem:[%s286 + $0x198] sm:$0xff]
        %v367 = vld [vmem:[%s286 + $0x1a0] sm:$0xff]
        %v368 = vld [vmem:[%s286 + $0x1a8] sm:$0xff]
        %v369 = vld [vmem:[%s286 + $0x1b0] sm:$0xff]
        %v370 = vld [vmem:[%s286 + $0x1b8] sm:$0xff]
        %v371 = vld [vmem:[%s286 + $0x1c0] sm:$0xff]
        %v372 = vld [vmem:[%s286 + $0x1c8] sm:$0xff]
        %v373 = vld [vmem:[%s286 + $0x1d0] sm:$0xff]
        %v374 = vld [vmem:[%s286 + $0x1d8] sm:$0xff]
        %v375 = vld [vmem:[%s286 + $0x1e0] sm:$0xff]
        %v376 = vld [vmem:[%s286 + $0x1e8] sm:$0xff]
        %v377 = vld [vmem:[%s286 + $0x1f0] sm:$0xff]
        %v378 = vld [vmem:[%s286 + $0x1f8] sm:$0xff]
        %vm379 = vcmask 31744
        %380 = vst.msk [vmem:[%s308] sm:$0xff] %vm379, %v315
        %381 = vst.msk [vmem:[%s308 + $0x8] sm:$0xff] %vm379, %v316
        %382 = vst.msk [vmem:[%s308 + $0x10] sm:$0xff] %vm379, %v317
        %383 = vst.msk [vmem:[%s308 + $0x18] sm:$0xff] %vm379, %v318
        %384 = vst.msk [vmem:[%s308 + $0x20] sm:$0xff] %vm379, %v319
        %385 = vst.msk [vmem:[%s308 + $0x28] sm:$0xff] %vm379, %v320
        %386 = vst.msk [vmem:[%s308 + $0x30] sm:$0xff] %vm379, %v321
        %387 = vst.msk [vmem:[%s308 + $0x38] sm:$0xff] %vm379, %v322
        %388 = vst.msk [vmem:[%s308 + $0x40] sm:$0xff] %vm379, %v323
        %389 = vst.msk [vmem:[%s308 + $0x48] sm:$0xff] %vm379, %v324
        %390 = vst.msk [vmem:[%s308 + $0x50] sm:$0xff] %vm379, %v325
        %391 = vst.msk [vmem:[%s308 + $0x58] sm:$0xff] %vm379, %v326
        %392 = vst.msk [vmem:[%s308 + $0x60] sm:$0xff] %vm379, %v327
        %393 = vst.msk [vmem:[%s308 + $0x68] sm:$0xff] %vm379, %v328
        %394 = vst.msk [vmem:[%s308 + $0x70] sm:$0xff] %vm379, %v329
        %395 = vst.msk [vmem:[%s308 + $0x78] sm:$0xff] %vm379, %v330
        %396 = vst.msk [vmem:[%s308 + $0x80] sm:$0xff] %vm379, %v331
        %397 = vst.msk [vmem:[%s308 + $0x88] sm:$0xff] %vm379, %v332
        %398 = vst.msk [vmem:[%s308 + $0x90] sm:$0xff] %vm379, %v333
        %399 = vst.msk [vmem:[%s308 + $0x98] sm:$0xff] %vm379, %v334
        %400 = vst.msk [vmem:[%s308 + $0xa0] sm:$0xff] %vm379, %v335
        %401 = vst.msk [vmem:[%s308 + $0xa8] sm:$0xff] %vm379, %v336
        %402 = vst.msk [vmem:[%s308 + $0xb0] sm:$0xff] %vm379, %v337
        %403 = vst.msk [vmem:[%s308 + $0xb8] sm:$0xff] %vm379, %v338
        %404 = vst.msk [vmem:[%s308 + $0xc0] sm:$0xff] %vm379, %v339
        %405 = vst.msk [vmem:[%s308 + $0xc8] sm:$0xff] %vm379, %v340
        %406 = vst.msk [vmem:[%s308 + $0xd0] sm:$0xff] %vm379, %v341
        %407 = vst.msk [vmem:[%s308 + $0xd8] sm:$0xff] %vm379, %v342
        %408 = vst.msk [vmem:[%s308 + $0xe0] sm:$0xff] %vm379, %v343
        %409 = vst.msk [vmem:[%s308 + $0xe8] sm:$0xff] %vm379, %v344
        %410 = vst.msk [vmem:[%s308 + $0xf0] sm:$0xff] %vm379, %v345
        %411 = vst.msk [vmem:[%s308 + $0xf8] sm:$0xff] %vm379, %v346
        %412 = vst.msk [vmem:[%s308 + $0x100] sm:$0xff] %vm379, %v347
        %413 = vst.msk [vmem:[%s308 + $0x108] sm:$0xff] %vm379, %v348
        %414 = vst.msk [vmem:[%s308 + $0x110] sm:$0xff] %vm379, %v349
        %415 = vst.msk [vmem:[%s308 + $0x118] sm:$0xff] %vm379, %v350
        %416 = vst.msk [vmem:[%s308 + $0x120] sm:$0xff] %vm379, %v351
        %417 = vst.msk [vmem:[%s308 + $0x128] sm:$0xff] %vm379, %v352
        %418 = vst.msk [vmem:[%s308 + $0x130] sm:$0xff] %vm379, %v353
        %419 = vst.msk [vmem:[%s308 + $0x138] sm:$0xff] %vm379, %v354
        %420 = vst.msk [vmem:[%s308 + $0x140] sm:$0xff] %vm379, %v355
        %421 = vst.msk [vmem:[%s308 + $0x148] sm:$0xff] %vm379, %v356
        %422 = vst.msk [vmem:[%s308 + $0x150] sm:$0xff] %vm379, %v357
        %423 = vst.msk [vmem:[%s308 + $0x158] sm:$0xff] %vm379, %v358
        %424 = vst.msk [vmem:[%s308 + $0x160] sm:$0xff] %vm379, %v359
        %425 = vst.msk [vmem:[%s308 + $0x168] sm:$0xff] %vm379, %v360
        %426 = vst.msk [vmem:[%s308 + $0x170] sm:$0xff] %vm379, %v361
        %427 = vst.msk [vmem:[%s308 + $0x178] sm:$0xff] %vm379, %v362
        %428 = vst.msk [vmem:[%s308 + $0x180] sm:$0xff] %vm379, %v363
        %429 = vst.msk [vmem:[%s308 + $0x188] sm:$0xff] %vm379, %v364
        %430 = vst.msk [vmem:[%s308 + $0x190] sm:$0xff] %vm379, %v365
        %431 = vst.msk [vmem:[%s308 + $0x198] sm:$0xff] %vm379, %v366
        %432 = vst.msk [vmem:[%s308 + $0x1a0] sm:$0xff] %vm379, %v367
        %433 = vst.msk [vmem:[%s308 + $0x1a8] sm:$0xff] %vm379, %v368
        %434 = vst.msk [vmem:[%s308 + $0x1b0] sm:$0xff] %vm379, %v369
        %435 = vst.msk [vmem:[%s308 + $0x1b8] sm:$0xff] %vm379, %v370
        %436 = vst.msk [vmem:[%s308 + $0x1c0] sm:$0xff] %vm379, %v371
        %437 = vst.msk [vmem:[%s308 + $0x1c8] sm:$0xff] %vm379, %v372
        %438 = vst.msk [vmem:[%s308 + $0x1d0] sm:$0xff] %vm379, %v373
        %439 = vst.msk [vmem:[%s308 + $0x1d8] sm:$0xff] %vm379, %v374
        %440 = vst.msk [vmem:[%s308 + $0x1e0] sm:$0xff] %vm379, %v375
        %441 = vst.msk [vmem:[%s308 + $0x1e8] sm:$0xff] %vm379, %v376
        %442 = vst.msk [vmem:[%s308 + $0x1f0] sm:$0xff] %vm379, %v377
        %443 = vst.msk [vmem:[%s308 + $0x1f8] sm:$0xff] %vm379, %v378
        %vm444 = vcmask 48132
        %445 = vst.msk [vmem:[#allocation2] sm:$0xf0] %vm444, 0
        %vm446 = vcmask 44032
        %447 = vst.msk [vmem:[#allocation2 + $0x8] sm:$0xf] %vm446, 0
        %448 = vst.msk [vmem:[#allocation2 + $0x120] sm:$0xf0] %vm444, 0
        %449 = vst.msk [vmem:[#allocation2 + $0x128] sm:$0xf] %vm446, 0
        %s450 = scalar_lea.vmem [#allocation2], 272
        %451 = vst.msk [vmem:[%s450] sm:$0xf0] %vm444, 0
        %452 = vst.msk [vmem:[%s450 + $0x8] sm:$0xf] %vm446, 0
        %453 = vst.msk [vmem:[%s450 + $0x120] sm:$0xf0] %vm444, 0
        %454 = vst.msk [vmem:[%s450 + $0x128] sm:$0xf] %vm446, 0
        %vm455 = vcmask 12292
        %vm456 = vsmask.f32 4352
        %vm457 = vmand %vm455, %vm456
        %v458 = vld [vmem:[#allocation2] sm:$0x10]
        %v459 = vsel %vm457, 0, %v458
        %460 = vst [vmem:[#allocation2] sm:$0x10] %v459
        %v461 = vld [vmem:[#allocation2 + $0x10] sm:$0x10]
        %v462 = vsel %vm457, 0, %v461
        %463 = vst [vmem:[#allocation2 + $0x10] sm:$0x10] %v462
        %v464 = vld [vmem:[#allocation2 + $0x20] sm:$0x10]
        %v465 = vsel %vm457, 0, %v464
        %466 = vst [vmem:[#allocation2 + $0x20] sm:$0x10] %v465
        %v467 = vld [vmem:[#allocation2 + $0x30] sm:$0x10]
        %v468 = vsel %vm457, 0, %v467
        %469 = vst [vmem:[#allocation2 + $0x30] sm:$0x10] %v468
        %v470 = vld [vmem:[#allocation2 + $0x40] sm:$0x10]
        %v471 = vsel %vm457, 0, %v470
        %472 = vst [vmem:[#allocation2 + $0x40] sm:$0x10] %v471
        %v473 = vld [vmem:[#allocation2 + $0x50] sm:$0x10]
        %v474 = vsel %vm457, 0, %v473
        %475 = vst [vmem:[#allocation2 + $0x50] sm:$0x10] %v474
        %v476 = vld [vmem:[#allocation2 + $0x60] sm:$0x10]
        %v477 = vsel %vm457, 0, %v476
        %478 = vst [vmem:[#allocation2 + $0x60] sm:$0x10] %v477
        %v479 = vld [vmem:[#allocation2 + $0x70] sm:$0x10]
        %v480 = vsel %vm457, 0, %v479
        %481 = vst [vmem:[#allocation2 + $0x70] sm:$0x10] %v480
        %v482 = vld [vmem:[#allocation2 + $0x80] sm:$0x10]
        %v483 = vsel %vm457, 0, %v482
        %484 = vst [vmem:[#allocation2 + $0x80] sm:$0x10] %v483
        %v485 = vld [vmem:[#allocation2 + $0x90] sm:$0x10]
        %v486 = vsel %vm457, 0, %v485
        %487 = vst [vmem:[#allocation2 + $0x90] sm:$0x10] %v486
        %v488 = vld [vmem:[#allocation2 + $0xa0] sm:$0x10]
        %v489 = vsel %vm457, 0, %v488
        %490 = vst [vmem:[#allocation2 + $0xa0] sm:$0x10] %v489
        %v491 = vld [vmem:[#allocation2 + $0xb0] sm:$0x10]
        %v492 = vsel %vm457, 0, %v491
        %493 = vst [vmem:[#allocation2 + $0xb0] sm:$0x10] %v492
        %v494 = vld [vmem:[#allocation2 + $0xc0] sm:$0x10]
        %v495 = vsel %vm457, 0, %v494
        %496 = vst [vmem:[#allocation2 + $0xc0] sm:$0x10] %v495
        %v497 = vld [vmem:[#allocation2 + $0xd0] sm:$0x10]
        %v498 = vsel %vm457, 0, %v497
        %499 = vst [vmem:[#allocation2 + $0xd0] sm:$0x10] %v498
        %v500 = vld [vmem:[#allocation2 + $0xe0] sm:$0x10]
        %v501 = vsel %vm457, 0, %v500
        %502 = vst [vmem:[#allocation2 + $0xe0] sm:$0x10] %v501
        %v503 = vld [vmem:[#allocation2 + $0xf0] sm:$0x10]
        %v504 = vsel %vm457, 0, %v503
        %505 = vst [vmem:[#allocation2 + $0xf0] sm:$0x10] %v504
        %v506 = vld [vmem:[#allocation2 + $0x100] sm:$0x10]
        %v507 = vsel %vm457, 0, %v506
        %508 = vst [vmem:[#allocation2 + $0x100] sm:$0x10] %v507
        %v509 = vld [vmem:[#allocation2 + $0x110] sm:$0x10]
        %v510 = vsel %vm457, 0, %v509
        %511 = vst [vmem:[#allocation2 + $0x110] sm:$0x10] %v510
        %v512 = vld [vmem:[#allocation2 + $0x120] sm:$0x10]
        %v513 = vsel %vm457, 0, %v512
        %514 = vst [vmem:[#allocation2 + $0x120] sm:$0x10] %v513
        %v515 = vld [vmem:[#allocation2 + $0x130] sm:$0x10]
        %v516 = vsel %vm457, 0, %v515
        %517 = vst [vmem:[#allocation2 + $0x130] sm:$0x10] %v516
        %v518 = vld [vmem:[#allocation2 + $0x140] sm:$0x10]
        %v519 = vsel %vm457, 0, %v518
        %520 = vst [vmem:[#allocation2 + $0x140] sm:$0x10] %v519
        %v521 = vld [vmem:[#allocation2 + $0x150] sm:$0x10]
        %v522 = vsel %vm457, 0, %v521
        %523 = vst [vmem:[#allocation2 + $0x150] sm:$0x10] %v522
        %v524 = vld [vmem:[#allocation2 + $0x160] sm:$0x10]
        %v525 = vsel %vm457, 0, %v524
        %526 = vst [vmem:[#allocation2 + $0x160] sm:$0x10] %v525
        %v527 = vld [vmem:[#allocation2 + $0x170] sm:$0x10]
        %v528 = vsel %vm457, 0, %v527
        %529 = vst [vmem:[#allocation2 + $0x170] sm:$0x10] %v528
        %v530 = vld [vmem:[#allocation2 + $0x180] sm:$0x10]
        %v531 = vsel %vm457, 0, %v530
        %532 = vst [vmem:[#allocation2 + $0x180] sm:$0x10] %v531
        %v533 = vld [vmem:[#allocation2 + $0x190] sm:$0x10]
        %v534 = vsel %vm457, 0, %v533
        %535 = vst [vmem:[#allocation2 + $0x190] sm:$0x10] %v534
        %v536 = vld [vmem:[#allocation2 + $0x1a0] sm:$0x10]
        %v537 = vsel %vm457, 0, %v536
        %538 = vst [vmem:[#allocation2 + $0x1a0] sm:$0x10] %v537
        %v539 = vld [vmem:[#allocation2 + $0x1b0] sm:$0x10]
        %v540 = vsel %vm457, 0, %v539
        %541 = vst [vmem:[#allocation2 + $0x1b0] sm:$0x10] %v540
        %v542 = vld [vmem:[#allocation2 + $0x1c0] sm:$0x10]
        %v543 = vsel %vm457, 0, %v542
        %544 = vst [vmem:[#allocation2 + $0x1c0] sm:$0x10] %v543
        %v545 = vld [vmem:[#allocation2 + $0x1d0] sm:$0x10]
        %v546 = vsel %vm457, 0, %v545
        %547 = vst [vmem:[#allocation2 + $0x1d0] sm:$0x10] %v546
        %v548 = vld [vmem:[#allocation2 + $0x1e0] sm:$0x10]
        %v549 = vsel %vm457, 0, %v548
        %550 = vst [vmem:[#allocation2 + $0x1e0] sm:$0x10] %v549
        %v551 = vld [vmem:[#allocation2 + $0x1f0] sm:$0x10]
        %v552 = vsel %vm457, 0, %v551
        %553 = vst [vmem:[#allocation2 + $0x1f0] sm:$0x10] %v552
        %v554 = vld [vmem:[#allocation2 + $0x200] sm:$0x10]
        %v555 = vsel %vm457, 0, %v554
        %556 = vst [vmem:[#allocation2 + $0x200] sm:$0x10] %v555
        %v557 = vld [vmem:[#allocation2 + $0x210] sm:$0x10]
        %v558 = vsel %vm457, 0, %v557
        %559 = vst [vmem:[#allocation2 + $0x210] sm:$0x10] %v558
        %v560 = vld [vmem:[#allocation2 + $0x220] sm:$0x10]
        %v561 = vsel %vm457, 0, %v560
        %562 = vst [vmem:[#allocation2 + $0x220] sm:$0x10] %v561
        %v563 = vld [vmem:[#allocation2 + $0x230] sm:$0x10]
        %v564 = vsel %vm457, 0, %v563
        %565 = vst [vmem:[#allocation2 + $0x230] sm:$0x10] %v564
        %vm566 = vcmask 44067
        %vm567 = vsmask.f32 7950
        %vm568 = vmand %vm566, %vm567
        %v569 = vld [vmem:[#allocation2 + $0x8] sm:$0x8]
        %v570 = vsel %vm568, 0, %v569
        %571 = vst [vmem:[#allocation2 + $0x8] sm:$0x8] %v570
        %v572 = vld [vmem:[#allocation2 + $0x18] sm:$0x8]
        %v573 = vsel %vm568, 0, %v572
        %574 = vst [vmem:[#allocation2 + $0x18] sm:$0x8] %v573
        %v575 = vld [vmem:[#allocation2 + $0x28] sm:$0x8]
        %v576 = vsel %vm568, 0, %v575
        %577 = vst [vmem:[#allocation2 + $0x28] sm:$0x8] %v576
        %v578 = vld [vmem:[#allocation2 + $0x38] sm:$0x8]
        %v579 = vsel %vm568, 0, %v578
        %580 = vst [vmem:[#allocation2 + $0x38] sm:$0x8] %v579
        %v581 = vld [vmem:[#allocation2 + $0x48] sm:$0x8]
        %v582 = vsel %vm568, 0, %v581
        %583 = vst [vmem:[#allocation2 + $0x48] sm:$0x8] %v582
        %v584 = vld [vmem:[#allocation2 + $0x58] sm:$0x8]
        %v585 = vsel %vm568, 0, %v584
        %586 = vst [vmem:[#allocation2 + $0x58] sm:$0x8] %v585
        %v587 = vld [vmem:[#allocation2 + $0x68] sm:$0x8]
        %v588 = vsel %vm568, 0, %v587
        %589 = vst [vmem:[#allocation2 + $0x68] sm:$0x8] %v588
        %v590 = vld [vmem:[#allocation2 + $0x78] sm:$0x8]
        %v591 = vsel %vm568, 0, %v590
        %592 = vst [vmem:[#allocation2 + $0x78] sm:$0x8] %v591
        %v593 = vld [vmem:[#allocation2 + $0x88] sm:$0x8]
        %v594 = vsel %vm568, 0, %v593
        %595 = vst [vmem:[#allocation2 + $0x88] sm:$0x8] %v594
        %v596 = vld [vmem:[#allocation2 + $0x98] sm:$0x8]
        %v597 = vsel %vm568, 0, %v596
        %598 = vst [vmem:[#allocation2 + $0x98] sm:$0x8] %v597
        %v599 = vld [vmem:[#allocation2 + $0xa8] sm:$0x8]
        %v600 = vsel %vm568, 0, %v599
        %601 = vst [vmem:[#allocation2 + $0xa8] sm:$0x8] %v600
        %v602 = vld [vmem:[#allocation2 + $0xb8] sm:$0x8]
        %v603 = vsel %vm568, 0, %v602
        %604 = vst [vmem:[#allocation2 + $0xb8] sm:$0x8] %v603
        %v605 = vld [vmem:[#allocation2 + $0xc8] sm:$0x8]
        %v606 = vsel %vm568, 0, %v605
        %607 = vst [vmem:[#allocation2 + $0xc8] sm:$0x8] %v606
        %v608 = vld [vmem:[#allocation2 + $0xd8] sm:$0x8]
        %v609 = vsel %vm568, 0, %v608
        %610 = vst [vmem:[#allocation2 + $0xd8] sm:$0x8] %v609
        %v611 = vld [vmem:[#allocation2 + $0xe8] sm:$0x8]
        %v612 = vsel %vm568, 0, %v611
        %613 = vst [vmem:[#allocation2 + $0xe8] sm:$0x8] %v612
        %v614 = vld [vmem:[#allocation2 + $0xf8] sm:$0x8]
        %v615 = vsel %vm568, 0, %v614
        %616 = vst [vmem:[#allocation2 + $0xf8] sm:$0x8] %v615
        %v617 = vld [vmem:[#allocation2 + $0x108] sm:$0x8]
        %v618 = vsel %vm568, 0, %v617
        %619 = vst [vmem:[#allocation2 + $0x108] sm:$0x8] %v618
        %v620 = vld [vmem:[#allocation2 + $0x118] sm:$0x8]
        %v621 = vsel %vm568, 0, %v620
        %622 = vst [vmem:[#allocation2 + $0x118] sm:$0x8] %v621
        %v623 = vld [vmem:[#allocation2 + $0x128] sm:$0x8]
        %v624 = vsel %vm568, 0, %v623
        %625 = vst [vmem:[#allocation2 + $0x128] sm:$0x8] %v624
        %v626 = vld [vmem:[#allocation2 + $0x138] sm:$0x8]
        %v627 = vsel %vm568, 0, %v626
        %628 = vst [vmem:[#allocation2 + $0x138] sm:$0x8] %v627
        %v629 = vld [vmem:[#allocation2 + $0x148] sm:$0x8]
        %v630 = vsel %vm568, 0, %v629
        %631 = vst [vmem:[#allocation2 + $0x148] sm:$0x8] %v630
        %v632 = vld [vmem:[#allocation2 + $0x158] sm:$0x8]
        %v633 = vsel %vm568, 0, %v632
        %634 = vst [vmem:[#allocation2 + $0x158] sm:$0x8] %v633
        %v635 = vld [vmem:[#allocation2 + $0x168] sm:$0x8]
        %v636 = vsel %vm568, 0, %v635
        %637 = vst [vmem:[#allocation2 + $0x168] sm:$0x8] %v636
        %v638 = vld [vmem:[#allocation2 + $0x178] sm:$0x8]
        %v639 = vsel %vm568, 0, %v638
        %640 = vst [vmem:[#allocation2 + $0x178] sm:$0x8] %v639
        %v641 = vld [vmem:[#allocation2 + $0x188] sm:$0x8]
        %v642 = vsel %vm568, 0, %v641
        %643 = vst [vmem:[#allocation2 + $0x188] sm:$0x8] %v642
        %v644 = vld [vmem:[#allocation2 + $0x198] sm:$0x8]
        %v645 = vsel %vm568, 0, %v644
        %646 = vst [vmem:[#allocation2 + $0x198] sm:$0x8] %v645
        %v647 = vld [vmem:[#allocation2 + $0x1a8] sm:$0x8]
        %v648 = vsel %vm568, 0, %v647
        %649 = vst [vmem:[#allocation2 + $0x1a8] sm:$0x8] %v648
        %v650 = vld [vmem:[#allocation2 + $0x1b8] sm:$0x8]
        %v651 = vsel %vm568, 0, %v650
        %652 = vst [vmem:[#allocation2 + $0x1b8] sm:$0x8] %v651
        %v653 = vld [vmem:[#allocation2 + $0x1c8] sm:$0x8]
        %v654 = vsel %vm568, 0, %v653
        %655 = vst [vmem:[#allocation2 + $0x1c8] sm:$0x8] %v654
        %v656 = vld [vmem:[#allocation2 + $0x1d8] sm:$0x8]
        %v657 = vsel %vm568, 0, %v656
        %658 = vst [vmem:[#allocation2 + $0x1d8] sm:$0x8] %v657
        %v659 = vld [vmem:[#allocation2 + $0x1e8] sm:$0x8]
        %v660 = vsel %vm568, 0, %v659
        %661 = vst [vmem:[#allocation2 + $0x1e8] sm:$0x8] %v660
        %v662 = vld [vmem:[#allocation2 + $0x1f8] sm:$0x8]
        %v663 = vsel %vm568, 0, %v662
        %664 = vst [vmem:[#allocation2 + $0x1f8] sm:$0x8] %v663
        %v665 = vld [vmem:[#allocation2 + $0x208] sm:$0x8]
        %v666 = vsel %vm568, 0, %v665
        %667 = vst [vmem:[#allocation2 + $0x208] sm:$0x8] %v666
        %v668 = vld [vmem:[#allocation2 + $0x218] sm:$0x8]
        %v669 = vsel %vm568, 0, %v668
        %670 = vst [vmem:[#allocation2 + $0x218] sm:$0x8] %v669
        %v671 = vld [vmem:[#allocation2 + $0x228] sm:$0x8]
        %v672 = vsel %vm568, 0, %v671
        %673 = vst [vmem:[#allocation2 + $0x228] sm:$0x8] %v672
        %v674 = vld [vmem:[#allocation2 + $0x238] sm:$0x8]
        %v675 = vsel %vm568, 0, %v674
        %676 = vst [vmem:[#allocation2 + $0x238] sm:$0x8] %v675
      $region44: #{tpu_custom_call.1} parent=39 // pred_fallthru
        _
      %v677 = vld [vmem:[%s308] sm:$0xff]
      %v678 = vld [vmem:[%s308 + $0x8] sm:$0xff]
      %v679 = vld [vmem:[%s308 + $0x10] sm:$0xff]
      %v680 = vld [vmem:[%s308 + $0x18] sm:$0xff]
      %v681 = vld [vmem:[%s308 + $0x20] sm:$0xff]
      %v682 = vld [vmem:[%s308 + $0x28] sm:$0xff]
      %v683 = vld [vmem:[%s308 + $0x30] sm:$0xff]
      %v684 = vld [vmem:[%s308 + $0x38] sm:$0xff]
      %v685 = vld [vmem:[%s308 + $0x40] sm:$0xff]
      %v686 = vld [vmem:[%s308 + $0x48] sm:$0xff]
      %v687 = vld [vmem:[%s308 + $0x50] sm:$0xff]
      %v688 = vld [vmem:[%s308 + $0x58] sm:$0xff]
      %v689 = vld [vmem:[%s308 + $0x60] sm:$0xff]
      %v690 = vld [vmem:[%s308 + $0x68] sm:$0xff]
      %v691 = vld [vmem:[%s308 + $0x70] sm:$0xff]
      %v692 = vld [vmem:[%s308 + $0x78] sm:$0xff]
      %v693 = vld [vmem:[%s308 + $0x80] sm:$0xff]
      %v694 = vld [vmem:[%s308 + $0x88] sm:$0xff]
      %v695 = vld [vmem:[%s308 + $0x90] sm:$0xff]
      %v696 = vld [vmem:[%s308 + $0x98] sm:$0xff]
      %v697 = vld [vmem:[%s308 + $0xa0] sm:$0xff]
      %v698 = vld [vmem:[%s308 + $0xa8] sm:$0xff]
      %v699 = vld [vmem:[%s308 + $0xb0] sm:$0xff]
      %v700 = vld [vmem:[%s308 + $0xb8] sm:$0xff]
      %v701 = vld [vmem:[%s308 + $0xc0] sm:$0xff]
      %v702 = vld [vmem:[%s308 + $0xc8] sm:$0xff]
      %v703 = vld [vmem:[%s308 + $0xd0] sm:$0xff]
      %v704 = vld [vmem:[%s308 + $0xd8] sm:$0xff]
      %v705 = vld [vmem:[%s308 + $0xe0] sm:$0xff]
      %v706 = vld [vmem:[%s308 + $0xe8] sm:$0xff]
      %v707 = vld [vmem:[%s308 + $0xf0] sm:$0xff]
      %v708 = vld [vmem:[%s308 + $0xf8] sm:$0xff]
      %v709 = vld [vmem:[%s308 + $0x100] sm:$0xff]
      %v710 = vld [vmem:[%s308 + $0x108] sm:$0xff]
      %v711 = vld [vmem:[%s308 + $0x110] sm:$0xff]
      %v712 = vld [vmem:[%s308 + $0x118] sm:$0xff]
      %v713 = vld [vmem:[%s308 + $0x120] sm:$0xff]
      %v714 = vld [vmem:[%s308 + $0x128] sm:$0xff]
      %v715 = vld [vmem:[%s308 + $0x130] sm:$0xff]
      %v716 = vld [vmem:[%s308 + $0x138] sm:$0xff]
      %v717 = vld [vmem:[%s308 + $0x140] sm:$0xff]
      %v718 = vld [vmem:[%s308 + $0x148] sm:$0xff]
      %v719 = vld [vmem:[%s308 + $0x150] sm:$0xff]
      %v720 = vld [vmem:[%s308 + $0x158] sm:$0xff]
      %v721 = vld [vmem:[%s308 + $0x160] sm:$0xff]
      %v722 = vld [vmem:[%s308 + $0x168] sm:$0xff]
      %v723 = vld [vmem:[%s308 + $0x170] sm:$0xff]
      %v724 = vld [vmem:[%s308 + $0x178] sm:$0xff]
      %v725 = vld [vmem:[%s308 + $0x180] sm:$0xff]
      %v726 = vld [vmem:[%s308 + $0x188] sm:$0xff]
      %v727 = vld [vmem:[%s308 + $0x190] sm:$0xff]
      %v728 = vld [vmem:[%s308 + $0x198] sm:$0xff]
      %v729 = vld [vmem:[%s308 + $0x1a0] sm:$0xff]
      %v730 = vld [vmem:[%s308 + $0x1a8] sm:$0xff]
      %v731 = vld [vmem:[%s308 + $0x1b0] sm:$0xff]
      %v732 = vld [vmem:[%s308 + $0x1b8] sm:$0xff]
      %v733 = vld [vmem:[%s308 + $0x1c0] sm:$0xff]
      %v734 = vld [vmem:[%s308 + $0x1c8] sm:$0xff]
      %v735 = vld [vmem:[%s308 + $0x1d0] sm:$0xff]
      %v736 = vld [vmem:[%s308 + $0x1d8] sm:$0xff]
      %v737 = vld [vmem:[%s308 + $0x1e0] sm:$0xff]
      %v738 = vld [vmem:[%s308 + $0x1e8] sm:$0xff]
      %v739 = vld [vmem:[%s308 + $0x1f0] sm:$0xff]
      %v740 = vld [vmem:[%s308 + $0x1f8] sm:$0xff]
      %v741 = vpack.c.bf16 %v678, %v677
      %v742 = vpack.c.bf16 %v680, %v679
      %v743 = vpack.c.bf16 %v682, %v681
      %v744 = vpack.c.bf16 %v684, %v683
      %v745 = vpack.c.bf16 %v686, %v685
      %v746 = vpack.c.bf16 %v688, %v687
      %v747 = vpack.c.bf16 %v690, %v689
      %v748 = vpack.c.bf16 %v692, %v691
      %v749 = vpack.c.bf16 %v694, %v693
      %v750 = vpack.c.bf16 %v696, %v695
      %v751 = vpack.c.bf16 %v698, %v697
      %v752 = vpack.c.bf16 %v700, %v699
      %v753 = vpack.c.bf16 %v702, %v701
      %v754 = vpack.c.bf16 %v704, %v703
      %v755 = vpack.c.bf16 %v706, %v705
      %v756 = vpack.c.bf16 %v708, %v707
      %v757 = vpack.c.bf16 %v710, %v709
      %v758 = vpack.c.bf16 %v712, %v711
      %v759 = vpack.c.bf16 %v714, %v713
      %v760 = vpack.c.bf16 %v716, %v715
      %v761 = vpack.c.bf16 %v718, %v717
      %v762 = vpack.c.bf16 %v720, %v719
      %v763 = vpack.c.bf16 %v722, %v721
      %v764 = vpack.c.bf16 %v724, %v723
      %v765 = vpack.c.bf16 %v726, %v725
      %v766 = vpack.c.bf16 %v728, %v727
      %v767 = vpack.c.bf16 %v730, %v729
      %v768 = vpack.c.bf16 %v732, %v731
      %v769 = vpack.c.bf16 %v734, %v733
      %v770 = vpack.c.bf16 %v736, %v735
      %v771 = vpack.c.bf16 %v738, %v737
      %v772 = vpack.c.bf16 %v740, %v739
      %v773 = vld [vmem:[%s291] sm:$0x3]
      %v774 = vld [vmem:[%s294] sm:$0x1]
      %v776 = vlaneseq
      %v777 = vshrl.u32 %v776, 7
      %v778 = vsub.s32 0, %v777
      %v779 = vrot.slane %v774, %v778
      %vm781 = vcmask 31744
      %v783 = vsel %vm781, %v741, 0
      %v786 = vsel %vm781, %v742, 0
      %v789 = vsel %vm781, %v743, 0
      %v792 = vsel %vm781, %v744, 0
      %v795 = vsel %vm781, %v745, 0
      %v798 = vsel %vm781, %v746, 0
      %v801 = vsel %vm781, %v747, 0
      %v804 = vsel %vm781, %v748, 0
      %v807 = vsel %vm781, %v749, 0
      %v810 = vsel %vm781, %v750, 0
      %v813 = vsel %vm781, %v751, 0
      %v816 = vsel %vm781, %v752, 0
      %v819 = vsel %vm781, %v753, 0
      %v822 = vsel %vm781, %v754, 0
      %v825 = vsel %vm781, %v755, 0
      %v828 = vsel %vm781, %v756, 0
      %v831 = vsel %vm781, %v757, 0
      %v834 = vsel %vm781, %v758, 0
      %v837 = vsel %vm781, %v759, 0
      %v840 = vsel %vm781, %v760, 0
      %v843 = vsel %vm781, %v761, 0
      %v846 = vsel %vm781, %v762, 0
      %v849 = vsel %vm781, %v763, 0
      %v852 = vsel %vm781, %v764, 0
      %v855 = vsel %vm781, %v765, 0
      %v858 = vsel %vm781, %v766, 0
      %v861 = vsel %vm781, %v767, 0
      %v864 = vsel %vm781, %v768, 0
      %v867 = vsel %vm781, %v769, 0
      %v870 = vsel %vm781, %v770, 0
      %v873 = vsel %vm781, %v771, 0
      %v876 = vsel %vm781, %v772, 0
      %vm878 = vcmask 1041408
      %v880 = vsel %vm878, %v773, 0
      %882 = vmatprep.subr.bf16.mxu0 0
      %883 = vmatpush1.bf16.msra.mxu0 %v880
      %884 = vmatprep.subr.bf16.mxu0 0
      %885 = vmatpush1.bf16.msra.mxu0 0
      %886 = vmatprep.subr.bf16.mxu0 0
      %887 = vmatpush1.bf16.msra.mxu0 0
      %888 = vmatprep.subr.bf16.mxu0 0
      %889 = vmatpush1.bf16.msra.mxu0 0
      %890 = vmatprep.subr.bf16.mxu0 0
      %891 = vmatpush1.bf16.msra.mxu0 0
      %892 = vmatprep.subr.bf16.mxu0 0
      %893 = vmatpush1.bf16.msra.mxu0 0
      %894 = vmatprep.subr.bf16.mxu0 0
      %895 = vmatpush1.bf16.msra.mxu0 0
      %896 = vmatprep.subr.bf16.mxu0 0
      %897 = vmatpush1.bf16.msra.mxu0 0
      %898 = vmatprep.subr.bf16.mxu0 0
      %899 = vmatpush1.bf16.msra.mxu0 0
      %900 = vmatprep.subr.bf16.mxu0 0
      %901 = vmatpush1.bf16.msra.mxu0 0
      %902 = vmatprep.subr.bf16.mxu0 0
      %903 = vmatpush1.bf16.msra.mxu0 0
      %904 = vmatprep.subr.bf16.mxu0 0
      %905 = vmatpush1.bf16.msra.mxu0 0
      %906 = vmatprep.subr.bf16.mxu0 0
      %907 = vmatpush1.bf16.msra.mxu0 0
      %908 = vmatprep.subr.bf16.mxu0 0
      %909 = vmatpush1.bf16.msra.mxu0 0
      %910 = vmatprep.subr.bf16.mxu0 0
      %911 = vmatpush1.bf16.msra.mxu0 0
      %912 = vmatprep.subr.bf16.mxu0 0
      %913 = vmatpush1.bf16.msra.mxu0 0
      %914 = vmatprep.mubr.bf16.mxu0 0
      %915 = vmatmul.mubr.bf16.gmra.mrb[0].mxu0 %v783
      %v916 = vpop.f32.mrb[0].mxu0
      %v917 = vadd.f32 %v779, %v916
      %v918 = vpop.f32.mrb[0].mxu0
      %v919 = vpop.f32.mrb[0].mxu0
      %v920 = vadd.f32 %v779, %v919
      %v921 = vpop.f32.mrb[0].mxu0
      %922 = vmatprep.mubr.bf16.mxu0 0
      %923 = vmatmul.mubr.bf16.gmra.mrb[0].mxu0 %v786
      %v924 = vpop.f32.mrb[0].mxu0
      %v925 = vadd.f32 %v779, %v924
      %v926 = vpop.f32.mrb[0].mxu0
      %v927 = vpop.f32.mrb[0].mxu0
      %v928 = vadd.f32 %v779, %v927
      %v929 = vpop.f32.mrb[0].mxu0
      %930 = vmatprep.mubr.bf16.mxu0 0
      %931 = vmatmul.mubr.bf16.gmra.mrb[0].mxu0 %v789
      %v932 = vpop.f32.mrb[0].mxu0
      %v933 = vadd.f32 %v779, %v932
      %v934 = vpop.f32.mrb[0].mxu0
      %v935 = vpop.f32.mrb[0].mxu0
      %v936 = vadd.f32 %v779, %v935
      %v937 = vpop.f32.mrb[0].mxu0
      %938 = vmatprep.mubr.bf16.mxu0 0
      %939 = vmatmul.mubr.bf16.gmra.mrb[0].mxu0 %v792
      %v940 = vpop.f32.mrb[0].mxu0
      %v941 = vadd.f32 %v779, %v940
      %v942 = vpop.f32.mrb[0].mxu0
      %v943 = vpop.f32.mrb[0].mxu0
      %v944 = vadd.f32 %v779, %v943
      %v945 = vpop.f32.mrb[0].mxu0
      %946 = vmatprep.mubr.bf16.mxu0 0
      %947 = vmatmul.mubr.bf16.gmra.mrb[0].mxu0 %v795
      %v948 = vpop.f32.mrb[0].mxu0
      %v949 = vadd.f32 %v779, %v948
      %v950 = vpop.f32.mrb[0].mxu0
      %v951 = vpop.f32.mrb[0].mxu0
      %v952 = vadd.f32 %v779, %v951
      %v953 = vpop.f32.mrb[0].mxu0
      %954 = vmatprep.mubr.bf16.mxu0 0
      %955 = vmatmul.mubr.bf16.gmra.mrb[0].mxu0 %v798
      %v956 = vpop.f32.mrb[0].mxu0
      %v957 = vadd.f32 %v779, %v956
      %v958 = vpop.f32.mrb[0].mxu0
      %v959 = vpop.f32.mrb[0].mxu0
      %v960 = vadd.f32 %v779, %v959
      %v961 = vpop.f32.mrb[0].mxu0
      %962 = vmatprep.mubr.bf16.mxu0 0
      %963 = vmatmul.mubr.bf16.gmra.mrb[0].mxu0 %v801
      %v964 = vpop.f32.mrb[0].mxu0
      %v965 = vadd.f32 %v779, %v964
      %v966 = vpop.f32.mrb[0].mxu0
      %v967 = vpop.f32.mrb[0].mxu0
      %v968 = vadd.f32 %v779, %v967
      %v969 = vpop.f32.mrb[0].mxu0
      %970 = vmatprep.mubr.bf16.mxu0 0
      %971 = vmatmul.mubr.bf16.gmra.mrb[0].mxu0 %v804
      %v972 = vpop.f32.mrb[0].mxu0
      %v973 = vadd.f32 %v779, %v972
      %v974 = vpop.f32.mrb[0].mxu0
      %v975 = vpop.f32.mrb[0].mxu0
      %v976 = vadd.f32 %v779, %v975
      %v977 = vpop.f32.mrb[0].mxu0
      %978 = vmatprep.mubr.bf16.mxu0 0
      %979 = vmatmul.mubr.bf16.gmra.mrb[0].mxu0 %v807
      %v980 = vpop.f32.mrb[0].mxu0
      %v981 = vadd.f32 %v779, %v980
      %v982 = vpop.f32.mrb[0].mxu0
      %v983 = vpop.f32.mrb[0].mxu0
      %v984 = vadd.f32 %v779, %v983
      %v985 = vpop.f32.mrb[0].mxu0
      %986 = vmatprep.mubr.bf16.mxu0 0
      %987 = vmatmul.mubr.bf16.gmra.mrb[0].mxu0 %v810
      %v988 = vpop.f32.mrb[0].mxu0
      %v989 = vadd.f32 %v779, %v988
      %v990 = vpop.f32.mrb[0].mxu0
      %v991 = vpop.f32.mrb[0].mxu0
      %v992 = vadd.f32 %v779, %v991
      %v993 = vpop.f32.mrb[0].mxu0
      %994 = vmatprep.mubr.bf16.mxu0 0
      %995 = vmatmul.mubr.bf16.gmra.mrb[0].mxu0 %v813
      %v996 = vpop.f32.mrb[0].mxu0
      %v997 = vadd.f32 %v779, %v996
      %v998 = vpop.f32.mrb[0].mxu0
      %v999 = vpop.f32.mrb[0].mxu0
      %v1000 = vadd.f32 %v779, %v999
      %v1001 = vpop.f32.mrb[0].mxu0
      %1002 = vmatprep.mubr.bf16.mxu0 0
      %1003 = vmatmul.mubr.bf16.gmra.mrb[0].mxu0 %v816
      %v1004 = vpop.f32.mrb[0].mxu0
      %v1005 = vadd.f32 %v779, %v1004
      %v1006 = vpop.f32.mrb[0].mxu0
      %v1007 = vpop.f32.mrb[0].mxu0
      %v1008 = vadd.f32 %v779, %v1007
      %v1009 = vpop.f32.mrb[0].mxu0
      %1010 = vmatprep.mubr.bf16.mxu0 0
      %1011 = vmatmul.mubr.bf16.gmra.mrb[0].mxu0 %v819
      %v1012 = vpop.f32.mrb[0].mxu0
      %v1013 = vadd.f32 %v779, %v1012
      %v1014 = vpop.f32.mrb[0].mxu0
      %v1015 = vpop.f32.mrb[0].mxu0
      %v1016 = vadd.f32 %v779, %v1015
      %v1017 = vpop.f32.mrb[0].mxu0
      %1018 = vmatprep.mubr.bf16.mxu0 0
      %1019 = vmatmul.mubr.bf16.gmra.mrb[0].mxu0 %v822
      %v1020 = vpop.f32.mrb[0].mxu0
      %v1021 = vadd.f32 %v779, %v1020
      %v1022 = vpop.f32.mrb[0].mxu0
      %v1023 = vpop.f32.mrb[0].mxu0
      %v1024 = vadd.f32 %v779, %v1023
      %v1025 = vpop.f32.mrb[0].mxu0
      %1026 = vmatprep.mubr.bf16.mxu0 0
      %1027 = vmatmul.mubr.bf16.gmra.mrb[0].mxu0 %v825
      %v1028 = vpop.f32.mrb[0].mxu0
      %v1029 = vadd.f32 %v779, %v1028
      %v1030 = vpop.f32.mrb[0].mxu0
      %v1031 = vpop.f32.mrb[0].mxu0
      %v1032 = vadd.f32 %v779, %v1031
      %v1033 = vpop.f32.mrb[0].mxu0
      %1034 = vmatprep.mubr.bf16.mxu0 0
      %1035 = vmatmul.mubr.bf16.gmra.mrb[0].mxu0 %v828
      %v1036 = vpop.f32.mrb[0].mxu0
      %v1037 = vadd.f32 %v779, %v1036
      %v1038 = vpop.f32.mrb[0].mxu0
      %v1039 = vpop.f32.mrb[0].mxu0
      %v1040 = vadd.f32 %v779, %v1039
      %v1041 = vpop.f32.mrb[0].mxu0
      %1042 = vmatprep.mubr.bf16.mxu0 0
      %1043 = vmatmul.mubr.bf16.gmra.mrb[0].mxu0 %v831
      %v1044 = vpop.f32.mrb[0].mxu0
      %v1045 = vadd.f32 %v779, %v1044
      %v1046 = vpop.f32.mrb[0].mxu0
      %v1047 = vpop.f32.mrb[0].mxu0
      %v1048 = vadd.f32 %v779, %v1047
      %v1049 = vpop.f32.mrb[0].mxu0
      %1050 = vmatprep.mubr.bf16.mxu0 0
      %1051 = vmatmul.mubr.bf16.gmra.mrb[0].mxu0 %v834
      %v1052 = vpop.f32.mrb[0].mxu0
      %v1053 = vadd.f32 %v779, %v1052
      %v1054 = vpop.f32.mrb[0].mxu0
      %v1055 = vpop.f32.mrb[0].mxu0
      %v1056 = vadd.f32 %v779, %v1055
      %v1057 = vpop.f32.mrb[0].mxu0
      %1058 = vmatprep.mubr.bf16.mxu0 0
      %1059 = vmatmul.mubr.bf16.gmra.mrb[0].mxu0 %v837
      %v1060 = vpop.f32.mrb[0].mxu0
      %v1061 = vadd.f32 %v779, %v1060
      %v1062 = vpop.f32.mrb[0].mxu0
      %v1063 = vpop.f32.mrb[0].mxu0
      %v1064 = vadd.f32 %v779, %v1063
      %v1065 = vpop.f32.mrb[0].mxu0
      %1066 = vmatprep.mubr.bf16.mxu0 0
      %1067 = vmatmul.mubr.bf16.gmra.mrb[0].mxu0 %v840
      %v1068 = vpop.f32.mrb[0].mxu0
      %v1069 = vadd.f32 %v779, %v1068
      %v1070 = vpop.f32.mrb[0].mxu0
      %v1071 = vpop.f32.mrb[0].mxu0
      %v1072 = vadd.f32 %v779, %v1071
      %v1073 = vpop.f32.mrb[0].mxu0
      %1074 = vmatprep.mubr.bf16.mxu0 0
      %1075 = vmatmul.mubr.bf16.gmra.mrb[0].mxu0 %v843
      %v1076 = vpop.f32.mrb[0].mxu0
      %v1077 = vadd.f32 %v779, %v1076
      %v1078 = vpop.f32.mrb[0].mxu0
      %v1079 = vpop.f32.mrb[0].mxu0
      %v1080 = vadd.f32 %v779, %v1079
      %v1081 = vpop.f32.mrb[0].mxu0
      %1082 = vmatprep.mubr.bf16.mxu0 0
      %1083 = vmatmul.mubr.bf16.gmra.mrb[0].mxu0 %v846
      %v1084 = vpop.f32.mrb[0].mxu0
      %v1085 = vadd.f32 %v779, %v1084
      %v1086 = vpop.f32.mrb[0].mxu0
      %v1087 = vpop.f32.mrb[0].mxu0
      %v1088 = vadd.f32 %v779, %v1087
      %v1089 = vpop.f32.mrb[0].mxu0
      %1090 = vmatprep.mubr.bf16.mxu0 0
      %1091 = vmatmul.mubr.bf16.gmra.mrb[0].mxu0 %v849
      %v1092 = vpop.f32.mrb[0].mxu0
      %v1093 = vadd.f32 %v779, %v1092
      %v1094 = vpop.f32.mrb[0].mxu0
      %v1095 = vpop.f32.mrb[0].mxu0
      %v1096 = vadd.f32 %v779, %v1095
      %v1097 = vpop.f32.mrb[0].mxu0
      %1098 = vmatprep.mubr.bf16.mxu0 0
      %1099 = vmatmul.mubr.bf16.gmra.mrb[0].mxu0 %v852
      %v1100 = vpop.f32.mrb[0].mxu0
      %v1101 = vadd.f32 %v779, %v1100
      %v1102 = vpop.f32.mrb[0].mxu0
      %v1103 = vpop.f32.mrb[0].mxu0
      %v1104 = vadd.f32 %v779, %v1103
      %v1105 = vpop.f32.mrb[0].mxu0
      %1106 = vmatprep.mubr.bf16.mxu0 0
      %1107 = vmatmul.mubr.bf16.gmra.mrb[0].mxu0 %v855
      %v1108 = vpop.f32.mrb[0].mxu0
      %v1109 = vadd.f32 %v779, %v1108
      %v1110 = vpop.f32.mrb[0].mxu0
      %v1111 = vpop.f32.mrb[0].mxu0
      %v1112 = vadd.f32 %v779, %v1111
      %v1113 = vpop.f32.mrb[0].mxu0
      %1114 = vmatprep.mubr.bf16.mxu0 0
      %1115 = vmatmul.mubr.bf16.gmra.mrb[0].mxu0 %v858
      %v1116 = vpop.f32.mrb[0].mxu0
      %v1117 = vadd.f32 %v779, %v1116
      %v1118 = vpop.f32.mrb[0].mxu0
      %v1119 = vpop.f32.mrb[0].mxu0
      %v1120 = vadd.f32 %v779, %v1119
      %v1121 = vpop.f32.mrb[0].mxu0
      %1122 = vmatprep.mubr.bf16.mxu0 0
      %1123 = vmatmul.mubr.bf16.gmra.mrb[0].mxu0 %v861
      %v1124 = vpop.f32.mrb[0].mxu0
      %v1125 = vadd.f32 %v779, %v1124
      %v1126 = vpop.f32.mrb[0].mxu0
      %v1127 = vpop.f32.mrb[0].mxu0
      %v1128 = vadd.f32 %v779, %v1127
      %v1129 = vpop.f32.mrb[0].mxu0
      %1130 = vmatprep.mubr.bf16.mxu0 0
      %1131 = vmatmul.mubr.bf16.gmra.mrb[0].mxu0 %v864
      %v1132 = vpop.f32.mrb[0].mxu0
      %v1133 = vadd.f32 %v779, %v1132
      %v1134 = vpop.f32.mrb[0].mxu0
      %v1135 = vpop.f32.mrb[0].mxu0
      %v1136 = vadd.f32 %v779, %v1135
      %v1137 = vpop.f32.mrb[0].mxu0
      %1138 = vmatprep.mubr.bf16.mxu0 0
      %1139 = vmatmul.mubr.bf16.gmra.mrb[0].mxu0 %v867
      %v1140 = vpop.f32.mrb[0].mxu0
      %v1141 = vadd.f32 %v779, %v1140
      %v1142 = vpop.f32.mrb[0].mxu0
      %v1143 = vpop.f32.mrb[0].mxu0
      %v1144 = vadd.f32 %v779, %v1143
      %v1145 = vpop.f32.mrb[0].mxu0
      %1146 = vmatprep.mubr.bf16.mxu0 0
      %1147 = vmatmul.mubr.bf16.gmra.mrb[0].mxu0 %v870
      %v1148 = vpop.f32.mrb[0].mxu0
      %v1149 = vadd.f32 %v779, %v1148
      %v1150 = vpop.f32.mrb[0].mxu0
      %v1151 = vpop.f32.mrb[0].mxu0
      %v1152 = vadd.f32 %v779, %v1151
      %v1153 = vpop.f32.mrb[0].mxu0
      %1154 = vmatprep.mubr.bf16.mxu0 0
      %1155 = vmatmul.mubr.bf16.gmra.mrb[0].mxu0 %v873
      %v1156 = vpop.f32.mrb[0].mxu0
      %v1157 = vadd.f32 %v779, %v1156
      %v1158 = vpop.f32.mrb[0].mxu0
      %v1159 = vpop.f32.mrb[0].mxu0
      %v1160 = vadd.f32 %v779, %v1159
      %v1161 = vpop.f32.mrb[0].mxu0
      %1162 = vmatprep.mubr.bf16.mxu0 0
      %1163 = vmatmul.mubr.bf16.gmra.mrb[0].mxu0 %v876
      %v1164 = vpop.f32.mrb[0].mxu0
      %v1165 = vadd.f32 %v779, %v1164
      %v1166 = vpop.f32.mrb[0].mxu0
      %v1167 = vpop.f32.mrb[0].mxu0
      %v1168 = vadd.f32 %v779, %v1167
      %v1169 = vpop.f32.mrb[0].mxu0
      %1170 = vdwg.mxu0
      %v1171 = vmul.f32 %v917, 0.1
      %v1172 = vmul.f32 %v920, 0.1
      %v1173 = vmul.f32 %v925, 0.1
      %v1174 = vmul.f32 %v928, 0.1
      %v1175 = vmul.f32 %v933, 0.1
      %v1176 = vmul.f32 %v936, 0.1
      %v1177 = vmul.f32 %v941, 0.1
      %v1178 = vmul.f32 %v944, 0.1
      %v1179 = vmul.f32 %v949, 0.1
      %v1180 = vmul.f32 %v952, 0.1
      %v1181 = vmul.f32 %v957, 0.1
      %v1182 = vmul.f32 %v960, 0.1
      %v1183 = vmul.f32 %v965, 0.1
      %v1184 = vmul.f32 %v968, 0.1
      %v1185 = vmul.f32 %v973, 0.1
      %v1186 = vmul.f32 %v976, 0.1
      %v1187 = vmul.f32 %v981, 0.1
      %v1188 = vmul.f32 %v984, 0.1
      %v1189 = vmul.f32 %v989, 0.1
      %v1190 = vmul.f32 %v992, 0.1
      %v1191 = vmul.f32 %v997, 0.1
      %v1192 = vmul.f32 %v1000, 0.1
      %v1193 = vmul.f32 %v1005, 0.1
      %v1194 = vmul.f32 %v1008, 0.1
      %v1195 = vmul.f32 %v1013, 0.1
      %v1196 = vmul.f32 %v1016, 0.1
      %v1197 = vmul.f32 %v1021, 0.1
      %v1198 = vmul.f32 %v1024, 0.1
      %v1199 = vmul.f32 %v1029, 0.1
      %v1200 = vmul.f32 %v1032, 0.1
      %v1201 = vmul.f32 %v1037, 0.1
      %v1202 = vmul.f32 %v1040, 0.1
      %v1203 = vmul.f32 %v1045, 0.1
      %v1204 = vmul.f32 %v1048, 0.1
      %v1205 = vmul.f32 %v1053, 0.1
      %v1206 = vmul.f32 %v1056, 0.1
      %v1207 = vmul.f32 %v1061, 0.1
      %v1208 = vmul.f32 %v1064, 0.1
      %v1209 = vmul.f32 %v1069, 0.1
      %v1210 = vmul.f32 %v1072, 0.1
      %v1211 = vmul.f32 %v1077, 0.1
      %v1212 = vmul.f32 %v1080, 0.1
      %v1213 = vmul.f32 %v1085, 0.1
      %v1214 = vmul.f32 %v1088, 0.1
      %v1215 = vmul.f32 %v1093, 0.1
      %v1216 = vmul.f32 %v1096, 0.1
      %v1217 = vmul.f32 %v1101, 0.1
      %v1218 = vmul.f32 %v1104, 0.1
      %v1219 = vmul.f32 %v1109, 0.1
      %v1220 = vmul.f32 %v1112, 0.1
      %v1221 = vmul.f32 %v1117, 0.1
      %v1222 = vmul.f32 %v1120, 0.1
      %v1223 = vmul.f32 %v1125, 0.1
      %v1224 = vmul.f32 %v1128, 0.1
      %v1225 = vmul.f32 %v1133, 0.1
      %v1226 = vmul.f32 %v1136, 0.1
      %v1227 = vmul.f32 %v1141, 0.1
      %v1228 = vmul.f32 %v1144, 0.1
      %v1229 = vmul.f32 %v1149, 0.1
      %v1230 = vmul.f32 %v1152, 0.1
      %v1231 = vmul.f32 %v1157, 0.1
      %v1232 = vmul.f32 %v1160, 0.1
      %v1233 = vmul.f32 %v1165, 0.1
      %v1234 = vmul.f32 %v1168, 0.1
      %v1235 = vmax.f32 %v917, %v1171
      %v1236 = vmax.f32 %v920, %v1172
      %v1237 = vmax.f32 %v925, %v1173
      %v1238 = vmax.f32 %v928, %v1174
      %v1239 = vmax.f32 %v933, %v1175
      %v1240 = vmax.f32 %v936, %v1176
      %v1241 = vmax.f32 %v941, %v1177
      %v1242 = vmax.f32 %v944, %v1178
      %v1243 = vmax.f32 %v949, %v1179
      %v1244 = vmax.f32 %v952, %v1180
      %v1245 = vmax.f32 %v957, %v1181
      %v1246 = vmax.f32 %v960, %v1182
      %v1247 = vmax.f32 %v965, %v1183
      %v1248 = vmax.f32 %v968, %v1184
      %v1249 = vmax.f32 %v973, %v1185
      %v1250 = vmax.f32 %v976, %v1186
      %v1251 = vmax.f32 %v981, %v1187
      %v1252 = vmax.f32 %v984, %v1188
      %v1253 = vmax.f32 %v989, %v1189
      %v1254 = vmax.f32 %v992, %v1190
      %v1255 = vmax.f32 %v997, %v1191
      %v1256 = vmax.f32 %v1000, %v1192
      %v1257 = vmax.f32 %v1005, %v1193
      %v1258 = vmax.f32 %v1008, %v1194
      %v1259 = vmax.f32 %v1013, %v1195
      %v1260 = vmax.f32 %v1016, %v1196
      %v1261 = vmax.f32 %v1021, %v1197
      %v1262 = vmax.f32 %v1024, %v1198
      %v1263 = vmax.f32 %v1029, %v1199
      %v1264 = vmax.f32 %v1032, %v1200
      %v1265 = vmax.f32 %v1037, %v1201
      %v1266 = vmax.f32 %v1040, %v1202
      %v1267 = vmax.f32 %v1045, %v1203
      %v1268 = vmax.f32 %v1048, %v1204
      %v1269 = vmax.f32 %v1053, %v1205
      %v1270 = vmax.f32 %v1056, %v1206
      %v1271 = vmax.f32 %v1061, %v1207
      %v1272 = vmax.f32 %v1064, %v1208
      %v1273 = vmax.f32 %v1069, %v1209
      %v1274 = vmax.f32 %v1072, %v1210
      %v1275 = vmax.f32 %v1077, %v1211
      %v1276 = vmax.f32 %v1080, %v1212
      %v1277 = vmax.f32 %v1085, %v1213
      %v1278 = vmax.f32 %v1088, %v1214
      %v1279 = vmax.f32 %v1093, %v1215
      %v1280 = vmax.f32 %v1096, %v1216
      %v1281 = vmax.f32 %v1101, %v1217
      %v1282 = vmax.f32 %v1104, %v1218
      %v1283 = vmax.f32 %v1109, %v1219
      %v1284 = vmax.f32 %v1112, %v1220
      %v1285 = vmax.f32 %v1117, %v1221
      %v1286 = vmax.f32 %v1120, %v1222
      %v1287 = vmax.f32 %v1125, %v1223
      %v1288 = vmax.f32 %v1128, %v1224
      %v1289 = vmax.f32 %v1133, %v1225
      %v1290 = vmax.f32 %v1136, %v1226
      %v1291 = vmax.f32 %v1141, %v1227
      %v1292 = vmax.f32 %v1144, %v1228
      %v1293 = vmax.f32 %v1149, %v1229
      %v1294 = vmax.f32 %v1152, %v1230
      %v1295 = vmax.f32 %v1157, %v1231
      %v1296 = vmax.f32 %v1160, %v1232
      %v1297 = vmax.f32 %v1165, %v1233
      %v1298 = vmax.f32 %v1168, %v1234
      %v1299 = vpack.c.bf16 %v1236, %v1235
      %v1300 = vpack.c.bf16 %v1238, %v1237
      %v1301 = vpack.c.bf16 %v1240, %v1239
      %v1302 = vpack.c.bf16 %v1242, %v1241
      %v1303 = vpack.c.bf16 %v1244, %v1243
      %v1304 = vpack.c.bf16 %v1246, %v1245
      %v1305 = vpack.c.bf16 %v1248, %v1247
      %v1306 = vpack.c.bf16 %v1250, %v1249
      %v1307 = vpack.c.bf16 %v1252, %v1251
      %v1308 = vpack.c.bf16 %v1254, %v1253
      %v1309 = vpack.c.bf16 %v1256, %v1255
      %v1310 = vpack.c.bf16 %v1258, %v1257
      %v1311 = vpack.c.bf16 %v1260, %v1259
      %v1312 = vpack.c.bf16 %v1262, %v1261
      %v1313 = vpack.c.bf16 %v1264, %v1263
      %v1314 = vpack.c.bf16 %v1266, %v1265
      %v1315 = vpack.c.bf16 %v1268, %v1267
      %v1316 = vpack.c.bf16 %v1270, %v1269
      %v1317 = vpack.c.bf16 %v1272, %v1271
      %v1318 = vpack.c.bf16 %v1274, %v1273
      %v1319 = vpack.c.bf16 %v1276, %v1275
      %v1320 = vpack.c.bf16 %v1278, %v1277
      %v1321 = vpack.c.bf16 %v1280, %v1279
      %v1322 = vpack.c.bf16 %v1282, %v1281
      %v1323 = vpack.c.bf16 %v1284, %v1283
      %v1324 = vpack.c.bf16 %v1286, %v1285
      %v1325 = vpack.c.bf16 %v1288, %v1287
      %v1326 = vpack.c.bf16 %v1290, %v1289
      %v1327 = vpack.c.bf16 %v1292, %v1291
      %v1328 = vpack.c.bf16 %v1294, %v1293
      %v1329 = vpack.c.bf16 %v1296, %v1295
      %v1330 = vpack.c.bf16 %v1298, %v1297
      %v1332 = vshrl.u32 %v1299, 16
      %v1334 = vrot.slane %v1332, 3
      %v1335 = vshll.u32 %v1299, 16
      %v1337 = vrot.slane %v1335, 4
      %v1338 = vor.u32 %v1334, %v1337
      %v1340 = vshrl.u32 %v1300, 16
      %v1342 = vrot.slane %v1340, 3
      %v1343 = vshll.u32 %v1300, 16
      %v1345 = vrot.slane %v1343, 4
      %v1346 = vor.u32 %v1342, %v1345
      %v1348 = vshrl.u32 %v1301, 16
      %v1350 = vrot.slane %v1348, 3
      %v1351 = vshll.u32 %v1301, 16
      %v1353 = vrot.slane %v1351, 4
      %v1354 = vor.u32 %v1350, %v1353
      %v1356 = vshrl.u32 %v1302, 16
      %v1358 = vrot.slane %v1356, 3
      %v1359 = vshll.u32 %v1302, 16
      %v1361 = vrot.slane %v1359, 4
      %v1362 = vor.u32 %v1358, %v1361
      %v1364 = vshrl.u32 %v1303, 16
      %v1366 = vrot.slane %v1364, 3
      %v1367 = vshll.u32 %v1303, 16
      %v1369 = vrot.slane %v1367, 4
      %v1370 = vor.u32 %v1366, %v1369
      %v1372 = vshrl.u32 %v1304, 16
      %v1374 = vrot.slane %v1372, 3
      %v1375 = vshll.u32 %v1304, 16
      %v1377 = vrot.slane %v1375, 4
      %v1378 = vor.u32 %v1374, %v1377
      %v1380 = vshrl.u32 %v1305, 16
      %v1382 = vrot.slane %v1380, 3
      %v1383 = vshll.u32 %v1305, 16
      %v1385 = vrot.slane %v1383, 4
      %v1386 = vor.u32 %v1382, %v1385
      %v1388 = vshrl.u32 %v1306, 16
      %v1390 = vrot.slane %v1388, 3
      %v1391 = vshll.u32 %v1306, 16
      %v1393 = vrot.slane %v1391, 4
      %v1394 = vor.u32 %v1390, %v1393
      %v1396 = vshrl.u32 %v1307, 16
      %v1398 = vrot.slane %v1396, 3
      %v1399 = vshll.u32 %v1307, 16
      %v1401 = vrot.slane %v1399, 4
      %v1402 = vor.u32 %v1398, %v1401
      %v1404 = vshrl.u32 %v1308, 16
      %v1406 = vrot.slane %v1404, 3
      %v1407 = vshll.u32 %v1308, 16
      %v1409 = vrot.slane %v1407, 4
      %v1410 = vor.u32 %v1406, %v1409
      %v1412 = vshrl.u32 %v1309, 16
      %v1414 = vrot.slane %v1412, 3
      %v1415 = vshll.u32 %v1309, 16
      %v1417 = vrot.slane %v1415, 4
      %v1418 = vor.u32 %v1414, %v1417
      %v1420 = vshrl.u32 %v1310, 16
      %v1422 = vrot.slane %v1420, 3
      %v1423 = vshll.u32 %v1310, 16
      %v1425 = vrot.slane %v1423, 4
      %v1426 = vor.u32 %v1422, %v1425
      %v1428 = vshrl.u32 %v1311, 16
      %v1430 = vrot.slane %v1428, 3
      %v1431 = vshll.u32 %v1311, 16
      %v1433 = vrot.slane %v1431, 4
      %v1434 = vor.u32 %v1430, %v1433
      %v1436 = vshrl.u32 %v1312, 16
      %v1438 = vrot.slane %v1436, 3
      %v1439 = vshll.u32 %v1312, 16
      %v1441 = vrot.slane %v1439, 4
      %v1442 = vor.u32 %v1438, %v1441
      %v1444 = vshrl.u32 %v1313, 16
      %v1446 = vrot.slane %v1444, 3
      %v1447 = vshll.u32 %v1313, 16
      %v1449 = vrot.slane %v1447, 4
      %v1450 = vor.u32 %v1446, %v1449
      %v1452 = vshrl.u32 %v1314, 16
      %v1454 = vrot.slane %v1452, 3
      %v1455 = vshll.u32 %v1314, 16
      %v1457 = vrot.slane %v1455, 4
      %v1458 = vor.u32 %v1454, %v1457
      %v1460 = vshrl.u32 %v1315, 16
      %v1462 = vrot.slane %v1460, 3
      %v1463 = vshll.u32 %v1315, 16
      %v1465 = vrot.slane %v1463, 4
      %v1466 = vor.u32 %v1462, %v1465
      %v1468 = vshrl.u32 %v1316, 16
      %v1470 = vrot.slane %v1468, 3
      %v1471 = vshll.u32 %v1316, 16
      %v1473 = vrot.slane %v1471, 4
      %v1474 = vor.u32 %v1470, %v1473
      %v1476 = vshrl.u32 %v1317, 16
      %v1478 = vrot.slane %v1476, 3
      %v1479 = vshll.u32 %v1317, 16
      %v1481 = vrot.slane %v1479, 4
      %v1482 = vor.u32 %v1478, %v1481
      %v1484 = vshrl.u32 %v1318, 16
      %v1486 = vrot.slane %v1484, 3
      %v1487 = vshll.u32 %v1318, 16
      %v1489 = vrot.slane %v1487, 4
      %v1490 = vor.u32 %v1486, %v1489
      %v1492 = vshrl.u32 %v1319, 16
      %v1494 = vrot.slane %v1492, 3
      %v1495 = vshll.u32 %v1319, 16
      %v1497 = vrot.slane %v1495, 4
      %v1498 = vor.u32 %v1494, %v1497
      %v1500 = vshrl.u32 %v1320, 16
      %v1502 = vrot.slane %v1500, 3
      %v1503 = vshll.u32 %v1320, 16
      %v1505 = vrot.slane %v1503, 4
      %v1506 = vor.u32 %v1502, %v1505
      %v1508 = vshrl.u32 %v1321, 16
      %v1510 = vrot.slane %v1508, 3
      %v1511 = vshll.u32 %v1321, 16
      %v1513 = vrot.slane %v1511, 4
      %v1514 = vor.u32 %v1510, %v1513
      %v1516 = vshrl.u32 %v1322, 16
      %v1518 = vrot.slane %v1516, 3
      %v1519 = vshll.u32 %v1322, 16
      %v1521 = vrot.slane %v1519, 4
      %v1522 = vor.u32 %v1518, %v1521
      %v1524 = vshrl.u32 %v1323, 16
      %v1526 = vrot.slane %v1524, 3
      %v1527 = vshll.u32 %v1323, 16
      %v1529 = vrot.slane %v1527, 4
      %v1530 = vor.u32 %v1526, %v1529
      %v1532 = vshrl.u32 %v1324, 16
      %v1534 = vrot.slane %v1532, 3
      %v1535 = vshll.u32 %v1324, 16
      %v1537 = vrot.slane %v1535, 4
      %v1538 = vor.u32 %v1534, %v1537
      %v1540 = vshrl.u32 %v1325, 16
      %v1542 = vrot.slane %v1540, 3
      %v1543 = vshll.u32 %v1325, 16
      %v1545 = vrot.slane %v1543, 4
      %v1546 = vor.u32 %v1542, %v1545
      %v1548 = vshrl.u32 %v1326, 16
      %v1550 = vrot.slane %v1548, 3
      %v1551 = vshll.u32 %v1326, 16
      %v1553 = vrot.slane %v1551, 4
      %v1554 = vor.u32 %v1550, %v1553
      %v1556 = vshrl.u32 %v1327, 16
      %v1558 = vrot.slane %v1556, 3
      %v1559 = vshll.u32 %v1327, 16
      %v1561 = vrot.slane %v1559, 4
      %v1562 = vor.u32 %v1558, %v1561
      %v1564 = vshrl.u32 %v1328, 16
      %v1566 = vrot.slane %v1564, 3
      %v1567 = vshll.u32 %v1328, 16
      %v1569 = vrot.slane %v1567, 4
      %v1570 = vor.u32 %v1566, %v1569
      %v1572 = vshrl.u32 %v1329, 16
      %v1574 = vrot.slane %v1572, 3
      %v1575 = vshll.u32 %v1329, 16
      %v1577 = vrot.slane %v1575, 4
      %v1578 = vor.u32 %v1574, %v1577
      %v1580 = vshrl.u32 %v1330, 16
      %v1582 = vrot.slane %v1580, 3
      %v1583 = vshll.u32 %v1330, 16
      %v1585 = vrot.slane %v1583, 4
      %v1586 = vor.u32 %v1582, %v1585
      %s1619 = scalar_lea.vmem [#allocation2], 16
      %vm1620 = vcmask 15364
      %vm1621 = vsmask.f32 7954
      %vm1622 = vmand %vm1620, %vm1621
      %v1623 = vld [vmem:[%s1619] sm:$0xf0]
      %v1624 = vsel %vm1622, %v1338, %v1623
      %1625 = vst [vmem:[%s1619] sm:$0xf0] %v1624
      %vm1626 = vcmask 12288
      %vm1627 = vsmask.f32 4352
      %vm1628 = vmand %vm1626, %vm1627
      %v1629 = vld [vmem:[%s1619 + $0x8] sm:$0x1f]
      %v1630 = vsel %vm1628, %v1338, %v1629
      %1631 = vst [vmem:[%s1619 + $0x8] sm:$0x1f] %v1630
      %v1632 = vld [vmem:[%s1619 + $0x10] sm:$0xf0]
      %v1633 = vsel %vm1622, %v1346, %v1632
      %1634 = vst [vmem:[%s1619 + $0x10] sm:$0xf0] %v1633
      %v1635 = vld [vmem:[%s1619 + $0x18] sm:$0x1f]
      %v1636 = vsel %vm1628, %v1346, %v1635
      %1637 = vst [vmem:[%s1619 + $0x18] sm:$0x1f] %v1636
      %v1638 = vld [vmem:[%s1619 + $0x20] sm:$0xf0]
      %v1639 = vsel %vm1622, %v1354, %v1638
      %1640 = vst [vmem:[%s1619 + $0x20] sm:$0xf0] %v1639
      %v1641 = vld [vmem:[%s1619 + $0x28] sm:$0x1f]
      %v1642 = vsel %vm1628, %v1354, %v1641
      %1643 = vst [vmem:[%s1619 + $0x28] sm:$0x1f] %v1642
      %v1644 = vld [vmem:[%s1619 + $0x30] sm:$0xf0]
      %v1645 = vsel %vm1622, %v1362, %v1644
      %1646 = vst [vmem:[%s1619 + $0x30] sm:$0xf0] %v1645
      %v1647 = vld [vmem:[%s1619 + $0x38] sm:$0x1f]
      %v1648 = vsel %vm1628, %v1362, %v1647
      %1649 = vst [vmem:[%s1619 + $0x38] sm:$0x1f] %v1648
      %v1650 = vld [vmem:[%s1619 + $0x40] sm:$0xf0]
      %v1651 = vsel %vm1622, %v1370, %v1650
      %1652 = vst [vmem:[%s1619 + $0x40] sm:$0xf0] %v1651
      %v1653 = vld [vmem:[%s1619 + $0x48] sm:$0x1f]
      %v1654 = vsel %vm1628, %v1370, %v1653
      %1655 = vst [vmem:[%s1619 + $0x48] sm:$0x1f] %v1654
      %v1656 = vld [vmem:[%s1619 + $0x50] sm:$0xf0]
      %v1657 = vsel %vm1622, %v1378, %v1656
      %1658 = vst [vmem:[%s1619 + $0x50] sm:$0xf0] %v1657
      %v1659 = vld [vmem:[%s1619 + $0x58] sm:$0x1f]
      %v1660 = vsel %vm1628, %v1378, %v1659
      %1661 = vst [vmem:[%s1619 + $0x58] sm:$0x1f] %v1660
      %v1662 = vld [vmem:[%s1619 + $0x60] sm:$0xf0]
      %v1663 = vsel %vm1622, %v1386, %v1662
      %1664 = vst [vmem:[%s1619 + $0x60] sm:$0xf0] %v1663
      %v1665 = vld [vmem:[%s1619 + $0x68] sm:$0x1f]
      %v1666 = vsel %vm1628, %v1386, %v1665
      %1667 = vst [vmem:[%s1619 + $0x68] sm:$0x1f] %v1666
      %v1668 = vld [vmem:[%s1619 + $0x70] sm:$0xf0]
      %v1669 = vsel %vm1622, %v1394, %v1668
      %1670 = vst [vmem:[%s1619 + $0x70] sm:$0xf0] %v1669
      %v1671 = vld [vmem:[%s1619 + $0x78] sm:$0x1f]
      %v1672 = vsel %vm1628, %v1394, %v1671
      %1673 = vst [vmem:[%s1619 + $0x78] sm:$0x1f] %v1672
      %v1674 = vld [vmem:[%s1619 + $0x80] sm:$0xf0]
      %v1675 = vsel %vm1622, %v1402, %v1674
      %1676 = vst [vmem:[%s1619 + $0x80] sm:$0xf0] %v1675
      %v1677 = vld [vmem:[%s1619 + $0x88] sm:$0x1f]
      %v1678 = vsel %vm1628, %v1402, %v1677
      %1679 = vst [vmem:[%s1619 + $0x88] sm:$0x1f] %v1678
      %v1680 = vld [vmem:[%s1619 + $0x90] sm:$0xf0]
      %v1681 = vsel %vm1622, %v1410, %v1680
      %1682 = vst [vmem:[%s1619 + $0x90] sm:$0xf0] %v1681
      %v1683 = vld [vmem:[%s1619 + $0x98] sm:$0x1f]
      %v1684 = vsel %vm1628, %v1410, %v1683
      %1685 = vst [vmem:[%s1619 + $0x98] sm:$0x1f] %v1684
      %v1686 = vld [vmem:[%s1619 + $0xa0] sm:$0xf0]
      %v1687 = vsel %vm1622, %v1418, %v1686
      %1688 = vst [vmem:[%s1619 + $0xa0] sm:$0xf0] %v1687
      %v1689 = vld [vmem:[%s1619 + $0xa8] sm:$0x1f]
      %v1690 = vsel %vm1628, %v1418, %v1689
      %1691 = vst [vmem:[%s1619 + $0xa8] sm:$0x1f] %v1690
      %v1692 = vld [vmem:[%s1619 + $0xb0] sm:$0xf0]
      %v1693 = vsel %vm1622, %v1426, %v1692
      %1694 = vst [vmem:[%s1619 + $0xb0] sm:$0xf0] %v1693
      %v1695 = vld [vmem:[%s1619 + $0xb8] sm:$0x1f]
      %v1696 = vsel %vm1628, %v1426, %v1695
      %1697 = vst [vmem:[%s1619 + $0xb8] sm:$0x1f] %v1696
      %v1698 = vld [vmem:[%s1619 + $0xc0] sm:$0xf0]
      %v1699 = vsel %vm1622, %v1434, %v1698
      %1700 = vst [vmem:[%s1619 + $0xc0] sm:$0xf0] %v1699
      %v1701 = vld [vmem:[%s1619 + $0xc8] sm:$0x1f]
      %v1702 = vsel %vm1628, %v1434, %v1701
      %1703 = vst [vmem:[%s1619 + $0xc8] sm:$0x1f] %v1702
      %v1704 = vld [vmem:[%s1619 + $0xd0] sm:$0xf0]
      %v1705 = vsel %vm1622, %v1442, %v1704
      %1706 = vst [vmem:[%s1619 + $0xd0] sm:$0xf0] %v1705
      %v1707 = vld [vmem:[%s1619 + $0xd8] sm:$0x1f]
      %v1708 = vsel %vm1628, %v1442, %v1707
      %1709 = vst [vmem:[%s1619 + $0xd8] sm:$0x1f] %v1708
      %v1710 = vld [vmem:[%s1619 + $0xe0] sm:$0xf0]
      %v1711 = vsel %vm1622, %v1450, %v1710
      %1712 = vst [vmem:[%s1619 + $0xe0] sm:$0xf0] %v1711
      %v1713 = vld [vmem:[%s1619 + $0xe8] sm:$0x1f]
      %v1714 = vsel %vm1628, %v1450, %v1713
      %1715 = vst [vmem:[%s1619 + $0xe8] sm:$0x1f] %v1714
      %v1716 = vld [vmem:[%s1619 + $0xf0] sm:$0xf0]
      %v1717 = vsel %vm1622, %v1458, %v1716
      %1718 = vst [vmem:[%s1619 + $0xf0] sm:$0xf0] %v1717
      %v1719 = vld [vmem:[%s1619 + $0xf8] sm:$0x1f]
      %v1720 = vsel %vm1628, %v1458, %v1719
      %1721 = vst [vmem:[%s1619 + $0xf8] sm:$0x1f] %v1720
      %v1722 = vld [vmem:[%s1619 + $0x120] sm:$0xf0]
      %v1723 = vsel %vm1622, %v1466, %v1722
      %1724 = vst [vmem:[%s1619 + $0x120] sm:$0xf0] %v1723
      %v1725 = vld [vmem:[%s1619 + $0x128] sm:$0x1f]
      %v1726 = vsel %vm1628, %v1466, %v1725
      %1727 = vst [vmem:[%s1619 + $0x128] sm:$0x1f] %v1726
      %v1728 = vld [vmem:[%s1619 + $0x130] sm:$0xf0]
      %v1729 = vsel %vm1622, %v1474, %v1728
      %1730 = vst [vmem:[%s1619 + $0x130] sm:$0xf0] %v1729
      %v1731 = vld [vmem:[%s1619 + $0x138] sm:$0x1f]
      %v1732 = vsel %vm1628, %v1474, %v1731
      %1733 = vst [vmem:[%s1619 + $0x138] sm:$0x1f] %v1732
      %v1734 = vld [vmem:[%s1619 + $0x140] sm:$0xf0]
      %v1735 = vsel %vm1622, %v1482, %v1734
      %1736 = vst [vmem:[%s1619 + $0x140] sm:$0xf0] %v1735
      %v1737 = vld [vmem:[%s1619 + $0x148] sm:$0x1f]
      %v1738 = vsel %vm1628, %v1482, %v1737
      %1739 = vst [vmem:[%s1619 + $0x148] sm:$0x1f] %v1738
      %v1740 = vld [vmem:[%s1619 + $0x150] sm:$0xf0]
      %v1741 = vsel %vm1622, %v1490, %v1740
      %1742 = vst [vmem:[%s1619 + $0x150] sm:$0xf0] %v1741
      %v1743 = vld [vmem:[%s1619 + $0x158] sm:$0x1f]
      %v1744 = vsel %vm1628, %v1490, %v1743
      %1745 = vst [vmem:[%s1619 + $0x158] sm:$0x1f] %v1744
      %v1746 = vld [vmem:[%s1619 + $0x160] sm:$0xf0]
      %v1747 = vsel %vm1622, %v1498, %v1746
      %1748 = vst [vmem:[%s1619 + $0x160] sm:$0xf0] %v1747
      %v1749 = vld [vmem:[%s1619 + $0x168] sm:$0x1f]
      %v1750 = vsel %vm1628, %v1498, %v1749
      %1751 = vst [vmem:[%s1619 + $0x168] sm:$0x1f] %v1750
      %v1752 = vld [vmem:[%s1619 + $0x170] sm:$0xf0]
      %v1753 = vsel %vm1622, %v1506, %v1752
      %1754 = vst [vmem:[%s1619 + $0x170] sm:$0xf0] %v1753
      %v1755 = vld [vmem:[%s1619 + $0x178] sm:$0x1f]
      %v1756 = vsel %vm1628, %v1506, %v1755
      %1757 = vst [vmem:[%s1619 + $0x178] sm:$0x1f] %v1756
      %v1758 = vld [vmem:[%s1619 + $0x180] sm:$0xf0]
      %v1759 = vsel %vm1622, %v1514, %v1758
      %1760 = vst [vmem:[%s1619 + $0x180] sm:$0xf0] %v1759
      %v1761 = vld [vmem:[%s1619 + $0x188] sm:$0x1f]
      %v1762 = vsel %vm1628, %v1514, %v1761
      %1763 = vst [vmem:[%s1619 + $0x188] sm:$0x1f] %v1762
      %v1764 = vld [vmem:[%s1619 + $0x190] sm:$0xf0]
      %v1765 = vsel %vm1622, %v1522, %v1764
      %1766 = vst [vmem:[%s1619 + $0x190] sm:$0xf0] %v1765
      %v1767 = vld [vmem:[%s1619 + $0x198] sm:$0x1f]
      %v1768 = vsel %vm1628, %v1522, %v1767
      %1769 = vst [vmem:[%s1619 + $0x198] sm:$0x1f] %v1768
      %v1770 = vld [vmem:[%s1619 + $0x1a0] sm:$0xf0]
      %v1771 = vsel %vm1622, %v1530, %v1770
      %1772 = vst [vmem:[%s1619 + $0x1a0] sm:$0xf0] %v1771
      %v1773 = vld [vmem:[%s1619 + $0x1a8] sm:$0x1f]
      %v1774 = vsel %vm1628, %v1530, %v1773
      %1775 = vst [vmem:[%s1619 + $0x1a8] sm:$0x1f] %v1774
      %v1776 = vld [vmem:[%s1619 + $0x1b0] sm:$0xf0]
      %v1777 = vsel %vm1622, %v1538, %v1776
      %1778 = vst [vmem:[%s1619 + $0x1b0] sm:$0xf0] %v1777
      %v1779 = vld [vmem:[%s1619 + $0x1b8] sm:$0x1f]
      %v1780 = vsel %vm1628, %v1538, %v1779
      %1781 = vst [vmem:[%s1619 + $0x1b8] sm:$0x1f] %v1780
      %v1782 = vld [vmem:[%s1619 + $0x1c0] sm:$0xf0]
      %v1783 = vsel %vm1622, %v1546, %v1782
      %1784 = vst [vmem:[%s1619 + $0x1c0] sm:$0xf0] %v1783
      %v1785 = vld [vmem:[%s1619 + $0x1c8] sm:$0x1f]
      %v1786 = vsel %vm1628, %v1546, %v1785
      %1787 = vst [vmem:[%s1619 + $0x1c8] sm:$0x1f] %v1786
      %v1788 = vld [vmem:[%s1619 + $0x1d0] sm:$0xf0]
      %v1789 = vsel %vm1622, %v1554, %v1788
      %1790 = vst [vmem:[%s1619 + $0x1d0] sm:$0xf0] %v1789
      %v1791 = vld [vmem:[%s1619 + $0x1d8] sm:$0x1f]
      %v1792 = vsel %vm1628, %v1554, %v1791
      %1793 = vst [vmem:[%s1619 + $0x1d8] sm:$0x1f] %v1792
      %v1794 = vld [vmem:[%s1619 + $0x1e0] sm:$0xf0]
      %v1795 = vsel %vm1622, %v1562, %v1794
      %1796 = vst [vmem:[%s1619 + $0x1e0] sm:$0xf0] %v1795
      %v1797 = vld [vmem:[%s1619 + $0x1e8] sm:$0x1f]
      %v1798 = vsel %vm1628, %v1562, %v1797
      %1799 = vst [vmem:[%s1619 + $0x1e8] sm:$0x1f] %v1798
      %v1800 = vld [vmem:[%s1619 + $0x1f0] sm:$0xf0]
      %v1801 = vsel %vm1622, %v1570, %v1800
      %1802 = vst [vmem:[%s1619 + $0x1f0] sm:$0xf0] %v1801
      %v1803 = vld [vmem:[%s1619 + $0x1f8] sm:$0x1f]
      %v1804 = vsel %vm1628, %v1570, %v1803
      %1805 = vst [vmem:[%s1619 + $0x1f8] sm:$0x1f] %v1804
      %v1806 = vld [vmem:[%s1619 + $0x200] sm:$0xf0]
      %v1807 = vsel %vm1622, %v1578, %v1806
      %1808 = vst [vmem:[%s1619 + $0x200] sm:$0xf0] %v1807
      %v1809 = vld [vmem:[%s1619 + $0x208] sm:$0x1f]
      %v1810 = vsel %vm1628, %v1578, %v1809
      %1811 = vst [vmem:[%s1619 + $0x208] sm:$0x1f] %v1810
      %v1812 = vld [vmem:[%s1619 + $0x210] sm:$0xf0]
      %v1813 = vsel %vm1622, %v1586, %v1812
      %1814 = vst [vmem:[%s1619 + $0x210] sm:$0xf0] %v1813
      %v1815 = vld [vmem:[%s1619 + $0x218] sm:$0x1f]
      %v1816 = vsel %vm1628, %v1586, %v1815
      %1817 = vst [vmem:[%s1619 + $0x218] sm:$0x1f] %v1816
      %v1850 = vrot.slane %v1299, 4
      %v1851 = vrot.slane %v1300, 4
      %v1852 = vrot.slane %v1301, 4
      %v1853 = vrot.slane %v1302, 4
      %v1854 = vrot.slane %v1303, 4
      %v1855 = vrot.slane %v1304, 4
      %v1856 = vrot.slane %v1305, 4
      %v1857 = vrot.slane %v1306, 4
      %v1858 = vrot.slane %v1307, 4
      %v1859 = vrot.slane %v1308, 4
      %v1860 = vrot.slane %v1309, 4
      %v1861 = vrot.slane %v1310, 4
      %v1862 = vrot.slane %v1311, 4
      %v1863 = vrot.slane %v1312, 4
      %v1864 = vrot.slane %v1313, 4
      %v1865 = vrot.slane %v1314, 4
      %v1866 = vrot.slane %v1315, 4
      %v1867 = vrot.slane %v1316, 4
      %v1868 = vrot.slane %v1317, 4
      %v1869 = vrot.slane %v1318, 4
      %v1870 = vrot.slane %v1319, 4
      %v1871 = vrot.slane %v1320, 4
      %v1872 = vrot.slane %v1321, 4
      %v1873 = vrot.slane %v1322, 4
      %v1874 = vrot.slane %v1323, 4
      %v1875 = vrot.slane %v1324, 4
      %v1876 = vrot.slane %v1325, 4
      %v1877 = vrot.slane %v1326, 4
      %v1878 = vrot.slane %v1327, 4
      %v1879 = vrot.slane %v1328, 4
      %v1880 = vrot.slane %v1329, 4
      %v1881 = vrot.slane %v1330, 4
      %1882 = vrot.lane.b32.xlu0 %v1850, 2
      %v1883 = vpop.permute.xlu0 %1882
      %1884 = vrot.lane.b32.xlu0 %v1851, 2
      %v1885 = vpop.permute.xlu0 %1884
      %1886 = vrot.lane.b32.xlu0 %v1852, 2
      %v1887 = vpop.permute.xlu0 %1886
      %1888 = vrot.lane.b32.xlu0 %v1853, 2
      %v1889 = vpop.permute.xlu0 %1888
      %1890 = vrot.lane.b32.xlu0 %v1854, 2
      %v1891 = vpop.permute.xlu0 %1890
      %1892 = vrot.lane.b32.xlu0 %v1855, 2
      %v1893 = vpop.permute.xlu0 %1892
      %1894 = vrot.lane.b32.xlu0 %v1856, 2
      %v1895 = vpop.permute.xlu0 %1894
      %1896 = vrot.lane.b32.xlu0 %v1857, 2
      %v1897 = vpop.permute.xlu0 %1896
      %1898 = vrot.lane.b32.xlu0 %v1858, 2
      %v1899 = vpop.permute.xlu0 %1898
      %1900 = vrot.lane.b32.xlu0 %v1859, 2
      %v1901 = vpop.permute.xlu0 %1900
      %1902 = vrot.lane.b32.xlu0 %v1860, 2
      %v1903 = vpop.permute.xlu0 %1902
      %1904 = vrot.lane.b32.xlu0 %v1861, 2
      %v1905 = vpop.permute.xlu0 %1904
      %1906 = vrot.lane.b32.xlu0 %v1862, 2
      %v1907 = vpop.permute.xlu0 %1906
      %1908 = vrot.lane.b32.xlu0 %v1863, 2
      %v1909 = vpop.permute.xlu0 %1908
      %1910 = vrot.lane.b32.xlu0 %v1864, 2
      %v1911 = vpop.permute.xlu0 %1910
      %1912 = vrot.lane.b32.xlu0 %v1865, 2
      %v1913 = vpop.permute.xlu0 %1912
      %1914 = vrot.lane.b32.xlu0 %v1866, 2
      %v1915 = vpop.permute.xlu0 %1914
      %1916 = vrot.lane.b32.xlu0 %v1867, 2
      %v1917 = vpop.permute.xlu0 %1916
      %1918 = vrot.lane.b32.xlu0 %v1868, 2
      %v1919 = vpop.permute.xlu0 %1918
      %1920 = vrot.lane.b32.xlu0 %v1869, 2
      %v1921 = vpop.permute.xlu0 %1920
      %1922 = vrot.lane.b32.xlu0 %v1870, 2
      %v1923 = vpop.permute.xlu0 %1922
      %1924 = vrot.lane.b32.xlu0 %v1871, 2
      %v1925 = vpop.permute.xlu0 %1924
      %1926 = vrot.lane.b32.xlu0 %v1872, 2
      %v1927 = vpop.permute.xlu0 %1926
      %1928 = vrot.lane.b32.xlu0 %v1873, 2
      %v1929 = vpop.permute.xlu0 %1928
      %1930 = vrot.lane.b32.xlu0 %v1874, 2
      %v1931 = vpop.permute.xlu0 %1930
      %1932 = vrot.lane.b32.xlu0 %v1875, 2
      %v1933 = vpop.permute.xlu0 %1932
      %1934 = vrot.lane.b32.xlu0 %v1876, 2
      %v1935 = vpop.permute.xlu0 %1934
      %1936 = vrot.lane.b32.xlu0 %v1877, 2
      %v1937 = vpop.permute.xlu0 %1936
      %1938 = vrot.lane.b32.xlu0 %v1878, 2
      %v1939 = vpop.permute.xlu0 %1938
      %1940 = vrot.lane.b32.xlu0 %v1879, 2
      %v1941 = vpop.permute.xlu0 %1940
      %1942 = vrot.lane.b32.xlu0 %v1880, 2
      %v1943 = vpop.permute.xlu0 %1942
      %1944 = vrot.lane.b32.xlu0 %v1881, 2
      %v1945 = vpop.permute.xlu0 %1944
      %vm1978 = vcmask 31764
      %1979 = vst.msk [vmem:[%s1619] sm:$0xf0] %vm1978, %v1883
      %vm1980 = vcmask 27664
      %1981 = vst.msk [vmem:[%s1619 + $0x8] sm:$0xf] %vm1980, %v1883
      %1982 = vst.msk [vmem:[%s1619 + $0x10] sm:$0xf0] %vm1978, %v1885
      %1983 = vst.msk [vmem:[%s1619 + $0x18] sm:$0xf] %vm1980, %v1885
      %1984 = vst.msk [vmem:[%s1619 + $0x20] sm:$0xf0] %vm1978, %v1887
      %1985 = vst.msk [vmem:[%s1619 + $0x28] sm:$0xf] %vm1980, %v1887
      %1986 = vst.msk [vmem:[%s1619 + $0x30] sm:$0xf0] %vm1978, %v1889
      %1987 = vst.msk [vmem:[%s1619 + $0x38] sm:$0xf] %vm1980, %v1889
      %1988 = vst.msk [vmem:[%s1619 + $0x40] sm:$0xf0] %vm1978, %v1891
      %1989 = vst.msk [vmem:[%s1619 + $0x48] sm:$0xf] %vm1980, %v1891
      %1990 = vst.msk [vmem:[%s1619 + $0x50] sm:$0xf0] %vm1978, %v1893
      %1991 = vst.msk [vmem:[%s1619 + $0x58] sm:$0xf] %vm1980, %v1893
      %1992 = vst.msk [vmem:[%s1619 + $0x60] sm:$0xf0] %vm1978, %v1895
      %1993 = vst.msk [vmem:[%s1619 + $0x68] sm:$0xf] %vm1980, %v1895
      %1994 = vst.msk [vmem:[%s1619 + $0x70] sm:$0xf0] %vm1978, %v1897
      %1995 = vst.msk [vmem:[%s1619 + $0x78] sm:$0xf] %vm1980, %v1897
      %1996 = vst.msk [vmem:[%s1619 + $0x80] sm:$0xf0] %vm1978, %v1899
      %1997 = vst.msk [vmem:[%s1619 + $0x88] sm:$0xf] %vm1980, %v1899
      %1998 = vst.msk [vmem:[%s1619 + $0x90] sm:$0xf0] %vm1978, %v1901
      %1999 = vst.msk [vmem:[%s1619 + $0x98] sm:$0xf] %vm1980, %v1901
      %2000 = vst.msk [vmem:[%s1619 + $0xa0] sm:$0xf0] %vm1978, %v1903
      %2001 = vst.msk [vmem:[%s1619 + $0xa8] sm:$0xf] %vm1980, %v1903
      %2002 = vst.msk [vmem:[%s1619 + $0xb0] sm:$0xf0] %vm1978, %v1905
      %2003 = vst.msk [vmem:[%s1619 + $0xb8] sm:$0xf] %vm1980, %v1905
      %2004 = vst.msk [vmem:[%s1619 + $0xc0] sm:$0xf0] %vm1978, %v1907
      %2005 = vst.msk [vmem:[%s1619 + $0xc8] sm:$0xf] %vm1980, %v1907
      %2006 = vst.msk [vmem:[%s1619 + $0xd0] sm:$0xf0] %vm1978, %v1909
      %2007 = vst.msk [vmem:[%s1619 + $0xd8] sm:$0xf] %vm1980, %v1909
      %2008 = vst.msk [vmem:[%s1619 + $0xe0] sm:$0xf0] %vm1978, %v1911
      %2009 = vst.msk [vmem:[%s1619 + $0xe8] sm:$0xf] %vm1980, %v1911
      %2010 = vst.msk [vmem:[%s1619 + $0xf0] sm:$0xf0] %vm1978, %v1913
      %2011 = vst.msk [vmem:[%s1619 + $0xf8] sm:$0xf] %vm1980, %v1913
      %2012 = vst.msk [vmem:[%s1619 + $0x120] sm:$0xf0] %vm1978, %v1915
      %2013 = vst.msk [vmem:[%s1619 + $0x128] sm:$0xf] %vm1980, %v1915
      %2014 = vst.msk [vmem:[%s1619 + $0x130] sm:$0xf0] %vm1978, %v1917
      %2015 = vst.msk [vmem:[%s1619 + $0x138] sm:$0xf] %vm1980, %v1917
      %2016 = vst.msk [vmem:[%s1619 + $0x140] sm:$0xf0] %vm1978, %v1919
      %2017 = vst.msk [vmem:[%s1619 + $0x148] sm:$0xf] %vm1980, %v1919
      %2018 = vst.msk [vmem:[%s1619 + $0x150] sm:$0xf0] %vm1978, %v1921
      %2019 = vst.msk [vmem:[%s1619 + $0x158] sm:$0xf] %vm1980, %v1921
      %2020 = vst.msk [vmem:[%s1619 + $0x160] sm:$0xf0] %vm1978, %v1923
      %2021 = vst.msk [vmem:[%s1619 + $0x168] sm:$0xf] %vm1980, %v1923
      %2022 = vst.msk [vmem:[%s1619 + $0x170] sm:$0xf0] %vm1978, %v1925
      %2023 = vst.msk [vmem:[%s1619 + $0x178] sm:$0xf] %vm1980, %v1925
      %2024 = vst.msk [vmem:[%s1619 + $0x180] sm:$0xf0] %vm1978, %v1927
      %2025 = vst.msk [vmem:[%s1619 + $0x188] sm:$0xf] %vm1980, %v1927
      %2026 = vst.msk [vmem:[%s1619 + $0x190] sm:$0xf0] %vm1978, %v1929
      %2027 = vst.msk [vmem:[%s1619 + $0x198] sm:$0xf] %vm1980, %v1929
      %2028 = vst.msk [vmem:[%s1619 + $0x1a0] sm:$0xf0] %vm1978, %v1931
      %2029 = vst.msk [vmem:[%s1619 + $0x1a8] sm:$0xf] %vm1980, %v1931
      %2030 = vst.msk [vmem:[%s1619 + $0x1b0] sm:$0xf0] %vm1978, %v1933
      %2031 = vst.msk [vmem:[%s1619 + $0x1b8] sm:$0xf] %vm1980, %v1933
      %2032 = vst.msk [vmem:[%s1619 + $0x1c0] sm:$0xf0] %vm1978, %v1935
      %2033 = vst.msk [vmem:[%s1619 + $0x1c8] sm:$0xf] %vm1980, %v1935
      %2034 = vst.msk [vmem:[%s1619 + $0x1d0] sm:$0xf0] %vm1978, %v1937
      %2035 = vst.msk [vmem:[%s1619 + $0x1d8] sm:$0xf] %vm1980, %v1937
      %2036 = vst.msk [vmem:[%s1619 + $0x1e0] sm:$0xf0] %vm1978, %v1939
      %2037 = vst.msk [vmem:[%s1619 + $0x1e8] sm:$0xf] %vm1980, %v1939
      %2038 = vst.msk [vmem:[%s1619 + $0x1f0] sm:$0xf0] %vm1978, %v1941
      %2039 = vst.msk [vmem:[%s1619 + $0x1f8] sm:$0xf] %vm1980, %v1941
      %2040 = vst.msk [vmem:[%s1619 + $0x200] sm:$0xf0] %vm1978, %v1943
      %2041 = vst.msk [vmem:[%s1619 + $0x208] sm:$0xf] %vm1980, %v1943
      %2042 = vst.msk [vmem:[%s1619 + $0x210] sm:$0xf0] %vm1978, %v1945
      %2043 = vst.msk [vmem:[%s1619 + $0x218] sm:$0xf] %vm1980, %v1945
      %v2044 = vrot.slane %v1332, 4
      %v2045 = vrot.slane %v1335, 5
      %v2046 = vor.u32 %v2044, %v2045
      %v2047 = vrot.slane %v1340, 4
      %v2048 = vrot.slane %v1343, 5
      %v2049 = vor.u32 %v2047, %v2048
      %v2050 = vrot.slane %v1348, 4
      %v2051 = vrot.slane %v1351, 5
      %v2052 = vor.u32 %v2050, %v2051
      %v2053 = vrot.slane %v1356, 4
      %v2054 = vrot.slane %v1359, 5
      %v2055 = vor.u32 %v2053, %v2054
      %v2056 = vrot.slane %v1364, 4
      %v2057 = vrot.slane %v1367, 5
      %v2058 = vor.u32 %v2056, %v2057
      %v2059 = vrot.slane %v1372, 4
      %v2060 = vrot.slane %v1375, 5
      %v2061 = vor.u32 %v2059, %v2060
      %v2062 = vrot.slane %v1380, 4
      %v2063 = vrot.slane %v1383, 5
      %v2064 = vor.u32 %v2062, %v2063
      %v2065 = vrot.slane %v1388, 4
      %v2066 = vrot.slane %v1391, 5
      %v2067 = vor.u32 %v2065, %v2066
      %v2068 = vrot.slane %v1396, 4
      %v2069 = vrot.slane %v1399, 5
      %v2070 = vor.u32 %v2068, %v2069
      %v2071 = vrot.slane %v1404, 4
      %v2072 = vrot.slane %v1407, 5
      %v2073 = vor.u32 %v2071, %v2072
      %v2074 = vrot.slane %v1412, 4
      %v2075 = vrot.slane %v1415, 5
      %v2076 = vor.u32 %v2074, %v2075
      %v2077 = vrot.slane %v1420, 4
      %v2078 = vrot.slane %v1423, 5
      %v2079 = vor.u32 %v2077, %v2078
      %v2080 = vrot.slane %v1428, 4
      %v2081 = vrot.slane %v1431, 5
      %v2082 = vor.u32 %v2080, %v2081
      %v2083 = vrot.slane %v1436, 4
      %v2084 = vrot.slane %v1439, 5
      %v2085 = vor.u32 %v2083, %v2084
      %v2086 = vrot.slane %v1444, 4
      %v2087 = vrot.slane %v1447, 5
      %v2088 = vor.u32 %v2086, %v2087
      %v2089 = vrot.slane %v1452, 4
      %v2090 = vrot.slane %v1455, 5
      %v2091 = vor.u32 %v2089, %v2090
      %v2092 = vrot.slane %v1460, 4
      %v2093 = vrot.slane %v1463, 5
      %v2094 = vor.u32 %v2092, %v2093
      %v2095 = vrot.slane %v1468, 4
      %v2096 = vrot.slane %v1471, 5
      %v2097 = vor.u32 %v2095, %v2096
      %v2098 = vrot.slane %v1476, 4
      %v2099 = vrot.slane %v1479, 5
      %v2100 = vor.u32 %v2098, %v2099
      %v2101 = vrot.slane %v1484, 4
      %v2102 = vrot.slane %v1487, 5
      %v2103 = vor.u32 %v2101, %v2102
      %v2104 = vrot.slane %v1492, 4
      %v2105 = vrot.slane %v1495, 5
      %v2106 = vor.u32 %v2104, %v2105
      %v2107 = vrot.slane %v1500, 4
      %v2108 = vrot.slane %v1503, 5
      %v2109 = vor.u32 %v2107, %v2108
      %v2110 = vrot.slane %v1508, 4
      %v2111 = vrot.slane %v1511, 5
      %v2112 = vor.u32 %v2110, %v2111
      %v2113 = vrot.slane %v1516, 4
      %v2114 = vrot.slane %v1519, 5
      %v2115 = vor.u32 %v2113, %v2114
      %v2116 = vrot.slane %v1524, 4
      %v2117 = vrot.slane %v1527, 5
      %v2118 = vor.u32 %v2116, %v2117
      %v2119 = vrot.slane %v1532, 4
      %v2120 = vrot.slane %v1535, 5
      %v2121 = vor.u32 %v2119, %v2120
      %v2122 = vrot.slane %v1540, 4
      %v2123 = vrot.slane %v1543, 5
      %v2124 = vor.u32 %v2122, %v2123
      %v2125 = vrot.slane %v1548, 4
      %v2126 = vrot.slane %v1551, 5
      %v2127 = vor.u32 %v2125, %v2126
      %v2128 = vrot.slane %v1556, 4
      %v2129 = vrot.slane %v1559, 5
      %v2130 = vor.u32 %v2128, %v2129
      %v2131 = vrot.slane %v1564, 4
      %v2132 = vrot.slane %v1567, 5
      %v2133 = vor.u32 %v2131, %v2132
      %v2134 = vrot.slane %v1572, 4
      %v2135 = vrot.slane %v1575, 5
      %v2136 = vor.u32 %v2134, %v2135
      %v2137 = vrot.slane %v1580, 4
      %v2138 = vrot.slane %v1583, 5
      %v2139 = vor.u32 %v2137, %v2138
      %2140 = vrot.lane.b32.xlu0 %v2046, 4
      %v2141 = vpop.permute.xlu0 %2140
      %2142 = vrot.lane.b32.xlu0 %v2049, 4
      %v2143 = vpop.permute.xlu0 %2142
      %2144 = vrot.lane.b32.xlu0 %v2052, 4
      %v2145 = vpop.permute.xlu0 %2144
      %2146 = vrot.lane.b32.xlu0 %v2055, 4
      %v2147 = vpop.permute.xlu0 %2146
      %2148 = vrot.lane.b32.xlu0 %v2058, 4
      %v2149 = vpop.permute.xlu0 %2148
      %2150 = vrot.lane.b32.xlu0 %v2061, 4
      %v2151 = vpop.permute.xlu0 %2150
      %2152 = vrot.lane.b32.xlu0 %v2064, 4
      %v2153 = vpop.permute.xlu0 %2152
      %2154 = vrot.lane.b32.xlu0 %v2067, 4
      %v2155 = vpop.permute.xlu0 %2154
      %2156 = vrot.lane.b32.xlu0 %v2070, 4
      %v2157 = vpop.permute.xlu0 %2156
      %2158 = vrot.lane.b32.xlu0 %v2073, 4
      %v2159 = vpop.permute.xlu0 %2158
      %2160 = vrot.lane.b32.xlu0 %v2076, 4
      %v2161 = vpop.permute.xlu0 %2160
      %2162 = vrot.lane.b32.xlu0 %v2079, 4
      %v2163 = vpop.permute.xlu0 %2162
      %2164 = vrot.lane.b32.xlu0 %v2082, 4
      %v2165 = vpop.permute.xlu0 %2164
      %2166 = vrot.lane.b32.xlu0 %v2085, 4
      %v2167 = vpop.permute.xlu0 %2166
      %2168 = vrot.lane.b32.xlu0 %v2088, 4
      %v2169 = vpop.permute.xlu0 %2168
      %2170 = vrot.lane.b32.xlu0 %v2091, 4
      %v2171 = vpop.permute.xlu0 %2170
      %2172 = vrot.lane.b32.xlu0 %v2094, 4
      %v2173 = vpop.permute.xlu0 %2172
      %2174 = vrot.lane.b32.xlu0 %v2097, 4
      %v2175 = vpop.permute.xlu0 %2174
      %2176 = vrot.lane.b32.xlu0 %v2100, 4
      %v2177 = vpop.permute.xlu0 %2176
      %2178 = vrot.lane.b32.xlu0 %v2103, 4
      %v2179 = vpop.permute.xlu0 %2178
      %2180 = vrot.lane.b32.xlu0 %v2106, 4
      %v2181 = vpop.permute.xlu0 %2180
      %2182 = vrot.lane.b32.xlu0 %v2109, 4
      %v2183 = vpop.permute.xlu0 %2182
      %2184 = vrot.lane.b32.xlu0 %v2112, 4
      %v2185 = vpop.permute.xlu0 %2184
      %2186 = vrot.lane.b32.xlu0 %v2115, 4
      %v2187 = vpop.permute.xlu0 %2186
      %2188 = vrot.lane.b32.xlu0 %v2118, 4
      %v2189 = vpop.permute.xlu0 %2188
      %2190 = vrot.lane.b32.xlu0 %v2121, 4
      %v2191 = vpop.permute.xlu0 %2190
      %2192 = vrot.lane.b32.xlu0 %v2124, 4
      %v2193 = vpop.permute.xlu0 %2192
      %2194 = vrot.lane.b32.xlu0 %v2127, 4
      %v2195 = vpop.permute.xlu0 %2194
      %2196 = vrot.lane.b32.xlu0 %v2130, 4
      %v2197 = vpop.permute.xlu0 %2196
      %2198 = vrot.lane.b32.xlu0 %v2133, 4
      %v2199 = vpop.permute.xlu0 %2198
      %2200 = vrot.lane.b32.xlu0 %v2136, 4
      %v2201 = vpop.permute.xlu0 %2200
      %2202 = vrot.lane.b32.xlu0 %v2139, 4
      %v2203 = vpop.permute.xlu0 %2202
      %vm2236 = vcmask 48163
      %vm2237 = vsmask.f32 7950
      %vm2238 = vmand %vm2236, %vm2237
      %v2239 = vld [vmem:[%s1619] sm:$0xf8]
      %v2240 = vsel %vm2238, %v2141, %v2239
      %2241 = vst [vmem:[%s1619] sm:$0xf8] %v2240
      %vm2242 = vcmask 44064
      %vm2243 = vsmask.f32 3328
      %vm2244 = vmand %vm2242, %vm2243
      %v2245 = vld [vmem:[%s1619 + $0x8] sm:$0xf]
      %v2246 = vsel %vm2244, %v2141, %v2245
      %2247 = vst [vmem:[%s1619 + $0x8] sm:$0xf] %v2246
      %v2248 = vld [vmem:[%s1619 + $0x10] sm:$0xf8]
      %v2249 = vsel %vm2238, %v2143, %v2248
      %2250 = vst [vmem:[%s1619 + $0x10] sm:$0xf8] %v2249
      %v2251 = vld [vmem:[%s1619 + $0x18] sm:$0xf]
      %v2252 = vsel %vm2244, %v2143, %v2251
      %2253 = vst [vmem:[%s1619 + $0x18] sm:$0xf] %v2252
      %v2254 = vld [vmem:[%s1619 + $0x20] sm:$0xf8]
      %v2255 = vsel %vm2238, %v2145, %v2254
      %2256 = vst [vmem:[%s1619 + $0x20] sm:$0xf8] %v2255
      %v2257 = vld [vmem:[%s1619 + $0x28] sm:$0xf]
      %v2258 = vsel %vm2244, %v2145, %v2257
      %2259 = vst [vmem:[%s1619 + $0x28] sm:$0xf] %v2258
      %v2260 = vld [vmem:[%s1619 + $0x30] sm:$0xf8]
      %v2261 = vsel %vm2238, %v2147, %v2260
      %2262 = vst [vmem:[%s1619 + $0x30] sm:$0xf8] %v2261
      %v2263 = vld [vmem:[%s1619 + $0x38] sm:$0xf]
      %v2264 = vsel %vm2244, %v2147, %v2263
      %2265 = vst [vmem:[%s1619 + $0x38] sm:$0xf] %v2264
      %v2266 = vld [vmem:[%s1619 + $0x40] sm:$0xf8]
      %v2267 = vsel %vm2238, %v2149, %v2266
      %2268 = vst [vmem:[%s1619 + $0x40] sm:$0xf8] %v2267
      %v2269 = vld [vmem:[%s1619 + $0x48] sm:$0xf]
      %v2270 = vsel %vm2244, %v2149, %v2269
      %2271 = vst [vmem:[%s1619 + $0x48] sm:$0xf] %v2270
      %v2272 = vld [vmem:[%s1619 + $0x50] sm:$0xf8]
      %v2273 = vsel %vm2238, %v2151, %v2272
      %2274 = vst [vmem:[%s1619 + $0x50] sm:$0xf8] %v2273
      %v2275 = vld [vmem:[%s1619 + $0x58] sm:$0xf]
      %v2276 = vsel %vm2244, %v2151, %v2275
      %2277 = vst [vmem:[%s1619 + $0x58] sm:$0xf] %v2276
      %v2278 = vld [vmem:[%s1619 + $0x60] sm:$0xf8]
      %v2279 = vsel %vm2238, %v2153, %v2278
      %2280 = vst [vmem:[%s1619 + $0x60] sm:$0xf8] %v2279
      %v2281 = vld [vmem:[%s1619 + $0x68] sm:$0xf]
      %v2282 = vsel %vm2244, %v2153, %v2281
      %2283 = vst [vmem:[%s1619 + $0x68] sm:$0xf] %v2282
      %v2284 = vld [vmem:[%s1619 + $0x70] sm:$0xf8]
      %v2285 = vsel %vm2238, %v2155, %v2284
      %2286 = vst [vmem:[%s1619 + $0x70] sm:$0xf8] %v2285
      %v2287 = vld [vmem:[%s1619 + $0x78] sm:$0xf]
      %v2288 = vsel %vm2244, %v2155, %v2287
      %2289 = vst [vmem:[%s1619 + $0x78] sm:$0xf] %v2288
      %v2290 = vld [vmem:[%s1619 + $0x80] sm:$0xf8]
      %v2291 = vsel %vm2238, %v2157, %v2290
      %2292 = vst [vmem:[%s1619 + $0x80] sm:$0xf8] %v2291
      %v2293 = vld [vmem:[%s1619 + $0x88] sm:$0xf]
      %v2294 = vsel %vm2244, %v2157, %v2293
      %2295 = vst [vmem:[%s1619 + $0x88] sm:$0xf] %v2294
      %v2296 = vld [vmem:[%s1619 + $0x90] sm:$0xf8]
      %v2297 = vsel %vm2238, %v2159, %v2296
      %2298 = vst [vmem:[%s1619 + $0x90] sm:$0xf8] %v2297
      %v2299 = vld [vmem:[%s1619 + $0x98] sm:$0xf]
      %v2300 = vsel %vm2244, %v2159, %v2299
      %2301 = vst [vmem:[%s1619 + $0x98] sm:$0xf] %v2300
      %v2302 = vld [vmem:[%s1619 + $0xa0] sm:$0xf8]
      %v2303 = vsel %vm2238, %v2161, %v2302
      %2304 = vst [vmem:[%s1619 + $0xa0] sm:$0xf8] %v2303
      %v2305 = vld [vmem:[%s1619 + $0xa8] sm:$0xf]
      %v2306 = vsel %vm2244, %v2161, %v2305
      %2307 = vst [vmem:[%s1619 + $0xa8] sm:$0xf] %v2306
      %v2308 = vld [vmem:[%s1619 + $0xb0] sm:$0xf8]
      %v2309 = vsel %vm2238, %v2163, %v2308
      %2310 = vst [vmem:[%s1619 + $0xb0] sm:$0xf8] %v2309
      %v2311 = vld [vmem:[%s1619 + $0xb8] sm:$0xf]
      %v2312 = vsel %vm2244, %v2163, %v2311
      %2313 = vst [vmem:[%s1619 + $0xb8] sm:$0xf] %v2312
      %v2314 = vld [vmem:[%s1619 + $0xc0] sm:$0xf8]
      %v2315 = vsel %vm2238, %v2165, %v2314
      %2316 = vst [vmem:[%s1619 + $0xc0] sm:$0xf8] %v2315
      %v2317 = vld [vmem:[%s1619 + $0xc8] sm:$0xf]
      %v2318 = vsel %vm2244, %v2165, %v2317
      %2319 = vst [vmem:[%s1619 + $0xc8] sm:$0xf] %v2318
      %v2320 = vld [vmem:[%s1619 + $0xd0] sm:$0xf8]
      %v2321 = vsel %vm2238, %v2167, %v2320
      %2322 = vst [vmem:[%s1619 + $0xd0] sm:$0xf8] %v2321
      %v2323 = vld [vmem:[%s1619 + $0xd8] sm:$0xf]
      %v2324 = vsel %vm2244, %v2167, %v2323
      %2325 = vst [vmem:[%s1619 + $0xd8] sm:$0xf] %v2324
      %v2326 = vld [vmem:[%s1619 + $0xe0] sm:$0xf8]
      %v2327 = vsel %vm2238, %v2169, %v2326
      %2328 = vst [vmem:[%s1619 + $0xe0] sm:$0xf8] %v2327
      %v2329 = vld [vmem:[%s1619 + $0xe8] sm:$0xf]
      %v2330 = vsel %vm2244, %v2169, %v2329
      %2331 = vst [vmem:[%s1619 + $0xe8] sm:$0xf] %v2330
      %v2332 = vld [vmem:[%s1619 + $0xf0] sm:$0xf8]
      %v2333 = vsel %vm2238, %v2171, %v2332
      %2334 = vst [vmem:[%s1619 + $0xf0] sm:$0xf8] %v2333
      %v2335 = vld [vmem:[%s1619 + $0xf8] sm:$0xf]
      %v2336 = vsel %vm2244, %v2171, %v2335
      %2337 = vst [vmem:[%s1619 + $0xf8] sm:$0xf] %v2336
      %v2338 = vld [vmem:[%s1619 + $0x120] sm:$0xf8]
      %v2339 = vsel %vm2238, %v2173, %v2338
      %2340 = vst [vmem:[%s1619 + $0x120] sm:$0xf8] %v2339
      %v2341 = vld [vmem:[%s1619 + $0x128] sm:$0xf]
      %v2342 = vsel %vm2244, %v2173, %v2341
      %2343 = vst [vmem:[%s1619 + $0x128] sm:$0xf] %v2342
      %v2344 = vld [vmem:[%s1619 + $0x130] sm:$0xf8]
      %v2345 = vsel %vm2238, %v2175, %v2344
      %2346 = vst [vmem:[%s1619 + $0x130] sm:$0xf8] %v2345
      %v2347 = vld [vmem:[%s1619 + $0x138] sm:$0xf]
      %v2348 = vsel %vm2244, %v2175, %v2347
      %2349 = vst [vmem:[%s1619 + $0x138] sm:$0xf] %v2348
      %v2350 = vld [vmem:[%s1619 + $0x140] sm:$0xf8]
      %v2351 = vsel %vm2238, %v2177, %v2350
      %2352 = vst [vmem:[%s1619 + $0x140] sm:$0xf8] %v2351
      %v2353 = vld [vmem:[%s1619 + $0x148] sm:$0xf]
      %v2354 = vsel %vm2244, %v2177, %v2353
      %2355 = vst [vmem:[%s1619 + $0x148] sm:$0xf] %v2354
      %v2356 = vld [vmem:[%s1619 + $0x150] sm:$0xf8]
      %v2357 = vsel %vm2238, %v2179, %v2356
      %2358 = vst [vmem:[%s1619 + $0x150] sm:$0xf8] %v2357
      %v2359 = vld [vmem:[%s1619 + $0x158] sm:$0xf]
      %v2360 = vsel %vm2244, %v2179, %v2359
      %2361 = vst [vmem:[%s1619 + $0x158] sm:$0xf] %v2360
      %v2362 = vld [vmem:[%s1619 + $0x160] sm:$0xf8]
      %v2363 = vsel %vm2238, %v2181, %v2362
      %2364 = vst [vmem:[%s1619 + $0x160] sm:$0xf8] %v2363
      %v2365 = vld [vmem:[%s1619 + $0x168] sm:$0xf]
      %v2366 = vsel %vm2244, %v2181, %v2365
      %2367 = vst [vmem:[%s1619 + $0x168] sm:$0xf] %v2366
      %v2368 = vld [vmem:[%s1619 + $0x170] sm:$0xf8]
      %v2369 = vsel %vm2238, %v2183, %v2368
      %2370 = vst [vmem:[%s1619 + $0x170] sm:$0xf8] %v2369
      %v2371 = vld [vmem:[%s1619 + $0x178] sm:$0xf]
      %v2372 = vsel %vm2244, %v2183, %v2371
      %2373 = vst [vmem:[%s1619 + $0x178] sm:$0xf] %v2372
      %v2374 = vld [vmem:[%s1619 + $0x180] sm:$0xf8]
      %v2375 = vsel %vm2238, %v2185, %v2374
      %2376 = vst [vmem:[%s1619 + $0x180] sm:$0xf8] %v2375
      %v2377 = vld [vmem:[%s1619 + $0x188] sm:$0xf]
      %v2378 = vsel %vm2244, %v2185, %v2377
      %2379 = vst [vmem:[%s1619 + $0x188] sm:$0xf] %v2378
      %v2380 = vld [vmem:[%s1619 + $0x190] sm:$0xf8]
      %v2381 = vsel %vm2238, %v2187, %v2380
      %2382 = vst [vmem:[%s1619 + $0x190] sm:$0xf8] %v2381
      %v2383 = vld [vmem:[%s1619 + $0x198] sm:$0xf]
      %v2384 = vsel %vm2244, %v2187, %v2383
      %2385 = vst [vmem:[%s1619 + $0x198] sm:$0xf] %v2384
      %v2386 = vld [vmem:[%s1619 + $0x1a0] sm:$0xf8]
      %v2387 = vsel %vm2238, %v2189, %v2386
      %2388 = vst [vmem:[%s1619 + $0x1a0] sm:$0xf8] %v2387
      %v2389 = vld [vmem:[%s1619 + $0x1a8] sm:$0xf]
      %v2390 = vsel %vm2244, %v2189, %v2389
      %2391 = vst [vmem:[%s1619 + $0x1a8] sm:$0xf] %v2390
      %v2392 = vld [vmem:[%s1619 + $0x1b0] sm:$0xf8]
      %v2393 = vsel %vm2238, %v2191, %v2392
      %2394 = vst [vmem:[%s1619 + $0x1b0] sm:$0xf8] %v2393
      %v2395 = vld [vmem:[%s1619 + $0x1b8] sm:$0xf]
      %v2396 = vsel %vm2244, %v2191, %v2395
      %2397 = vst [vmem:[%s1619 + $0x1b8] sm:$0xf] %v2396
      %v2398 = vld [vmem:[%s1619 + $0x1c0] sm:$0xf8]
      %v2399 = vsel %vm2238, %v2193, %v2398
      %2400 = vst [vmem:[%s1619 + $0x1c0] sm:$0xf8] %v2399
      %v2401 = vld [vmem:[%s1619 + $0x1c8] sm:$0xf]
      %v2402 = vsel %vm2244, %v2193, %v2401
      %2403 = vst [vmem:[%s1619 + $0x1c8] sm:$0xf] %v2402
      %v2404 = vld [vmem:[%s1619 + $0x1d0] sm:$0xf8]
      %v2405 = vsel %vm2238, %v2195, %v2404
      %2406 = vst [vmem:[%s1619 + $0x1d0] sm:$0xf8] %v2405
      %v2407 = vld [vmem:[%s1619 + $0x1d8] sm:$0xf]
      %v2408 = vsel %vm2244, %v2195, %v2407
      %2409 = vst [vmem:[%s1619 + $0x1d8] sm:$0xf] %v2408
      %v2410 = vld [vmem:[%s1619 + $0x1e0] sm:$0xf8]
      %v2411 = vsel %vm2238, %v2197, %v2410
      %2412 = vst [vmem:[%s1619 + $0x1e0] sm:$0xf8] %v2411
      %v2413 = vld [vmem:[%s1619 + $0x1e8] sm:$0xf]
      %v2414 = vsel %vm2244, %v2197, %v2413
      %2415 = vst [vmem:[%s1619 + $0x1e8] sm:$0xf] %v2414
      %v2416 = vld [vmem:[%s1619 + $0x1f0] sm:$0xf8]
      %v2417 = vsel %vm2238, %v2199, %v2416
      %2418 = vst [vmem:[%s1619 + $0x1f0] sm:$0xf8] %v2417
      %v2419 = vld [vmem:[%s1619 + $0x1f8] sm:$0xf]
      %v2420 = vsel %vm2244, %v2199, %v2419
      %2421 = vst [vmem:[%s1619 + $0x1f8] sm:$0xf] %v2420
      %v2422 = vld [vmem:[%s1619 + $0x200] sm:$0xf8]
      %v2423 = vsel %vm2238, %v2201, %v2422
      %2424 = vst [vmem:[%s1619 + $0x200] sm:$0xf8] %v2423
      %v2425 = vld [vmem:[%s1619 + $0x208] sm:$0xf]
      %v2426 = vsel %vm2244, %v2201, %v2425
      %2427 = vst [vmem:[%s1619 + $0x208] sm:$0xf] %v2426
      %v2428 = vld [vmem:[%s1619 + $0x210] sm:$0xf8]
      %v2429 = vsel %vm2238, %v2203, %v2428
      %2430 = vst [vmem:[%s1619 + $0x210] sm:$0xf8] %v2429
      %v2431 = vld [vmem:[%s1619 + $0x218] sm:$0xf]
      %v2432 = vsel %vm2244, %v2203, %v2431
      %2433 = vst [vmem:[%s1619 + $0x218] sm:$0xf] %v2432
      %v2434 = vld [vmem:[#allocation2] sm:$0xf0]
      %v2435 = vld [vmem:[#allocation2 + $0x8] sm:$0xf]
      %v2436 = vld [vmem:[#allocation2 + $0x10] sm:$0xf0]
      %v2437 = vld [vmem:[#allocation2 + $0x18] sm:$0xf]
      %v2438 = vld [vmem:[#allocation2 + $0x20] sm:$0xf0]
      %v2439 = vld [vmem:[#allocation2 + $0x28] sm:$0xf]
      %v2440 = vld [vmem:[#allocation2 + $0x30] sm:$0xf0]
      %v2441 = vld [vmem:[#allocation2 + $0x38] sm:$0xf]
      %v2442 = vld [vmem:[#allocation2 + $0x40] sm:$0xf0]
      %v2443 = vld [vmem:[#allocation2 + $0x48] sm:$0xf]
      %v2444 = vld [vmem:[#allocation2 + $0x50] sm:$0xf0]
      %v2445 = vld [vmem:[#allocation2 + $0x58] sm:$0xf]
      %v2446 = vld [vmem:[#allocation2 + $0x60] sm:$0xf0]
      %v2447 = vld [vmem:[#allocation2 + $0x68] sm:$0xf]
      %v2448 = vld [vmem:[#allocation2 + $0x70] sm:$0xf0]
      %v2449 = vld [vmem:[#allocation2 + $0x78] sm:$0xf]
      %v2450 = vld [vmem:[#allocation2 + $0x80] sm:$0xf0]
      %v2451 = vld [vmem:[#allocation2 + $0x88] sm:$0xf]
      %v2452 = vld [vmem:[#allocation2 + $0x90] sm:$0xf0]
      %v2453 = vld [vmem:[#allocation2 + $0x98] sm:$0xf]
      %v2454 = vld [vmem:[#allocation2 + $0xa0] sm:$0xf0]
      %v2455 = vld [vmem:[#allocation2 + $0xa8] sm:$0xf]
      %v2456 = vld [vmem:[#allocation2 + $0xb0] sm:$0xf0]
      %v2457 = vld [vmem:[#allocation2 + $0xb8] sm:$0xf]
      %v2458 = vld [vmem:[#allocation2 + $0xc0] sm:$0xf0]
      %v2459 = vld [vmem:[#allocation2 + $0xc8] sm:$0xf]
      %v2460 = vld [vmem:[#allocation2 + $0xd0] sm:$0xf0]
      %v2461 = vld [vmem:[#allocation2 + $0xd8] sm:$0xf]
      %v2462 = vld [vmem:[#allocation2 + $0xe0] sm:$0xf0]
      %v2463 = vld [vmem:[#allocation2 + $0xe8] sm:$0xf]
      %v2464 = vld [vmem:[#allocation2 + $0xf0] sm:$0xf0]
      %v2465 = vld [vmem:[#allocation2 + $0xf8] sm:$0xf]
      %v2466 = vld [vmem:[#allocation2 + $0x120] sm:$0xf0]
      %v2467 = vld [vmem:[#allocation2 + $0x128] sm:$0xf]
      %v2468 = vld [vmem:[#allocation2 + $0x130] sm:$0xf0]
      %v2469 = vld [vmem:[#allocation2 + $0x138] sm:$0xf]
      %v2470 = vld [vmem:[#allocation2 + $0x140] sm:$0xf0]
      %v2471 = vld [vmem:[#allocation2 + $0x148] sm:$0xf]
      %v2472 = vld [vmem:[#allocation2 + $0x150] sm:$0xf0]
      %v2473 = vld [vmem:[#allocation2 + $0x158] sm:$0xf]
      %v2474 = vld [vmem:[#allocation2 + $0x160] sm:$0xf0]
      %v2475 = vld [vmem:[#allocation2 + $0x168] sm:$0xf]
      %v2476 = vld [vmem:[#allocation2 + $0x170] sm:$0xf0]
      %v2477 = vld [vmem:[#allocation2 + $0x178] sm:$0xf]
      %v2478 = vld [vmem:[#allocation2 + $0x180] sm:$0xf0]
      %v2479 = vld [vmem:[#allocation2 + $0x188] sm:$0xf]
      %v2480 = vld [vmem:[#allocation2 + $0x190] sm:$0xf0]
      %v2481 = vld [vmem:[#allocation2 + $0x198] sm:$0xf]
      %v2482 = vld [vmem:[#allocation2 + $0x1a0] sm:$0xf0]
      %v2483 = vld [vmem:[#allocation2 + $0x1a8] sm:$0xf]
      %v2484 = vld [vmem:[#allocation2 + $0x1b0] sm:$0xf0]
      %v2485 = vld [vmem:[#allocation2 + $0x1b8] sm:$0xf]
      %v2486 = vld [vmem:[#allocation2 + $0x1c0] sm:$0xf0]
      %v2487 = vld [vmem:[#allocation2 + $0x1c8] sm:$0xf]
      %v2488 = vld [vmem:[#allocation2 + $0x1d0] sm:$0xf0]
      %v2489 = vld [vmem:[#allocation2 + $0x1d8] sm:$0xf]
      %v2490 = vld [vmem:[#allocation2 + $0x1e0] sm:$0xf0]
      %v2491 = vld [vmem:[#allocation2 + $0x1e8] sm:$0xf]
      %v2492 = vld [vmem:[#allocation2 + $0x1f0] sm:$0xf0]
      %v2493 = vld [vmem:[#allocation2 + $0x1f8] sm:$0xf]
      %v2494 = vld [vmem:[#allocation2 + $0x200] sm:$0xf0]
      %v2495 = vld [vmem:[#allocation2 + $0x208] sm:$0xf]
      %v2496 = vld [vmem:[#allocation2 + $0x210] sm:$0xf0]
      %v2497 = vld [vmem:[#allocation2 + $0x218] sm:$0xf]
      %vm2562 = vcmask 1043456
      %v2563 = vrot.slane %v2434, 4
      %v2564 = vrot.slane %v2435, 4
      %v2565 = vsel %vm2562, %v2563, %v2564
      %v2566 = vrot.slane %v2436, 4
      %v2567 = vrot.slane %v2437, 4
      %v2568 = vsel %vm2562, %v2566, %v2567
      %v2569 = vrot.slane %v2438, 4
      %v2570 = vrot.slane %v2439, 4
      %v2571 = vsel %vm2562, %v2569, %v2570
      %v2572 = vrot.slane %v2440, 4
      %v2573 = vrot.slane %v2441, 4
      %v2574 = vsel %vm2562, %v2572, %v2573
      %v2575 = vrot.slane %v2442, 4
      %v2576 = vrot.slane %v2443, 4
      %v2577 = vsel %vm2562, %v2575, %v2576
      %v2578 = vrot.slane %v2444, 4
      %v2579 = vrot.slane %v2445, 4
      %v2580 = vsel %vm2562, %v2578, %v2579
      %v2581 = vrot.slane %v2446, 4
      %v2582 = vrot.slane %v2447, 4
      %v2583 = vsel %vm2562, %v2581, %v2582
      %v2584 = vrot.slane %v2448, 4
      %v2585 = vrot.slane %v2449, 4
      %v2586 = vsel %vm2562, %v2584, %v2585
      %v2587 = vrot.slane %v2450, 4
      %v2588 = vrot.slane %v2451, 4
      %v2589 = vsel %vm2562, %v2587, %v2588
      %v2590 = vrot.slane %v2452, 4
      %v2591 = vrot.slane %v2453, 4
      %v2592 = vsel %vm2562, %v2590, %v2591
      %v2593 = vrot.slane %v2454, 4
      %v2594 = vrot.slane %v2455, 4
      %v2595 = vsel %vm2562, %v2593, %v2594
      %v2596 = vrot.slane %v2456, 4
      %v2597 = vrot.slane %v2457, 4
      %v2598 = vsel %vm2562, %v2596, %v2597
      %v2599 = vrot.slane %v2458, 4
      %v2600 = vrot.slane %v2459, 4
      %v2601 = vsel %vm2562, %v2599, %v2600
      %v2602 = vrot.slane %v2460, 4
      %v2603 = vrot.slane %v2461, 4
      %v2604 = vsel %vm2562, %v2602, %v2603
      %v2605 = vrot.slane %v2462, 4
      %v2606 = vrot.slane %v2463, 4
      %v2607 = vsel %vm2562, %v2605, %v2606
      %v2608 = vrot.slane %v2464, 4
      %v2609 = vrot.slane %v2465, 4
      %v2610 = vsel %vm2562, %v2608, %v2609
      %v2611 = vrot.slane %v2466, 4
      %v2612 = vrot.slane %v2467, 4
      %v2613 = vsel %vm2562, %v2611, %v2612
      %v2614 = vrot.slane %v2468, 4
      %v2615 = vrot.slane %v2469, 4
      %v2616 = vsel %vm2562, %v2614, %v2615
      %v2617 = vrot.slane %v2470, 4
      %v2618 = vrot.slane %v2471, 4
      %v2619 = vsel %vm2562, %v2617, %v2618
      %v2620 = vrot.slane %v2472, 4
      %v2621 = vrot.slane %v2473, 4
      %v2622 = vsel %vm2562, %v2620, %v2621
      %v2623 = vrot.slane %v2474, 4
      %v2624 = vrot.slane %v2475, 4
      %v2625 = vsel %vm2562, %v2623, %v2624
      %v2626 = vrot.slane %v2476, 4
      %v2627 = vrot.slane %v2477, 4
      %v2628 = vsel %vm2562, %v2626, %v2627
      %v2629 = vrot.slane %v2478, 4
      %v2630 = vrot.slane %v2479, 4
      %v2631 = vsel %vm2562, %v2629, %v2630
      %v2632 = vrot.slane %v2480, 4
      %v2633 = vrot.slane %v2481, 4
      %v2634 = vsel %vm2562, %v2632, %v2633
      %v2635 = vrot.slane %v2482, 4
      %v2636 = vrot.slane %v2483, 4
      %v2637 = vsel %vm2562, %v2635, %v2636
      %v2638 = vrot.slane %v2484, 4
      %v2639 = vrot.slane %v2485, 4
      %v2640 = vsel %vm2562, %v2638, %v2639
      %v2641 = vrot.slane %v2486, 4
      %v2642 = vrot.slane %v2487, 4
      %v2643 = vsel %vm2562, %v2641, %v2642
      %v2644 = vrot.slane %v2488, 4
      %v2645 = vrot.slane %v2489, 4
      %v2646 = vsel %vm2562, %v2644, %v2645
      %v2647 = vrot.slane %v2490, 4
      %v2648 = vrot.slane %v2491, 4
      %v2649 = vsel %vm2562, %v2647, %v2648
      %v2650 = vrot.slane %v2492, 4
      %v2651 = vrot.slane %v2493, 4
      %v2652 = vsel %vm2562, %v2650, %v2651
      %v2653 = vrot.slane %v2494, 4
      %v2654 = vrot.slane %v2495, 4
      %v2655 = vsel %vm2562, %v2653, %v2654
      %v2656 = vrot.slane %v2496, 4
      %v2657 = vrot.slane %v2497, 4
      %v2658 = vsel %vm2562, %v2656, %v2657
      %v2659 = vld [vmem:[%s299] sm:$0x7]
      %v2660 = vld [vmem:[%s1619] sm:$0xf0]
      %v2661 = vld [vmem:[%s1619 + $0x8] sm:$0xf]
      %v2662 = vld [vmem:[%s1619 + $0x10] sm:$0xf0]
      %v2663 = vld [vmem:[%s1619 + $0x18] sm:$0xf]
      %v2664 = vld [vmem:[%s1619 + $0x20] sm:$0xf0]
      %v2665 = vld [vmem:[%s1619 + $0x28] sm:$0xf]
      %v2666 = vld [vmem:[%s1619 + $0x30] sm:$0xf0]
      %v2667 = vld [vmem:[%s1619 + $0x38] sm:$0xf]
      %v2668 = vld [vmem:[%s1619 + $0x40] sm:$0xf0]
      %v2669 = vld [vmem:[%s1619 + $0x48] sm:$0xf]
      %v2670 = vld [vmem:[%s1619 + $0x50] sm:$0xf0]
      %v2671 = vld [vmem:[%s1619 + $0x58] sm:$0xf]
      %v2672 = vld [vmem:[%s1619 + $0x60] sm:$0xf0]
      %v2673 = vld [vmem:[%s1619 + $0x68] sm:$0xf]
      %v2674 = vld [vmem:[%s1619 + $0x70] sm:$0xf0]
      %v2675 = vld [vmem:[%s1619 + $0x78] sm:$0xf]
      %v2676 = vld [vmem:[%s1619 + $0x80] sm:$0xf0]
      %v2677 = vld [vmem:[%s1619 + $0x88] sm:$0xf]
      %v2678 = vld [vmem:[%s1619 + $0x90] sm:$0xf0]
      %v2679 = vld [vmem:[%s1619 + $0x98] sm:$0xf]
      %v2680 = vld [vmem:[%s1619 + $0xa0] sm:$0xf0]
      %v2681 = vld [vmem:[%s1619 + $0xa8] sm:$0xf]
      %v2682 = vld [vmem:[%s1619 + $0xb0] sm:$0xf0]
      %v2683 = vld [vmem:[%s1619 + $0xb8] sm:$0xf]
      %v2684 = vld [vmem:[%s1619 + $0xc0] sm:$0xf0]
      %v2685 = vld [vmem:[%s1619 + $0xc8] sm:$0xf]
      %v2686 = vld [vmem:[%s1619 + $0xd0] sm:$0xf0]
      %v2687 = vld [vmem:[%s1619 + $0xd8] sm:$0xf]
      %v2688 = vld [vmem:[%s1619 + $0xe0] sm:$0xf0]
      %v2689 = vld [vmem:[%s1619 + $0xe8] sm:$0xf]
      %v2690 = vld [vmem:[%s1619 + $0xf0] sm:$0xf0]
      %v2691 = vld [vmem:[%s1619 + $0xf8] sm:$0xf]
      %v2692 = vld [vmem:[%s1619 + $0x120] sm:$0xf0]
      %v2693 = vld [vmem:[%s1619 + $0x128] sm:$0xf]
      %v2694 = vld [vmem:[%s1619 + $0x130] sm:$0xf0]
      %v2695 = vld [vmem:[%s1619 + $0x138] sm:$0xf]
      %v2696 = vld [vmem:[%s1619 + $0x140] sm:$0xf0]
      %v2697 = vld [vmem:[%s1619 + $0x148] sm:$0xf]
      %v2698 = vld [vmem:[%s1619 + $0x150] sm:$0xf0]
      %v2699 = vld [vmem:[%s1619 + $0x158] sm:$0xf]
      %v2700 = vld [vmem:[%s1619 + $0x160] sm:$0xf0]
      %v2701 = vld [vmem:[%s1619 + $0x168] sm:$0xf]
      %v2702 = vld [vmem:[%s1619 + $0x170] sm:$0xf0]
      %v2703 = vld [vmem:[%s1619 + $0x178] sm:$0xf]
      %v2704 = vld [vmem:[%s1619 + $0x180] sm:$0xf0]
      %v2705 = vld [vmem:[%s1619 + $0x188] sm:$0xf]
      %v2706 = vld [vmem:[%s1619 + $0x190] sm:$0xf0]
      %v2707 = vld [vmem:[%s1619 + $0x198] sm:$0xf]
      %v2708 = vld [vmem:[%s1619 + $0x1a0] sm:$0xf0]
      %v2709 = vld [vmem:[%s1619 + $0x1a8] sm:$0xf]
      %v2710 = vld [vmem:[%s1619 + $0x1b0] sm:$0xf0]
      %v2711 = vld [vmem:[%s1619 + $0x1b8] sm:$0xf]
      %v2712 = vld [vmem:[%s1619 + $0x1c0] sm:$0xf0]
      %v2713 = vld [vmem:[%s1619 + $0x1c8] sm:$0xf]
      %v2714 = vld [vmem:[%s1619 + $0x1d0] sm:$0xf0]
      %v2715 = vld [vmem:[%s1619 + $0x1d8] sm:$0xf]
      %v2716 = vld [vmem:[%s1619 + $0x1e0] sm:$0xf0]
      %v2717 = vld [vmem:[%s1619 + $0x1e8] sm:$0xf]
      %v2718 = vld [vmem:[%s1619 + $0x1f0] sm:$0xf0]
      %v2719 = vld [vmem:[%s1619 + $0x1f8] sm:$0xf]
      %v2720 = vld [vmem:[%s1619 + $0x200] sm:$0xf0]
      %v2721 = vld [vmem:[%s1619 + $0x208] sm:$0xf]
      %v2722 = vld [vmem:[%s1619 + $0x210] sm:$0xf0]
      %v2723 = vld [vmem:[%s1619 + $0x218] sm:$0xf]
      %v2788 = vrot.slane %v2660, 4
      %v2789 = vrot.slane %v2661, 4
      %v2790 = vsel %vm2562, %v2788, %v2789
      %v2791 = vrot.slane %v2662, 4
      %v2792 = vrot.slane %v2663, 4
      %v2793 = vsel %vm2562, %v2791, %v2792
      %v2794 = vrot.slane %v2664, 4
      %v2795 = vrot.slane %v2665, 4
      %v2796 = vsel %vm2562, %v2794, %v2795
      %v2797 = vrot.slane %v2666, 4
      %v2798 = vrot.slane %v2667, 4
      %v2799 = vsel %vm2562, %v2797, %v2798
      %v2800 = vrot.slane %v2668, 4
      %v2801 = vrot.slane %v2669, 4
      %v2802 = vsel %vm2562, %v2800, %v2801
      %v2803 = vrot.slane %v2670, 4
      %v2804 = vrot.slane %v2671, 4
      %v2805 = vsel %vm2562, %v2803, %v2804
      %v2806 = vrot.slane %v2672, 4
      %v2807 = vrot.slane %v2673, 4
      %v2808 = vsel %vm2562, %v2806, %v2807
      %v2809 = vrot.slane %v2674, 4
      %v2810 = vrot.slane %v2675, 4
      %v2811 = vsel %vm2562, %v2809, %v2810
      %v2812 = vrot.slane %v2676, 4
      %v2813 = vrot.slane %v2677, 4
      %v2814 = vsel %vm2562, %v2812, %v2813
      %v2815 = vrot.slane %v2678, 4
      %v2816 = vrot.slane %v2679, 4
      %v2817 = vsel %vm2562, %v2815, %v2816
      %v2818 = vrot.slane %v2680, 4
      %v2819 = vrot.slane %v2681, 4
      %v2820 = vsel %vm2562, %v2818, %v2819
      %v2821 = vrot.slane %v2682, 4
      %v2822 = vrot.slane %v2683, 4
      %v2823 = vsel %vm2562, %v2821, %v2822
      %v2824 = vrot.slane %v2684, 4
      %v2825 = vrot.slane %v2685, 4
      %v2826 = vsel %vm2562, %v2824, %v2825
      %v2827 = vrot.slane %v2686, 4
      %v2828 = vrot.slane %v2687, 4
      %v2829 = vsel %vm2562, %v2827, %v2828
      %v2830 = vrot.slane %v2688, 4
      %v2831 = vrot.slane %v2689, 4
      %v2832 = vsel %vm2562, %v2830, %v2831
      %v2833 = vrot.slane %v2690, 4
      %v2834 = vrot.slane %v2691, 4
      %v2835 = vsel %vm2562, %v2833, %v2834
      %v2836 = vrot.slane %v2692, 4
      %v2837 = vrot.slane %v2693, 4
      %v2838 = vsel %vm2562, %v2836, %v2837
      %v2839 = vrot.slane %v2694, 4
      %v2840 = vrot.slane %v2695, 4
      %v2841 = vsel %vm2562, %v2839, %v2840
      %v2842 = vrot.slane %v2696, 4
      %v2843 = vrot.slane %v2697, 4
      %v2844 = vsel %vm2562, %v2842, %v2843
      %v2845 = vrot.slane %v2698, 4
      %v2846 = vrot.slane %v2699, 4
      %v2847 = vsel %vm2562, %v2845, %v2846
      %v2848 = vrot.slane %v2700, 4
      %v2849 = vrot.slane %v2701, 4
      %v2850 = vsel %vm2562, %v2848, %v2849
      %v2851 = vrot.slane %v2702, 4
      %v2852 = vrot.slane %v2703, 4
      %v2853 = vsel %vm2562, %v2851, %v2852
      %v2854 = vrot.slane %v2704, 4
      %v2855 = vrot.slane %v2705, 4
      %v2856 = vsel %vm2562, %v2854, %v2855
      %v2857 = vrot.slane %v2706, 4
      %v2858 = vrot.slane %v2707, 4
      %v2859 = vsel %vm2562, %v2857, %v2858
      %v2860 = vrot.slane %v2708, 4
      %v2861 = vrot.slane %v2709, 4
      %v2862 = vsel %vm2562, %v2860, %v2861
      %v2863 = vrot.slane %v2710, 4
      %v2864 = vrot.slane %v2711, 4
      %v2865 = vsel %vm2562, %v2863, %v2864
      %v2866 = vrot.slane %v2712, 4
      %v2867 = vrot.slane %v2713, 4
      %v2868 = vsel %vm2562, %v2866, %v2867
      %v2869 = vrot.slane %v2714, 4
      %v2870 = vrot.slane %v2715, 4
      %v2871 = vsel %vm2562, %v2869, %v2870
      %v2872 = vrot.slane %v2716, 4
      %v2873 = vrot.slane %v2717, 4
      %v2874 = vsel %vm2562, %v2872, %v2873
      %v2875 = vrot.slane %v2718, 4
      %v2876 = vrot.slane %v2719, 4
      %v2877 = vsel %vm2562, %v2875, %v2876
      %v2878 = vrot.slane %v2720, 4
      %v2879 = vrot.slane %v2721, 4
      %v2880 = vsel %vm2562, %v2878, %v2879
      %v2881 = vrot.slane %v2722, 4
      %v2882 = vrot.slane %v2723, 4
      %v2883 = vsel %vm2562, %v2881, %v2882
      %s2884 = scalar_lea.vmem %s299, 4
      %v2885 = vld [vmem:[%s2884] sm:$0x7]
      %vm2886 = vcmask 48128
      %v2888 = vsel %vm2886, %v2790, 0
      %v2891 = vsel %vm2886, %v2793, 0
      %v2894 = vsel %vm2886, %v2796, 0
      %v2897 = vsel %vm2886, %v2799, 0
      %v2900 = vsel %vm2886, %v2802, 0
      %v2903 = vsel %vm2886, %v2805, 0
      %v2906 = vsel %vm2886, %v2808, 0
      %v2909 = vsel %vm2886, %v2811, 0
      %v2912 = vsel %vm2886, %v2814, 0
      %v2915 = vsel %vm2886, %v2817, 0
      %v2918 = vsel %vm2886, %v2820, 0
      %v2921 = vsel %vm2886, %v2823, 0
      %v2924 = vsel %vm2886, %v2826, 0
      %v2927 = vsel %vm2886, %v2829, 0
      %v2930 = vsel %vm2886, %v2832, 0
      %v2933 = vsel %vm2886, %v2835, 0
      %v2936 = vsel %vm2886, %v2838, 0
      %v2939 = vsel %vm2886, %v2841, 0
      %v2942 = vsel %vm2886, %v2844, 0
      %v2945 = vsel %vm2886, %v2847, 0
      %v2948 = vsel %vm2886, %v2850, 0
      %v2951 = vsel %vm2886, %v2853, 0
      %v2954 = vsel %vm2886, %v2856, 0
      %v2957 = vsel %vm2886, %v2859, 0
      %v2960 = vsel %vm2886, %v2862, 0
      %v2963 = vsel %vm2886, %v2865, 0
      %v2966 = vsel %vm2886, %v2868, 0
      %v2969 = vsel %vm2886, %v2871, 0
      %v2972 = vsel %vm2886, %v2874, 0
      %v2975 = vsel %vm2886, %v2877, 0
      %v2978 = vsel %vm2886, %v2880, 0
      %v2981 = vsel %vm2886, %v2883, 0
      %vm2983 = vcmask 1042432
      %v2985 = vsel %vm2983, %v2885, 0
      %2987 = vmatprep.subr.bf16.mxu0 0
      %2988 = vmatpush1.bf16.msra.mxu0 %v2985
      %2989 = vmatprep.subr.bf16.mxu0 0
      %2990 = vmatpush1.bf16.msra.mxu0 0
      %2991 = vmatprep.subr.bf16.mxu0 0
      %2992 = vmatpush1.bf16.msra.mxu0 0
      %2993 = vmatprep.subr.bf16.mxu0 0
      %2994 = vmatpush1.bf16.msra.mxu0 0
      %2995 = vmatprep.subr.bf16.mxu0 0
      %2996 = vmatpush1.bf16.msra.mxu0 0
      %2997 = vmatprep.subr.bf16.mxu0 0
      %2998 = vmatpush1.bf16.msra.mxu0 0
      %2999 = vmatprep.subr.bf16.mxu0 0
      %3000 = vmatpush1.bf16.msra.mxu0 0
      %3001 = vmatprep.subr.bf16.mxu0 0
      %3002 = vmatpush1.bf16.msra.mxu0 0
      %3003 = vmatprep.subr.bf16.mxu0 0
      %3004 = vmatpush1.bf16.msra.mxu0 0
      %3005 = vmatprep.subr.bf16.mxu0 0
      %3006 = vmatpush1.bf16.msra.mxu0 0
      %3007 = vmatprep.subr.bf16.mxu0 0
      %3008 = vmatpush1.bf16.msra.mxu0 0
      %3009 = vmatprep.subr.bf16.mxu0 0
      %3010 = vmatpush1.bf16.msra.mxu0 0
      %3011 = vmatprep.subr.bf16.mxu0 0
      %3012 = vmatpush1.bf16.msra.mxu0 0
      %3013 = vmatprep.subr.bf16.mxu0 0
      %3014 = vmatpush1.bf16.msra.mxu0 0
      %3015 = vmatprep.subr.bf16.mxu0 0
      %3016 = vmatpush1.bf16.msra.mxu0 0
      %3017 = vmatprep.subr.bf16.mxu0 0
      %3018 = vmatpush1.bf16.msra.mxu0 0
      %3019 = vmatprep.mubr.bf16.mxu0 0
      %3020 = vmatmul.mubr.bf16.gmra.mrb[0].mxu0 %v2888
      %v3021 = vpop.f32.mrb[0].mxu0
      %v3022 = vadd.f32 0.0, %v3021
      %v3023 = vpop.f32.mrb[0].mxu0
      %v3024 = vpop.f32.mrb[0].mxu0
      %v3025 = vadd.f32 0.0, %v3024
      %v3026 = vpop.f32.mrb[0].mxu0
      %3027 = vmatprep.mubr.bf16.mxu0 0
      %3028 = vmatmul.mubr.bf16.gmra.mrb[0].mxu0 %v2891
      %v3029 = vpop.f32.mrb[0].mxu0
      %v3030 = vadd.f32 0.0, %v3029
      %v3031 = vpop.f32.mrb[0].mxu0
      %v3032 = vpop.f32.mrb[0].mxu0
      %v3033 = vadd.f32 0.0, %v3032
      %v3034 = vpop.f32.mrb[0].mxu0
      %3035 = vmatprep.mubr.bf16.mxu0 0
      %3036 = vmatmul.mubr.bf16.gmra.mrb[0].mxu0 %v2894
      %v3037 = vpop.f32.mrb[0].mxu0
      %v3038 = vadd.f32 0.0, %v3037
      %v3039 = vpop.f32.mrb[0].mxu0
      %v3040 = vpop.f32.mrb[0].mxu0
      %v3041 = vadd.f32 0.0, %v3040
      %v3042 = vpop.f32.mrb[0].mxu0
      %3043 = vmatprep.mubr.bf16.mxu0 0
      %3044 = vmatmul.mubr.bf16.gmra.mrb[0].mxu0 %v2897
      %v3045 = vpop.f32.mrb[0].mxu0
      %v3046 = vadd.f32 0.0, %v3045
      %v3047 = vpop.f32.mrb[0].mxu0
      %v3048 = vpop.f32.mrb[0].mxu0
      %v3049 = vadd.f32 0.0, %v3048
      %v3050 = vpop.f32.mrb[0].mxu0
      %3051 = vmatprep.mubr.bf16.mxu0 0
      %3052 = vmatmul.mubr.bf16.gmra.mrb[0].mxu0 %v2900
      %v3053 = vpop.f32.mrb[0].mxu0
      %v3054 = vadd.f32 0.0, %v3053
      %v3055 = vpop.f32.mrb[0].mxu0
      %v3056 = vpop.f32.mrb[0].mxu0
      %v3057 = vadd.f32 0.0, %v3056
      %v3058 = vpop.f32.mrb[0].mxu0
      %3059 = vmatprep.mubr.bf16.mxu0 0
      %3060 = vmatmul.mubr.bf16.gmra.mrb[0].mxu0 %v2903
      %v3061 = vpop.f32.mrb[0].mxu0
      %v3062 = vadd.f32 0.0, %v3061
      %v3063 = vpop.f32.mrb[0].mxu0
      %v3064 = vpop.f32.mrb[0].mxu0
      %v3065 = vadd.f32 0.0, %v3064
      %v3066 = vpop.f32.mrb[0].mxu0
      %3067 = vmatprep.mubr.bf16.mxu0 0
      %3068 = vmatmul.mubr.bf16.gmra.mrb[0].mxu0 %v2906
      %v3069 = vpop.f32.mrb[0].mxu0
      %v3070 = vadd.f32 0.0, %v3069
      %v3071 = vpop.f32.mrb[0].mxu0
      %v3072 = vpop.f32.mrb[0].mxu0
      %v3073 = vadd.f32 0.0, %v3072
      %v3074 = vpop.f32.mrb[0].mxu0
      %3075 = vmatprep.mubr.bf16.mxu0 0
      %3076 = vmatmul.mubr.bf16.gmra.mrb[0].mxu0 %v2909
      %v3077 = vpop.f32.mrb[0].mxu0
      %v3078 = vadd.f32 0.0, %v3077
      %v3079 = vpop.f32.mrb[0].mxu0
      %v3080 = vpop.f32.mrb[0].mxu0
      %v3081 = vadd.f32 0.0, %v3080
      %v3082 = vpop.f32.mrb[0].mxu0
      %3083 = vmatprep.mubr.bf16.mxu0 0
      %3084 = vmatmul.mubr.bf16.gmra.mrb[0].mxu0 %v2912
      %v3085 = vpop.f32.mrb[0].mxu0
      %v3086 = vadd.f32 0.0, %v3085
      %v3087 = vpop.f32.mrb[0].mxu0
      %v3088 = vpop.f32.mrb[0].mxu0
      %v3089 = vadd.f32 0.0, %v3088
      %v3090 = vpop.f32.mrb[0].mxu0
      %3091 = vmatprep.mubr.bf16.mxu0 0
      %3092 = vmatmul.mubr.bf16.gmra.mrb[0].mxu0 %v2915
      %v3093 = vpop.f32.mrb[0].mxu0
      %v3094 = vadd.f32 0.0, %v3093
      %v3095 = vpop.f32.mrb[0].mxu0
      %v3096 = vpop.f32.mrb[0].mxu0
      %v3097 = vadd.f32 0.0, %v3096
      %v3098 = vpop.f32.mrb[0].mxu0
      %3099 = vmatprep.mubr.bf16.mxu0 0
      %3100 = vmatmul.mubr.bf16.gmra.mrb[0].mxu0 %v2918
      %v3101 = vpop.f32.mrb[0].mxu0
      %v3102 = vadd.f32 0.0, %v3101
      %v3103 = vpop.f32.mrb[0].mxu0
      %v3104 = vpop.f32.mrb[0].mxu0
      %v3105 = vadd.f32 0.0, %v3104
      %v3106 = vpop.f32.mrb[0].mxu0
      %3107 = vmatprep.mubr.bf16.mxu0 0
      %3108 = vmatmul.mubr.bf16.gmra.mrb[0].mxu0 %v2921
      %v3109 = vpop.f32.mrb[0].mxu0
      %v3110 = vadd.f32 0.0, %v3109
      %v3111 = vpop.f32.mrb[0].mxu0
      %v3112 = vpop.f32.mrb[0].mxu0
      %v3113 = vadd.f32 0.0, %v3112
      %v3114 = vpop.f32.mrb[0].mxu0
      %3115 = vmatprep.mubr.bf16.mxu0 0
      %3116 = vmatmul.mubr.bf16.gmra.mrb[0].mxu0 %v2924
      %v3117 = vpop.f32.mrb[0].mxu0
      %v3118 = vadd.f32 0.0, %v3117
      %v3119 = vpop.f32.mrb[0].mxu0
      %v3120 = vpop.f32.mrb[0].mxu0
      %v3121 = vadd.f32 0.0, %v3120
      %v3122 = vpop.f32.mrb[0].mxu0
      %3123 = vmatprep.mubr.bf16.mxu0 0
      %3124 = vmatmul.mubr.bf16.gmra.mrb[0].mxu0 %v2927
      %v3125 = vpop.f32.mrb[0].mxu0
      %v3126 = vadd.f32 0.0, %v3125
      %v3127 = vpop.f32.mrb[0].mxu0
      %v3128 = vpop.f32.mrb[0].mxu0
      %v3129 = vadd.f32 0.0, %v3128
      %v3130 = vpop.f32.mrb[0].mxu0
      %3131 = vmatprep.mubr.bf16.mxu0 0
      %3132 = vmatmul.mubr.bf16.gmra.mrb[0].mxu0 %v2930
      %v3133 = vpop.f32.mrb[0].mxu0
      %v3134 = vadd.f32 0.0, %v3133
      %v3135 = vpop.f32.mrb[0].mxu0
      %v3136 = vpop.f32.mrb[0].mxu0
      %v3137 = vadd.f32 0.0, %v3136
      %v3138 = vpop.f32.mrb[0].mxu0
      %3139 = vmatprep.mubr.bf16.mxu0 0
      %3140 = vmatmul.mubr.bf16.gmra.mrb[0].mxu0 %v2933
      %v3141 = vpop.f32.mrb[0].mxu0
      %v3142 = vadd.f32 0.0, %v3141
      %v3143 = vpop.f32.mrb[0].mxu0
      %v3144 = vpop.f32.mrb[0].mxu0
      %v3145 = vadd.f32 0.0, %v3144
      %v3146 = vpop.f32.mrb[0].mxu0
      %3147 = vmatprep.mubr.bf16.mxu0 0
      %3148 = vmatmul.mubr.bf16.gmra.mrb[0].mxu0 %v2936
      %v3149 = vpop.f32.mrb[0].mxu0
      %v3150 = vadd.f32 0.0, %v3149
      %v3151 = vpop.f32.mrb[0].mxu0
      %v3152 = vpop.f32.mrb[0].mxu0
      %v3153 = vadd.f32 0.0, %v3152
      %v3154 = vpop.f32.mrb[0].mxu0
      %3155 = vmatprep.mubr.bf16.mxu0 0
      %3156 = vmatmul.mubr.bf16.gmra.mrb[0].mxu0 %v2939
      %v3157 = vpop.f32.mrb[0].mxu0
      %v3158 = vadd.f32 0.0, %v3157
      %v3159 = vpop.f32.mrb[0].mxu0
      %v3160 = vpop.f32.mrb[0].mxu0
      %v3161 = vadd.f32 0.0, %v3160
      %v3162 = vpop.f32.mrb[0].mxu0
      %3163 = vmatprep.mubr.bf16.mxu0 0
      %3164 = vmatmul.mubr.bf16.gmra.mrb[0].mxu0 %v2942
      %v3165 = vpop.f32.mrb[0].mxu0
      %v3166 = vadd.f32 0.0, %v3165
      %v3167 = vpop.f32.mrb[0].mxu0
      %v3168 = vpop.f32.mrb[0].mxu0
      %v3169 = vadd.f32 0.0, %v3168
      %v3170 = vpop.f32.mrb[0].mxu0
      %3171 = vmatprep.mubr.bf16.mxu0 0
      %3172 = vmatmul.mubr.bf16.gmra.mrb[0].mxu0 %v2945
      %v3173 = vpop.f32.mrb[0].mxu0
      %v3174 = vadd.f32 0.0, %v3173
      %v3175 = vpop.f32.mrb[0].mxu0
      %v3176 = vpop.f32.mrb[0].mxu0
      %v3177 = vadd.f32 0.0, %v3176
      %v3178 = vpop.f32.mrb[0].mxu0
      %3179 = vmatprep.mubr.bf16.mxu0 0
      %3180 = vmatmul.mubr.bf16.gmra.mrb[0].mxu0 %v2948
      %v3181 = vpop.f32.mrb[0].mxu0
      %v3182 = vadd.f32 0.0, %v3181
      %v3183 = vpop.f32.mrb[0].mxu0
      %v3184 = vpop.f32.mrb[0].mxu0
      %v3185 = vadd.f32 0.0, %v3184
      %v3186 = vpop.f32.mrb[0].mxu0
      %3187 = vmatprep.mubr.bf16.mxu0 0
      %3188 = vmatmul.mubr.bf16.gmra.mrb[0].mxu0 %v2951
      %v3189 = vpop.f32.mrb[0].mxu0
      %v3190 = vadd.f32 0.0, %v3189
      %v3191 = vpop.f32.mrb[0].mxu0
      %v3192 = vpop.f32.mrb[0].mxu0
      %v3193 = vadd.f32 0.0, %v3192
      %v3194 = vpop.f32.mrb[0].mxu0
      %3195 = vmatprep.mubr.bf16.mxu0 0
      %3196 = vmatmul.mubr.bf16.gmra.mrb[0].mxu0 %v2954
      %v3197 = vpop.f32.mrb[0].mxu0
      %v3198 = vadd.f32 0.0, %v3197
      %v3199 = vpop.f32.mrb[0].mxu0
      %v3200 = vpop.f32.mrb[0].mxu0
      %v3201 = vadd.f32 0.0, %v3200
      %v3202 = vpop.f32.mrb[0].mxu0
      %3203 = vmatprep.mubr.bf16.mxu0 0
      %3204 = vmatmul.mubr.bf16.gmra.mrb[0].mxu0 %v2957
      %v3205 = vpop.f32.mrb[0].mxu0
      %v3206 = vadd.f32 0.0, %v3205
      %v3207 = vpop.f32.mrb[0].mxu0
      %v3208 = vpop.f32.mrb[0].mxu0
      %v3209 = vadd.f32 0.0, %v3208
      %v3210 = vpop.f32.mrb[0].mxu0
      %3211 = vmatprep.mubr.bf16.mxu0 0
      %3212 = vmatmul.mubr.bf16.gmra.mrb[0].mxu0 %v2960
      %v3213 = vpop.f32.mrb[0].mxu0
      %v3214 = vadd.f32 0.0, %v3213
      %v3215 = vpop.f32.mrb[0].mxu0
      %v3216 = vpop.f32.mrb[0].mxu0
      %v3217 = vadd.f32 0.0, %v3216
      %v3218 = vpop.f32.mrb[0].mxu0
      %3219 = vmatprep.mubr.bf16.mxu0 0
      %3220 = vmatmul.mubr.bf16.gmra.mrb[0].mxu0 %v2963
      %v3221 = vpop.f32.mrb[0].mxu0
      %v3222 = vadd.f32 0.0, %v3221
      %v3223 = vpop.f32.mrb[0].mxu0
      %v3224 = vpop.f32.mrb[0].mxu0
      %v3225 = vadd.f32 0.0, %v3224
      %v3226 = vpop.f32.mrb[0].mxu0
      %3227 = vmatprep.mubr.bf16.mxu0 0
      %3228 = vmatmul.mubr.bf16.gmra.mrb[0].mxu0 %v2966
      %v3229 = vpop.f32.mrb[0].mxu0
      %v3230 = vadd.f32 0.0, %v3229
      %v3231 = vpop.f32.mrb[0].mxu0
      %v3232 = vpop.f32.mrb[0].mxu0
      %v3233 = vadd.f32 0.0, %v3232
      %v3234 = vpop.f32.mrb[0].mxu0
      %3235 = vmatprep.mubr.bf16.mxu0 0
      %3236 = vmatmul.mubr.bf16.gmra.mrb[0].mxu0 %v2969
      %v3237 = vpop.f32.mrb[0].mxu0
      %v3238 = vadd.f32 0.0, %v3237
      %v3239 = vpop.f32.mrb[0].mxu0
      %v3240 = vpop.f32.mrb[0].mxu0
      %v3241 = vadd.f32 0.0, %v3240
      %v3242 = vpop.f32.mrb[0].mxu0
      %3243 = vmatprep.mubr.bf16.mxu0 0
      %3244 = vmatmul.mubr.bf16.gmra.mrb[0].mxu0 %v2972
      %v3245 = vpop.f32.mrb[0].mxu0
      %v3246 = vadd.f32 0.0, %v3245
      %v3247 = vpop.f32.mrb[0].mxu0
      %v3248 = vpop.f32.mrb[0].mxu0
      %v3249 = vadd.f32 0.0, %v3248
      %v3250 = vpop.f32.mrb[0].mxu0
      %3251 = vmatprep.mubr.bf16.mxu0 0
      %3252 = vmatmul.mubr.bf16.gmra.mrb[0].mxu0 %v2975
      %v3253 = vpop.f32.mrb[0].mxu0
      %v3254 = vadd.f32 0.0, %v3253
      %v3255 = vpop.f32.mrb[0].mxu0
      %v3256 = vpop.f32.mrb[0].mxu0
      %v3257 = vadd.f32 0.0, %v3256
      %v3258 = vpop.f32.mrb[0].mxu0
      %3259 = vmatprep.mubr.bf16.mxu0 0
      %3260 = vmatmul.mubr.bf16.gmra.mrb[0].mxu0 %v2978
      %v3261 = vpop.f32.mrb[0].mxu0
      %v3262 = vadd.f32 0.0, %v3261
      %v3263 = vpop.f32.mrb[0].mxu0
      %v3264 = vpop.f32.mrb[0].mxu0
      %v3265 = vadd.f32 0.0, %v3264
      %v3266 = vpop.f32.mrb[0].mxu0
      %3267 = vmatprep.mubr.bf16.mxu0 0
      %3268 = vmatmul.mubr.bf16.gmra.mrb[0].mxu0 %v2981
      %v3269 = vpop.f32.mrb[0].mxu0
      %v3270 = vadd.f32 0.0, %v3269
      %v3271 = vpop.f32.mrb[0].mxu0
      %v3272 = vpop.f32.mrb[0].mxu0
      %v3273 = vadd.f32 0.0, %v3272
      %v3274 = vpop.f32.mrb[0].mxu0
      %3275 = vdwg.mxu0
      %s3276 = scalar_lea.vmem [#allocation2], 32
      %v3277 = vld [vmem:[%s3276] sm:$0xf0]
      %v3278 = vld [vmem:[%s3276 + $0x8] sm:$0xf]
      %v3279 = vld [vmem:[%s3276 + $0x10] sm:$0xf0]
      %v3280 = vld [vmem:[%s3276 + $0x18] sm:$0xf]
      %v3281 = vld [vmem:[%s3276 + $0x20] sm:$0xf0]
      %v3282 = vld [vmem:[%s3276 + $0x28] sm:$0xf]
      %v3283 = vld [vmem:[%s3276 + $0x30] sm:$0xf0]
      %v3284 = vld [vmem:[%s3276 + $0x38] sm:$0xf]
      %v3285 = vld [vmem:[%s3276 + $0x40] sm:$0xf0]
      %v3286 = vld [vmem:[%s3276 + $0x48] sm:$0xf]
      %v3287 = vld [vmem:[%s3276 + $0x50] sm:$0xf0]
      %v3288 = vld [vmem:[%s3276 + $0x58] sm:$0xf]
      %v3289 = vld [vmem:[%s3276 + $0x60] sm:$0xf0]
      %v3290 = vld [vmem:[%s3276 + $0x68] sm:$0xf]
      %v3291 = vld [vmem:[%s3276 + $0x70] sm:$0xf0]
      %v3292 = vld [vmem:[%s3276 + $0x78] sm:$0xf]
      %v3293 = vld [vmem:[%s3276 + $0x80] sm:$0xf0]
      %v3294 = vld [vmem:[%s3276 + $0x88] sm:$0xf]
      %v3295 = vld [vmem:[%s3276 + $0x90] sm:$0xf0]
      %v3296 = vld [vmem:[%s3276 + $0x98] sm:$0xf]
      %v3297 = vld [vmem:[%s3276 + $0xa0] sm:$0xf0]
      %v3298 = vld [vmem:[%s3276 + $0xa8] sm:$0xf]
      %v3299 = vld [vmem:[%s3276 + $0xb0] sm:$0xf0]
      %v3300 = vld [vmem:[%s3276 + $0xb8] sm:$0xf]
      %v3301 = vld [vmem:[%s3276 + $0xc0] sm:$0xf0]
      %v3302 = vld [vmem:[%s3276 + $0xc8] sm:$0xf]
      %v3303 = vld [vmem:[%s3276 + $0xd0] sm:$0xf0]
      %v3304 = vld [vmem:[%s3276 + $0xd8] sm:$0xf]
      %v3305 = vld [vmem:[%s3276 + $0xe0] sm:$0xf0]
      %v3306 = vld [vmem:[%s3276 + $0xe8] sm:$0xf]
      %v3307 = vld [vmem:[%s3276 + $0xf0] sm:$0xf0]
      %v3308 = vld [vmem:[%s3276 + $0xf8] sm:$0xf]
      %v3309 = vld [vmem:[%s3276 + $0x120] sm:$0xf0]
      %v3310 = vld [vmem:[%s3276 + $0x128] sm:$0xf]
      %v3311 = vld [vmem:[%s3276 + $0x130] sm:$0xf0]
      %v3312 = vld [vmem:[%s3276 + $0x138] sm:$0xf]
      %v3313 = vld [vmem:[%s3276 + $0x140] sm:$0xf0]
      %v3314 = vld [vmem:[%s3276 + $0x148] sm:$0xf]
      %v3315 = vld [vmem:[%s3276 + $0x150] sm:$0xf0]
      %v3316 = vld [vmem:[%s3276 + $0x158] sm:$0xf]
      %v3317 = vld [vmem:[%s3276 + $0x160] sm:$0xf0]
      %v3318 = vld [vmem:[%s3276 + $0x168] sm:$0xf]
      %v3319 = vld [vmem:[%s3276 + $0x170] sm:$0xf0]
      %v3320 = vld [vmem:[%s3276 + $0x178] sm:$0xf]
      %v3321 = vld [vmem:[%s3276 + $0x180] sm:$0xf0]
      %v3322 = vld [vmem:[%s3276 + $0x188] sm:$0xf]
      %v3323 = vld [vmem:[%s3276 + $0x190] sm:$0xf0]
      %v3324 = vld [vmem:[%s3276 + $0x198] sm:$0xf]
      %v3325 = vld [vmem:[%s3276 + $0x1a0] sm:$0xf0]
      %v3326 = vld [vmem:[%s3276 + $0x1a8] sm:$0xf]
      %v3327 = vld [vmem:[%s3276 + $0x1b0] sm:$0xf0]
      %v3328 = vld [vmem:[%s3276 + $0x1b8] sm:$0xf]
      %v3329 = vld [vmem:[%s3276 + $0x1c0] sm:$0xf0]
      %v3330 = vld [vmem:[%s3276 + $0x1c8] sm:$0xf]
      %v3331 = vld [vmem:[%s3276 + $0x1d0] sm:$0xf0]
      %v3332 = vld [vmem:[%s3276 + $0x1d8] sm:$0xf]
      %v3333 = vld [vmem:[%s3276 + $0x1e0] sm:$0xf0]
      %v3334 = vld [vmem:[%s3276 + $0x1e8] sm:$0xf]
      %v3335 = vld [vmem:[%s3276 + $0x1f0] sm:$0xf0]
      %v3336 = vld [vmem:[%s3276 + $0x1f8] sm:$0xf]
      %v3337 = vld [vmem:[%s3276 + $0x200] sm:$0xf0]
      %v3338 = vld [vmem:[%s3276 + $0x208] sm:$0xf]
      %v3339 = vld [vmem:[%s3276 + $0x210] sm:$0xf0]
      %v3340 = vld [vmem:[%s3276 + $0x218] sm:$0xf]
      %v3405 = vrot.slane %v3277, 4
      %v3406 = vrot.slane %v3278, 4
      %v3407 = vsel %vm2562, %v3405, %v3406
      %v3408 = vrot.slane %v3279, 4
      %v3409 = vrot.slane %v3280, 4
      %v3410 = vsel %vm2562, %v3408, %v3409
      %v3411 = vrot.slane %v3281, 4
      %v3412 = vrot.slane %v3282, 4
      %v3413 = vsel %vm2562, %v3411, %v3412
      %v3414 = vrot.slane %v3283, 4
      %v3415 = vrot.slane %v3284, 4
      %v3416 = vsel %vm2562, %v3414, %v3415
      %v3417 = vrot.slane %v3285, 4
      %v3418 = vrot.slane %v3286, 4
      %v3419 = vsel %vm2562, %v3417, %v3418
      %v3420 = vrot.slane %v3287, 4
      %v3421 = vrot.slane %v3288, 4
      %v3422 = vsel %vm2562, %v3420, %v3421
      %v3423 = vrot.slane %v3289, 4
      %v3424 = vrot.slane %v3290, 4
      %v3425 = vsel %vm2562, %v3423, %v3424
      %v3426 = vrot.slane %v3291, 4
      %v3427 = vrot.slane %v3292, 4
      %v3428 = vsel %vm2562, %v3426, %v3427
      %v3429 = vrot.slane %v3293, 4
      %v3430 = vrot.slane %v3294, 4
      %v3431 = vsel %vm2562, %v3429, %v3430
      %v3432 = vrot.slane %v3295, 4
      %v3433 = vrot.slane %v3296, 4
      %v3434 = vsel %vm2562, %v3432, %v3433
      %v3435 = vrot.slane %v3297, 4
      %v3436 = vrot.slane %v3298, 4
      %v3437 = vsel %vm2562, %v3435, %v3436
      %v3438 = vrot.slane %v3299, 4
      %v3439 = vrot.slane %v3300, 4
      %v3440 = vsel %vm2562, %v3438, %v3439
      %v3441 = vrot.slane %v3301, 4
      %v3442 = vrot.slane %v3302, 4
      %v3443 = vsel %vm2562, %v3441, %v3442
      %v3444 = vrot.slane %v3303, 4
      %v3445 = vrot.slane %v3304, 4
      %v3446 = vsel %vm2562, %v3444, %v3445
      %v3447 = vrot.slane %v3305, 4
      %v3448 = vrot.slane %v3306, 4
      %v3449 = vsel %vm2562, %v3447, %v3448
      %v3450 = vrot.slane %v3307, 4
      %v3451 = vrot.slane %v3308, 4
      %v3452 = vsel %vm2562, %v3450, %v3451
      %v3453 = vrot.slane %v3309, 4
      %v3454 = vrot.slane %v3310, 4
      %v3455 = vsel %vm2562, %v3453, %v3454
      %v3456 = vrot.slane %v3311, 4
      %v3457 = vrot.slane %v3312, 4
      %v3458 = vsel %vm2562, %v3456, %v3457
      %v3459 = vrot.slane %v3313, 4
      %v3460 = vrot.slane %v3314, 4
      %v3461 = vsel %vm2562, %v3459, %v3460
      %v3462 = vrot.slane %v3315, 4
      %v3463 = vrot.slane %v3316, 4
      %v3464 = vsel %vm2562, %v3462, %v3463
      %v3465 = vrot.slane %v3317, 4
      %v3466 = vrot.slane %v3318, 4
      %v3467 = vsel %vm2562, %v3465, %v3466
      %v3468 = vrot.slane %v3319, 4
      %v3469 = vrot.slane %v3320, 4
      %v3470 = vsel %vm2562, %v3468, %v3469
      %v3471 = vrot.slane %v3321, 4
      %v3472 = vrot.slane %v3322, 4
      %v3473 = vsel %vm2562, %v3471, %v3472
      %v3474 = vrot.slane %v3323, 4
      %v3475 = vrot.slane %v3324, 4
      %v3476 = vsel %vm2562, %v3474, %v3475
      %v3477 = vrot.slane %v3325, 4
      %v3478 = vrot.slane %v3326, 4
      %v3479 = vsel %vm2562, %v3477, %v3478
      %v3480 = vrot.slane %v3327, 4
      %v3481 = vrot.slane %v3328, 4
      %v3482 = vsel %vm2562, %v3480, %v3481
      %v3483 = vrot.slane %v3329, 4
      %v3484 = vrot.slane %v3330, 4
      %v3485 = vsel %vm2562, %v3483, %v3484
      %v3486 = vrot.slane %v3331, 4
      %v3487 = vrot.slane %v3332, 4
      %v3488 = vsel %vm2562, %v3486, %v3487
      %v3489 = vrot.slane %v3333, 4
      %v3490 = vrot.slane %v3334, 4
      %v3491 = vsel %vm2562, %v3489, %v3490
      %v3492 = vrot.slane %v3335, 4
      %v3493 = vrot.slane %v3336, 4
      %v3494 = vsel %vm2562, %v3492, %v3493
      %v3495 = vrot.slane %v3337, 4
      %v3496 = vrot.slane %v3338, 4
      %v3497 = vsel %vm2562, %v3495, %v3496
      %v3498 = vrot.slane %v3339, 4
      %v3499 = vrot.slane %v3340, 4
      %v3500 = vsel %vm2562, %v3498, %v3499
      %s3501 = scalar_lea.vmem %s299, 8
      %v3502 = vld [vmem:[%s3501] sm:$0x7]
      %v3504 = vsel %vm2886, %v3407, 0
      %v3507 = vsel %vm2886, %v3410, 0
      %v3510 = vsel %vm2886, %v3413, 0
      %v3513 = vsel %vm2886, %v3416, 0
      %v3516 = vsel %vm2886, %v3419, 0
      %v3519 = vsel %vm2886, %v3422, 0
      %v3522 = vsel %vm2886, %v3425, 0
      %v3525 = vsel %vm2886, %v3428, 0
      %v3528 = vsel %vm2886, %v3431, 0
      %v3531 = vsel %vm2886, %v3434, 0
      %v3534 = vsel %vm2886, %v3437, 0
      %v3537 = vsel %vm2886, %v3440, 0
      %v3540 = vsel %vm2886, %v3443, 0
      %v3543 = vsel %vm2886, %v3446, 0
      %v3546 = vsel %vm2886, %v3449, 0
      %v3549 = vsel %vm2886, %v3452, 0
      %v3552 = vsel %vm2886, %v3455, 0
      %v3555 = vsel %vm2886, %v3458, 0
      %v3558 = vsel %vm2886, %v3461, 0
      %v3561 = vsel %vm2886, %v3464, 0
      %v3564 = vsel %vm2886, %v3467, 0
      %v3567 = vsel %vm2886, %v3470, 0
      %v3570 = vsel %vm2886, %v3473, 0
      %v3573 = vsel %vm2886, %v3476, 0
      %v3576 = vsel %vm2886, %v3479, 0
      %v3579 = vsel %vm2886, %v3482, 0
      %v3582 = vsel %vm2886, %v3485, 0
      %v3585 = vsel %vm2886, %v3488, 0
      %v3588 = vsel %vm2886, %v3491, 0
      %v3591 = vsel %vm2886, %v3494, 0
      %v3594 = vsel %vm2886, %v3497, 0
      %v3597 = vsel %vm2886, %v3500, 0
      %v3600 = vsel %vm2983, %v3502, 0
      %3602 = vmatprep.subr.bf16.mxu0 0
      %3603 = vmatpush1.bf16.msra.mxu0 %v3600
      %3604 = vmatprep.subr.bf16.mxu0 0
      %3605 = vmatpush1.bf16.msra.mxu0 0
      %3606 = vmatprep.subr.bf16.mxu0 0
      %3607 = vmatpush1.bf16.msra.mxu0 0
      %3608 = vmatprep.subr.bf16.mxu0 0
      %3609 = vmatpush1.bf16.msra.mxu0 0
      %3610 = vmatprep.subr.bf16.mxu0 0
      %3611 = vmatpush1.bf16.msra.mxu0 0
      %3612 = vmatprep.subr.bf16.mxu0 0
      %3613 = vmatpush1.bf16.msra.mxu0 0
      %3614 = vmatprep.subr.bf16.mxu0 0
      %3615 = vmatpush1.bf16.msra.mxu0 0
      %3616 = vmatprep.subr.bf16.mxu0 0
      %3617 = vmatpush1.bf16.msra.mxu0 0
      %3618 = vmatprep.subr.bf16.mxu0 0
      %3619 = vmatpush1.bf16.msra.mxu0 0
      %3620 = vmatprep.subr.bf16.mxu0 0
      %3621 = vmatpush1.bf16.msra.mxu0 0
      %3622 = vmatprep.subr.bf16.mxu0 0
      %3623 = vmatpush1.bf16.msra.mxu0 0
      %3624 = vmatprep.subr.bf16.mxu0 0
      %3625 = vmatpush1.bf16.msra.mxu0 0
      %3626 = vmatprep.subr.bf16.mxu0 0
      %3627 = vmatpush1.bf16.msra.mxu0 0
      %3628 = vmatprep.subr.bf16.mxu0 0
      %3629 = vmatpush1.bf16.msra.mxu0 0
      %3630 = vmatprep.subr.bf16.mxu0 0
      %3631 = vmatpush1.bf16.msra.mxu0 0
      %3632 = vmatprep.subr.bf16.mxu0 0
      %3633 = vmatpush1.bf16.msra.mxu0 0
      %3634 = vmatprep.mubr.bf16.mxu0 0
      %3635 = vmatmul.mubr.bf16.gmra.mrb[0].mxu0 %v3504
      %v3636 = vpop.f32.mrb[0].mxu0
      %v3637 = vadd.f32 0.0, %v3636
      %v3638 = vpop.f32.mrb[0].mxu0
      %v3639 = vpop.f32.mrb[0].mxu0
      %v3640 = vadd.f32 0.0, %v3639
      %v3641 = vpop.f32.mrb[0].mxu0
      %3642 = vmatprep.mubr.bf16.mxu0 0
      %3643 = vmatmul.mubr.bf16.gmra.mrb[0].mxu0 %v3507
      %v3644 = vpop.f32.mrb[0].mxu0
      %v3645 = vadd.f32 0.0, %v3644
      %v3646 = vpop.f32.mrb[0].mxu0
      %v3647 = vpop.f32.mrb[0].mxu0
      %v3648 = vadd.f32 0.0, %v3647
      %v3649 = vpop.f32.mrb[0].mxu0
      %3650 = vmatprep.mubr.bf16.mxu0 0
      %3651 = vmatmul.mubr.bf16.gmra.mrb[0].mxu0 %v3510
      %v3652 = vpop.f32.mrb[0].mxu0
      %v3653 = vadd.f32 0.0, %v3652
      %v3654 = vpop.f32.mrb[0].mxu0
      %v3655 = vpop.f32.mrb[0].mxu0
      %v3656 = vadd.f32 0.0, %v3655
      %v3657 = vpop.f32.mrb[0].mxu0
      %3658 = vmatprep.mubr.bf16.mxu0 0
      %3659 = vmatmul.mubr.bf16.gmra.mrb[0].mxu0 %v3513
      %v3660 = vpop.f32.mrb[0].mxu0
      %v3661 = vadd.f32 0.0, %v3660
      %v3662 = vpop.f32.mrb[0].mxu0
      %v3663 = vpop.f32.mrb[0].mxu0
      %v3664 = vadd.f32 0.0, %v3663
      %v3665 = vpop.f32.mrb[0].mxu0
      %3666 = vmatprep.mubr.bf16.mxu0 0
      %3667 = vmatmul.mubr.bf16.gmra.mrb[0].mxu0 %v3516
      %v3668 = vpop.f32.mrb[0].mxu0
      %v3669 = vadd.f32 0.0, %v3668
      %v3670 = vpop.f32.mrb[0].mxu0
      %v3671 = vpop.f32.mrb[0].mxu0
      %v3672 = vadd.f32 0.0, %v3671
      %v3673 = vpop.f32.mrb[0].mxu0
      %3674 = vmatprep.mubr.bf16.mxu0 0
      %3675 = vmatmul.mubr.bf16.gmra.mrb[0].mxu0 %v3519
      %v3676 = vpop.f32.mrb[0].mxu0
      %v3677 = vadd.f32 0.0, %v3676
      %v3678 = vpop.f32.mrb[0].mxu0
      %v3679 = vpop.f32.mrb[0].mxu0
      %v3680 = vadd.f32 0.0, %v3679
      %v3681 = vpop.f32.mrb[0].mxu0
      %3682 = vmatprep.mubr.bf16.mxu0 0
      %3683 = vmatmul.mubr.bf16.gmra.mrb[0].mxu0 %v3522
      %v3684 = vpop.f32.mrb[0].mxu0
      %v3685 = vadd.f32 0.0, %v3684
      %v3686 = vpop.f32.mrb[0].mxu0
      %v3687 = vpop.f32.mrb[0].mxu0
      %v3688 = vadd.f32 0.0, %v3687
      %v3689 = vpop.f32.mrb[0].mxu0
      %3690 = vmatprep.mubr.bf16.mxu0 0
      %3691 = vmatmul.mubr.bf16.gmra.mrb[0].mxu0 %v3525
      %v3692 = vpop.f32.mrb[0].mxu0
      %v3693 = vadd.f32 0.0, %v3692
      %v3694 = vpop.f32.mrb[0].mxu0
      %v3695 = vpop.f32.mrb[0].mxu0
      %v3696 = vadd.f32 0.0, %v3695
      %v3697 = vpop.f32.mrb[0].mxu0
      %3698 = vmatprep.mubr.bf16.mxu0 0
      %3699 = vmatmul.mubr.bf16.gmra.mrb[0].mxu0 %v3528
      %v3700 = vpop.f32.mrb[0].mxu0
      %v3701 = vadd.f32 0.0, %v3700
      %v3702 = vpop.f32.mrb[0].mxu0
      %v3703 = vpop.f32.mrb[0].mxu0
      %v3704 = vadd.f32 0.0, %v3703
      %v3705 = vpop.f32.mrb[0].mxu0
      %3706 = vmatprep.mubr.bf16.mxu0 0
      %3707 = vmatmul.mubr.bf16.gmra.mrb[0].mxu0 %v3531
      %v3708 = vpop.f32.mrb[0].mxu0
      %v3709 = vadd.f32 0.0, %v3708
      %v3710 = vpop.f32.mrb[0].mxu0
      %v3711 = vpop.f32.mrb[0].mxu0
      %v3712 = vadd.f32 0.0, %v3711
      %v3713 = vpop.f32.mrb[0].mxu0
      %3714 = vmatprep.mubr.bf16.mxu0 0
      %3715 = vmatmul.mubr.bf16.gmra.mrb[0].mxu0 %v3534
      %v3716 = vpop.f32.mrb[0].mxu0
      %v3717 = vadd.f32 0.0, %v3716
      %v3718 = vpop.f32.mrb[0].mxu0
      %v3719 = vpop.f32.mrb[0].mxu0
      %v3720 = vadd.f32 0.0, %v3719
      %v3721 = vpop.f32.mrb[0].mxu0
      %3722 = vmatprep.mubr.bf16.mxu0 0
      %3723 = vmatmul.mubr.bf16.gmra.mrb[0].mxu0 %v3537
      %v3724 = vpop.f32.mrb[0].mxu0
      %v3725 = vadd.f32 0.0, %v3724
      %v3726 = vpop.f32.mrb[0].mxu0
      %v3727 = vpop.f32.mrb[0].mxu0
      %v3728 = vadd.f32 0.0, %v3727
      %v3729 = vpop.f32.mrb[0].mxu0
      %3730 = vmatprep.mubr.bf16.mxu0 0
      %3731 = vmatmul.mubr.bf16.gmra.mrb[0].mxu0 %v3540
      %v3732 = vpop.f32.mrb[0].mxu0
      %v3733 = vadd.f32 0.0, %v3732
      %v3734 = vpop.f32.mrb[0].mxu0
      %v3735 = vpop.f32.mrb[0].mxu0
      %v3736 = vadd.f32 0.0, %v3735
      %v3737 = vpop.f32.mrb[0].mxu0
      %3738 = vmatprep.mubr.bf16.mxu0 0
      %3739 = vmatmul.mubr.bf16.gmra.mrb[0].mxu0 %v3543
      %v3740 = vpop.f32.mrb[0].mxu0
      %v3741 = vadd.f32 0.0, %v3740
      %v3742 = vpop.f32.mrb[0].mxu0
      %v3743 = vpop.f32.mrb[0].mxu0
      %v3744 = vadd.f32 0.0, %v3743
      %v3745 = vpop.f32.mrb[0].mxu0
      %3746 = vmatprep.mubr.bf16.mxu0 0
      %3747 = vmatmul.mubr.bf16.gmra.mrb[0].mxu0 %v3546
      %v3748 = vpop.f32.mrb[0].mxu0
      %v3749 = vadd.f32 0.0, %v3748
      %v3750 = vpop.f32.mrb[0].mxu0
      %v3751 = vpop.f32.mrb[0].mxu0
      %v3752 = vadd.f32 0.0, %v3751
      %v3753 = vpop.f32.mrb[0].mxu0
      %3754 = vmatprep.mubr.bf16.mxu0 0
      %3755 = vmatmul.mubr.bf16.gmra.mrb[0].mxu0 %v3549
      %v3756 = vpop.f32.mrb[0].mxu0
      %v3757 = vadd.f32 0.0, %v3756
      %v3758 = vpop.f32.mrb[0].mxu0
      %v3759 = vpop.f32.mrb[0].mxu0
      %v3760 = vadd.f32 0.0, %v3759
      %v3761 = vpop.f32.mrb[0].mxu0
      %3762 = vmatprep.mubr.bf16.mxu0 0
      %3763 = vmatmul.mubr.bf16.gmra.mrb[0].mxu0 %v3552
      %v3764 = vpop.f32.mrb[0].mxu0
      %v3765 = vadd.f32 0.0, %v3764
      %v3766 = vpop.f32.mrb[0].mxu0
      %v3767 = vpop.f32.mrb[0].mxu0
      %v3768 = vadd.f32 0.0, %v3767
      %v3769 = vpop.f32.mrb[0].mxu0
      %3770 = vmatprep.mubr.bf16.mxu0 0
      %3771 = vmatmul.mubr.bf16.gmra.mrb[0].mxu0 %v3555
      %v3772 = vpop.f32.mrb[0].mxu0
      %v3773 = vadd.f32 0.0, %v3772
      %v3774 = vpop.f32.mrb[0].mxu0
      %v3775 = vpop.f32.mrb[0].mxu0
      %v3776 = vadd.f32 0.0, %v3775
      %v3777 = vpop.f32.mrb[0].mxu0
      %3778 = vmatprep.mubr.bf16.mxu0 0
      %3779 = vmatmul.mubr.bf16.gmra.mrb[0].mxu0 %v3558
      %v3780 = vpop.f32.mrb[0].mxu0
      %v3781 = vadd.f32 0.0, %v3780
      %v3782 = vpop.f32.mrb[0].mxu0
      %v3783 = vpop.f32.mrb[0].mxu0
      %v3784 = vadd.f32 0.0, %v3783
      %v3785 = vpop.f32.mrb[0].mxu0
      %3786 = vmatprep.mubr.bf16.mxu0 0
      %3787 = vmatmul.mubr.bf16.gmra.mrb[0].mxu0 %v3561
      %v3788 = vpop.f32.mrb[0].mxu0
      %v3789 = vadd.f32 0.0, %v3788
      %v3790 = vpop.f32.mrb[0].mxu0
      %v3791 = vpop.f32.mrb[0].mxu0
      %v3792 = vadd.f32 0.0, %v3791
      %v3793 = vpop.f32.mrb[0].mxu0
      %3794 = vmatprep.mubr.bf16.mxu0 0
      %3795 = vmatmul.mubr.bf16.gmra.mrb[0].mxu0 %v3564
      %v3796 = vpop.f32.mrb[0].mxu0
      %v3797 = vadd.f32 0.0, %v3796
      %v3798 = vpop.f32.mrb[0].mxu0
      %v3799 = vpop.f32.mrb[0].mxu0
      %v3800 = vadd.f32 0.0, %v3799
      %v3801 = vpop.f32.mrb[0].mxu0
      %3802 = vmatprep.mubr.bf16.mxu0 0
      %3803 = vmatmul.mubr.bf16.gmra.mrb[0].mxu0 %v3567
      %v3804 = vpop.f32.mrb[0].mxu0
      %v3805 = vadd.f32 0.0, %v3804
      %v3806 = vpop.f32.mrb[0].mxu0
      %v3807 = vpop.f32.mrb[0].mxu0
      %v3808 = vadd.f32 0.0, %v3807
      %v3809 = vpop.f32.mrb[0].mxu0
      %3810 = vmatprep.mubr.bf16.mxu0 0
      %3811 = vmatmul.mubr.bf16.gmra.mrb[0].mxu0 %v3570
      %v3812 = vpop.f32.mrb[0].mxu0
      %v3813 = vadd.f32 0.0, %v3812
      %v3814 = vpop.f32.mrb[0].mxu0
      %v3815 = vpop.f32.mrb[0].mxu0
      %v3816 = vadd.f32 0.0, %v3815
      %v3817 = vpop.f32.mrb[0].mxu0
      %3818 = vmatprep.mubr.bf16.mxu0 0
      %3819 = vmatmul.mubr.bf16.gmra.mrb[0].mxu0 %v3573
      %v3820 = vpop.f32.mrb[0].mxu0
      %v3821 = vadd.f32 0.0, %v3820
      %v3822 = vpop.f32.mrb[0].mxu0
      %v3823 = vpop.f32.mrb[0].mxu0
      %v3824 = vadd.f32 0.0, %v3823
      %v3825 = vpop.f32.mrb[0].mxu0
      %3826 = vmatprep.mubr.bf16.mxu0 0
      %3827 = vmatmul.mubr.bf16.gmra.mrb[0].mxu0 %v3576
      %v3828 = vpop.f32.mrb[0].mxu0
      %v3829 = vadd.f32 0.0, %v3828
      %v3830 = vpop.f32.mrb[0].mxu0
      %v3831 = vpop.f32.mrb[0].mxu0
      %v3832 = vadd.f32 0.0, %v3831
      %v3833 = vpop.f32.mrb[0].mxu0
      %3834 = vmatprep.mubr.bf16.mxu0 0
      %3835 = vmatmul.mubr.bf16.gmra.mrb[0].mxu0 %v3579
      %v3836 = vpop.f32.mrb[0].mxu0
      %v3837 = vadd.f32 0.0, %v3836
      %v3838 = vpop.f32.mrb[0].mxu0
      %v3839 = vpop.f32.mrb[0].mxu0
      %v3840 = vadd.f32 0.0, %v3839
      %v3841 = vpop.f32.mrb[0].mxu0
      %3842 = vmatprep.mubr.bf16.mxu0 0
      %3843 = vmatmul.mubr.bf16.gmra.mrb[0].mxu0 %v3582
      %v3844 = vpop.f32.mrb[0].mxu0
      %v3845 = vadd.f32 0.0, %v3844
      %v3846 = vpop.f32.mrb[0].mxu0
      %v3847 = vpop.f32.mrb[0].mxu0
      %v3848 = vadd.f32 0.0, %v3847
      %v3849 = vpop.f32.mrb[0].mxu0
      %3850 = vmatprep.mubr.bf16.mxu0 0
      %3851 = vmatmul.mubr.bf16.gmra.mrb[0].mxu0 %v3585
      %v3852 = vpop.f32.mrb[0].mxu0
      %v3853 = vadd.f32 0.0, %v3852
      %v3854 = vpop.f32.mrb[0].mxu0
      %v3855 = vpop.f32.mrb[0].mxu0
      %v3856 = vadd.f32 0.0, %v3855
      %v3857 = vpop.f32.mrb[0].mxu0
      %3858 = vmatprep.mubr.bf16.mxu0 0
      %3859 = vmatmul.mubr.bf16.gmra.mrb[0].mxu0 %v3588
      %v3860 = vpop.f32.mrb[0].mxu0
      %v3861 = vadd.f32 0.0, %v3860
      %v3862 = vpop.f32.mrb[0].mxu0
      %v3863 = vpop.f32.mrb[0].mxu0
      %v3864 = vadd.f32 0.0, %v3863
      %v3865 = vpop.f32.mrb[0].mxu0
      %3866 = vmatprep.mubr.bf16.mxu0 0
      %3867 = vmatmul.mubr.bf16.gmra.mrb[0].mxu0 %v3591
      %v3868 = vpop.f32.mrb[0].mxu0
      %v3869 = vadd.f32 0.0, %v3868
      %v3870 = vpop.f32.mrb[0].mxu0
      %v3871 = vpop.f32.mrb[0].mxu0
      %v3872 = vadd.f32 0.0, %v3871
      %v3873 = vpop.f32.mrb[0].mxu0
      %3874 = vmatprep.mubr.bf16.mxu0 0
      %3875 = vmatmul.mubr.bf16.gmra.mrb[0].mxu0 %v3594
      %v3876 = vpop.f32.mrb[0].mxu0
      %v3877 = vadd.f32 0.0, %v3876
      %v3878 = vpop.f32.mrb[0].mxu0
      %v3879 = vpop.f32.mrb[0].mxu0
      %v3880 = vadd.f32 0.0, %v3879
      %v3881 = vpop.f32.mrb[0].mxu0
      %3882 = vmatprep.mubr.bf16.mxu0 0
      %3883 = vmatmul.mubr.bf16.gmra.mrb[0].mxu0 %v3597
      %v3884 = vpop.f32.mrb[0].mxu0
      %v3885 = vadd.f32 0.0, %v3884
      %v3886 = vpop.f32.mrb[0].mxu0
      %v3887 = vpop.f32.mrb[0].mxu0
      %v3888 = vadd.f32 0.0, %v3887
      %v3889 = vpop.f32.mrb[0].mxu0
      %3890 = vdwg.mxu0
      %v3892 = vsel %vm2886, %v2565, 0
      %v3895 = vsel %vm2886, %v2568, 0
      %v3898 = vsel %vm2886, %v2571, 0
      %v3901 = vsel %vm2886, %v2574, 0
      %v3904 = vsel %vm2886, %v2577, 0
      %v3907 = vsel %vm2886, %v2580, 0
      %v3910 = vsel %vm2886, %v2583, 0
      %v3913 = vsel %vm2886, %v2586, 0
      %v3916 = vsel %vm2886, %v2589, 0
      %v3919 = vsel %vm2886, %v2592, 0
      %v3922 = vsel %vm2886, %v2595, 0
      %v3925 = vsel %vm2886, %v2598, 0
      %v3928 = vsel %vm2886, %v2601, 0
      %v3931 = vsel %vm2886, %v2604, 0
      %v3934 = vsel %vm2886, %v2607, 0
      %v3937 = vsel %vm2886, %v2610, 0
      %v3940 = vsel %vm2886, %v2613, 0
      %v3943 = vsel %vm2886, %v2616, 0
      %v3946 = vsel %vm2886, %v2619, 0
      %v3949 = vsel %vm2886, %v2622, 0
      %v3952 = vsel %vm2886, %v2625, 0
      %v3955 = vsel %vm2886, %v2628, 0
      %v3958 = vsel %vm2886, %v2631, 0
      %v3961 = vsel %vm2886, %v2634, 0
      %v3964 = vsel %vm2886, %v2637, 0
      %v3967 = vsel %vm2886, %v2640, 0
      %v3970 = vsel %vm2886, %v2643, 0
      %v3973 = vsel %vm2886, %v2646, 0
      %v3976 = vsel %vm2886, %v2649, 0
      %v3979 = vsel %vm2886, %v2652, 0
      %v3982 = vsel %vm2886, %v2655, 0
      %v3985 = vsel %vm2886, %v2658, 0
      %v3988 = vsel %vm2983, %v2659, 0
      %3990 = vmatprep.subr.bf16.mxu0 0
      %3991 = vmatpush1.bf16.msra.mxu0 %v3988
      %3992 = vmatprep.subr.bf16.mxu0 0
      %3993 = vmatpush1.bf16.msra.mxu0 0
      %3994 = vmatprep.subr.bf16.mxu0 0
      %3995 = vmatpush1.bf16.msra.mxu0 0
      %3996 = vmatprep.subr.bf16.mxu0 0
      %3997 = vmatpush1.bf16.msra.mxu0 0
      %3998 = vmatprep.subr.bf16.mxu0 0
      %3999 = vmatpush1.bf16.msra.mxu0 0
      %4000 = vmatprep.subr.bf16.mxu0 0
      %4001 = vmatpush1.bf16.msra.mxu0 0
      %4002 = vmatprep.subr.bf16.mxu0 0
      %4003 = vmatpush1.bf16.msra.mxu0 0
      %4004 = vmatprep.subr.bf16.mxu0 0
      %4005 = vmatpush1.bf16.msra.mxu0 0
      %4006 = vmatprep.subr.bf16.mxu0 0
      %4007 = vmatpush1.bf16.msra.mxu0 0
      %4008 = vmatprep.subr.bf16.mxu0 0
      %4009 = vmatpush1.bf16.msra.mxu0 0
      %4010 = vmatprep.subr.bf16.mxu0 0
      %4011 = vmatpush1.bf16.msra.mxu0 0
      %4012 = vmatprep.subr.bf16.mxu0 0
      %4013 = vmatpush1.bf16.msra.mxu0 0
      %4014 = vmatprep.subr.bf16.mxu0 0
      %4015 = vmatpush1.bf16.msra.mxu0 0
      %4016 = vmatprep.subr.bf16.mxu0 0
      %4017 = vmatpush1.bf16.msra.mxu0 0
      %4018 = vmatprep.subr.bf16.mxu0 0
      %4019 = vmatpush1.bf16.msra.mxu0 0
      %4020 = vmatprep.subr.bf16.mxu0 0
      %4021 = vmatpush1.bf16.msra.mxu0 0
      %4022 = vmatprep.mubr.bf16.mxu0 0
      %4023 = vmatmul.mubr.bf16.gmra.mrb[0].mxu0 %v3892
      %v4024 = vpop.f32.mrb[0].mxu0
      %v4025 = vadd.f32 %v3022, %v4024
      %v4026 = vpop.f32.mrb[0].mxu0
      %v4027 = vpop.f32.mrb[0].mxu0
      %v4028 = vadd.f32 %v3025, %v4027
      %v4029 = vpop.f32.mrb[0].mxu0
      %4030 = vmatprep.mubr.bf16.mxu0 0
      %4031 = vmatmul.mubr.bf16.gmra.mrb[0].mxu0 %v3895
      %v4032 = vpop.f32.mrb[0].mxu0
      %v4033 = vadd.f32 %v3030, %v4032
      %v4034 = vpop.f32.mrb[0].mxu0
      %v4035 = vpop.f32.mrb[0].mxu0
      %v4036 = vadd.f32 %v3033, %v4035
      %v4037 = vpop.f32.mrb[0].mxu0
      %4038 = vmatprep.mubr.bf16.mxu0 0
      %4039 = vmatmul.mubr.bf16.gmra.mrb[0].mxu0 %v3898
      %v4040 = vpop.f32.mrb[0].mxu0
      %v4041 = vadd.f32 %v3038, %v4040
      %v4042 = vpop.f32.mrb[0].mxu0
      %v4043 = vpop.f32.mrb[0].mxu0
      %v4044 = vadd.f32 %v3041, %v4043
      %v4045 = vpop.f32.mrb[0].mxu0
      %4046 = vmatprep.mubr.bf16.mxu0 0
      %4047 = vmatmul.mubr.bf16.gmra.mrb[0].mxu0 %v3901
      %v4048 = vpop.f32.mrb[0].mxu0
      %v4049 = vadd.f32 %v3046, %v4048
      %v4050 = vpop.f32.mrb[0].mxu0
      %v4051 = vpop.f32.mrb[0].mxu0
      %v4052 = vadd.f32 %v3049, %v4051
      %v4053 = vpop.f32.mrb[0].mxu0
      %4054 = vmatprep.mubr.bf16.mxu0 0
      %4055 = vmatmul.mubr.bf16.gmra.mrb[0].mxu0 %v3904
      %v4056 = vpop.f32.mrb[0].mxu0
      %v4057 = vadd.f32 %v3054, %v4056
      %v4058 = vpop.f32.mrb[0].mxu0
      %v4059 = vpop.f32.mrb[0].mxu0
      %v4060 = vadd.f32 %v3057, %v4059
      %v4061 = vpop.f32.mrb[0].mxu0
      %4062 = vmatprep.mubr.bf16.mxu0 0
      %4063 = vmatmul.mubr.bf16.gmra.mrb[0].mxu0 %v3907
      %v4064 = vpop.f32.mrb[0].mxu0
      %v4065 = vadd.f32 %v3062, %v4064
      %v4066 = vpop.f32.mrb[0].mxu0
      %v4067 = vpop.f32.mrb[0].mxu0
      %v4068 = vadd.f32 %v3065, %v4067
      %v4069 = vpop.f32.mrb[0].mxu0
      %4070 = vmatprep.mubr.bf16.mxu0 0
      %4071 = vmatmul.mubr.bf16.gmra.mrb[0].mxu0 %v3910
      %v4072 = vpop.f32.mrb[0].mxu0
      %v4073 = vadd.f32 %v3070, %v4072
      %v4074 = vpop.f32.mrb[0].mxu0
      %v4075 = vpop.f32.mrb[0].mxu0
      %v4076 = vadd.f32 %v3073, %v4075
      %v4077 = vpop.f32.mrb[0].mxu0
      %4078 = vmatprep.mubr.bf16.mxu0 0
      %4079 = vmatmul.mubr.bf16.gmra.mrb[0].mxu0 %v3913
      %v4080 = vpop.f32.mrb[0].mxu0
      %v4081 = vadd.f32 %v3078, %v4080
      %v4082 = vpop.f32.mrb[0].mxu0
      %v4083 = vpop.f32.mrb[0].mxu0
      %v4084 = vadd.f32 %v3081, %v4083
      %v4085 = vpop.f32.mrb[0].mxu0
      %4086 = vmatprep.mubr.bf16.mxu0 0
      %4087 = vmatmul.mubr.bf16.gmra.mrb[0].mxu0 %v3916
      %v4088 = vpop.f32.mrb[0].mxu0
      %v4089 = vadd.f32 %v3086, %v4088
      %v4090 = vpop.f32.mrb[0].mxu0
      %v4091 = vpop.f32.mrb[0].mxu0
      %v4092 = vadd.f32 %v3089, %v4091
      %v4093 = vpop.f32.mrb[0].mxu0
      %4094 = vmatprep.mubr.bf16.mxu0 0
      %4095 = vmatmul.mubr.bf16.gmra.mrb[0].mxu0 %v3919
      %v4096 = vpop.f32.mrb[0].mxu0
      %v4097 = vadd.f32 %v3094, %v4096
      %v4098 = vpop.f32.mrb[0].mxu0
      %v4099 = vpop.f32.mrb[0].mxu0
      %v4100 = vadd.f32 %v3097, %v4099
      %v4101 = vpop.f32.mrb[0].mxu0
      %4102 = vmatprep.mubr.bf16.mxu0 0
      %4103 = vmatmul.mubr.bf16.gmra.mrb[0].mxu0 %v3922
      %v4104 = vpop.f32.mrb[0].mxu0
      %v4105 = vadd.f32 %v3102, %v4104
      %v4106 = vpop.f32.mrb[0].mxu0
      %v4107 = vpop.f32.mrb[0].mxu0
      %v4108 = vadd.f32 %v3105, %v4107
      %v4109 = vpop.f32.mrb[0].mxu0
      %4110 = vmatprep.mubr.bf16.mxu0 0
      %4111 = vmatmul.mubr.bf16.gmra.mrb[0].mxu0 %v3925
      %v4112 = vpop.f32.mrb[0].mxu0
      %v4113 = vadd.f32 %v3110, %v4112
      %v4114 = vpop.f32.mrb[0].mxu0
      %v4115 = vpop.f32.mrb[0].mxu0
      %v4116 = vadd.f32 %v3113, %v4115
      %v4117 = vpop.f32.mrb[0].mxu0
      %4118 = vmatprep.mubr.bf16.mxu0 0
      %4119 = vmatmul.mubr.bf16.gmra.mrb[0].mxu0 %v3928
      %v4120 = vpop.f32.mrb[0].mxu0
      %v4121 = vadd.f32 %v3118, %v4120
      %v4122 = vpop.f32.mrb[0].mxu0
      %v4123 = vpop.f32.mrb[0].mxu0
      %v4124 = vadd.f32 %v3121, %v4123
      %v4125 = vpop.f32.mrb[0].mxu0
      %4126 = vmatprep.mubr.bf16.mxu0 0
      %4127 = vmatmul.mubr.bf16.gmra.mrb[0].mxu0 %v3931
      %v4128 = vpop.f32.mrb[0].mxu0
      %v4129 = vadd.f32 %v3126, %v4128
      %v4130 = vpop.f32.mrb[0].mxu0
      %v4131 = vpop.f32.mrb[0].mxu0
      %v4132 = vadd.f32 %v3129, %v4131
      %v4133 = vpop.f32.mrb[0].mxu0
      %4134 = vmatprep.mubr.bf16.mxu0 0
      %4135 = vmatmul.mubr.bf16.gmra.mrb[0].mxu0 %v3934
      %v4136 = vpop.f32.mrb[0].mxu0
      %v4137 = vadd.f32 %v3134, %v4136
      %v4138 = vpop.f32.mrb[0].mxu0
      %v4139 = vpop.f32.mrb[0].mxu0
      %v4140 = vadd.f32 %v3137, %v4139
      %v4141 = vpop.f32.mrb[0].mxu0
      %4142 = vmatprep.mubr.bf16.mxu0 0
      %4143 = vmatmul.mubr.bf16.gmra.mrb[0].mxu0 %v3937
      %v4144 = vpop.f32.mrb[0].mxu0
      %v4145 = vadd.f32 %v3142, %v4144
      %v4146 = vpop.f32.mrb[0].mxu0
      %v4147 = vpop.f32.mrb[0].mxu0
      %v4148 = vadd.f32 %v3145, %v4147
      %v4149 = vpop.f32.mrb[0].mxu0
      %4150 = vmatprep.mubr.bf16.mxu0 0
      %4151 = vmatmul.mubr.bf16.gmra.mrb[0].mxu0 %v3940
      %v4152 = vpop.f32.mrb[0].mxu0
      %v4153 = vadd.f32 %v3150, %v4152
      %v4154 = vpop.f32.mrb[0].mxu0
      %v4155 = vpop.f32.mrb[0].mxu0
      %v4156 = vadd.f32 %v3153, %v4155
      %v4157 = vpop.f32.mrb[0].mxu0
      %4158 = vmatprep.mubr.bf16.mxu0 0
      %4159 = vmatmul.mubr.bf16.gmra.mrb[0].mxu0 %v3943
      %v4160 = vpop.f32.mrb[0].mxu0
      %v4161 = vadd.f32 %v3158, %v4160
      %v4162 = vpop.f32.mrb[0].mxu0
      %v4163 = vpop.f32.mrb[0].mxu0
      %v4164 = vadd.f32 %v3161, %v4163
      %v4165 = vpop.f32.mrb[0].mxu0
      %4166 = vmatprep.mubr.bf16.mxu0 0
      %4167 = vmatmul.mubr.bf16.gmra.mrb[0].mxu0 %v3946
      %v4168 = vpop.f32.mrb[0].mxu0
      %v4169 = vadd.f32 %v3166, %v4168
      %v4170 = vpop.f32.mrb[0].mxu0
      %v4171 = vpop.f32.mrb[0].mxu0
      %v4172 = vadd.f32 %v3169, %v4171
      %v4173 = vpop.f32.mrb[0].mxu0
      %4174 = vmatprep.mubr.bf16.mxu0 0
      %4175 = vmatmul.mubr.bf16.gmra.mrb[0].mxu0 %v3949
      %v4176 = vpop.f32.mrb[0].mxu0
      %v4177 = vadd.f32 %v3174, %v4176
      %v4178 = vpop.f32.mrb[0].mxu0
      %v4179 = vpop.f32.mrb[0].mxu0
      %v4180 = vadd.f32 %v3177, %v4179
      %v4181 = vpop.f32.mrb[0].mxu0
      %4182 = vmatprep.mubr.bf16.mxu0 0
      %4183 = vmatmul.mubr.bf16.gmra.mrb[0].mxu0 %v3952
      %v4184 = vpop.f32.mrb[0].mxu0
      %v4185 = vadd.f32 %v3182, %v4184
      %v4186 = vpop.f32.mrb[0].mxu0
      %v4187 = vpop.f32.mrb[0].mxu0
      %v4188 = vadd.f32 %v3185, %v4187
      %v4189 = vpop.f32.mrb[0].mxu0
      %4190 = vmatprep.mubr.bf16.mxu0 0
      %4191 = vmatmul.mubr.bf16.gmra.mrb[0].mxu0 %v3955
      %v4192 = vpop.f32.mrb[0].mxu0
      %v4193 = vadd.f32 %v3190, %v4192
      %v4194 = vpop.f32.mrb[0].mxu0
      %v4195 = vpop.f32.mrb[0].mxu0
      %v4196 = vadd.f32 %v3193, %v4195
      %v4197 = vpop.f32.mrb[0].mxu0
      %4198 = vmatprep.mubr.bf16.mxu0 0
      %4199 = vmatmul.mubr.bf16.gmra.mrb[0].mxu0 %v3958
      %v4200 = vpop.f32.mrb[0].mxu0
      %v4201 = vadd.f32 %v3198, %v4200
      %v4202 = vpop.f32.mrb[0].mxu0
      %v4203 = vpop.f32.mrb[0].mxu0
      %v4204 = vadd.f32 %v3201, %v4203
      %v4205 = vpop.f32.mrb[0].mxu0
      %4206 = vmatprep.mubr.bf16.mxu0 0
      %4207 = vmatmul.mubr.bf16.gmra.mrb[0].mxu0 %v3961
      %v4208 = vpop.f32.mrb[0].mxu0
      %v4209 = vadd.f32 %v3206, %v4208
      %v4210 = vpop.f32.mrb[0].mxu0
      %v4211 = vpop.f32.mrb[0].mxu0
      %v4212 = vadd.f32 %v3209, %v4211
      %v4213 = vpop.f32.mrb[0].mxu0
      %4214 = vmatprep.mubr.bf16.mxu0 0
      %4215 = vmatmul.mubr.bf16.gmra.mrb[0].mxu0 %v3964
      %v4216 = vpop.f32.mrb[0].mxu0
      %v4217 = vadd.f32 %v3214, %v4216
      %v4218 = vpop.f32.mrb[0].mxu0
      %v4219 = vpop.f32.mrb[0].mxu0
      %v4220 = vadd.f32 %v3217, %v4219
      %v4221 = vpop.f32.mrb[0].mxu0
      %4222 = vmatprep.mubr.bf16.mxu0 0
      %4223 = vmatmul.mubr.bf16.gmra.mrb[0].mxu0 %v3967
      %v4224 = vpop.f32.mrb[0].mxu0
      %v4225 = vadd.f32 %v3222, %v4224
      %v4226 = vpop.f32.mrb[0].mxu0
      %v4227 = vpop.f32.mrb[0].mxu0
      %v4228 = vadd.f32 %v3225, %v4227
      %v4229 = vpop.f32.mrb[0].mxu0
      %4230 = vmatprep.mubr.bf16.mxu0 0
      %4231 = vmatmul.mubr.bf16.gmra.mrb[0].mxu0 %v3970
      %v4232 = vpop.f32.mrb[0].mxu0
      %v4233 = vadd.f32 %v3230, %v4232
      %v4234 = vpop.f32.mrb[0].mxu0
      %v4235 = vpop.f32.mrb[0].mxu0
      %v4236 = vadd.f32 %v3233, %v4235
      %v4237 = vpop.f32.mrb[0].mxu0
      %4238 = vmatprep.mubr.bf16.mxu0 0
      %4239 = vmatmul.mubr.bf16.gmra.mrb[0].mxu0 %v3973
      %v4240 = vpop.f32.mrb[0].mxu0
      %v4241 = vadd.f32 %v3238, %v4240
      %v4242 = vpop.f32.mrb[0].mxu0
      %v4243 = vpop.f32.mrb[0].mxu0
      %v4244 = vadd.f32 %v3241, %v4243
      %v4245 = vpop.f32.mrb[0].mxu0
      %4246 = vmatprep.mubr.bf16.mxu0 0
      %4247 = vmatmul.mubr.bf16.gmra.mrb[0].mxu0 %v3976
      %v4248 = vpop.f32.mrb[0].mxu0
      %v4249 = vadd.f32 %v3246, %v4248
      %v4250 = vpop.f32.mrb[0].mxu0
      %v4251 = vpop.f32.mrb[0].mxu0
      %v4252 = vadd.f32 %v3249, %v4251
      %v4253 = vpop.f32.mrb[0].mxu0
      %4254 = vmatprep.mubr.bf16.mxu0 0
      %4255 = vmatmul.mubr.bf16.gmra.mrb[0].mxu0 %v3979
      %v4256 = vpop.f32.mrb[0].mxu0
      %v4257 = vadd.f32 %v3254, %v4256
      %v4258 = vpop.f32.mrb[0].mxu0
      %v4259 = vpop.f32.mrb[0].mxu0
      %v4260 = vadd.f32 %v3257, %v4259
      %v4261 = vpop.f32.mrb[0].mxu0
      %4262 = vmatprep.mubr.bf16.mxu0 0
      %4263 = vmatmul.mubr.bf16.gmra.mrb[0].mxu0 %v3982
      %v4264 = vpop.f32.mrb[0].mxu0
      %v4265 = vadd.f32 %v3262, %v4264
      %v4266 = vpop.f32.mrb[0].mxu0
      %v4267 = vpop.f32.mrb[0].mxu0
      %v4268 = vadd.f32 %v3265, %v4267
      %v4269 = vpop.f32.mrb[0].mxu0
      %4270 = vmatprep.mubr.bf16.mxu0 0
      %4271 = vmatmul.mubr.bf16.gmra.mrb[0].mxu0 %v3985
      %v4272 = vpop.f32.mrb[0].mxu0
      %v4273 = vadd.f32 %v3270, %v4272
      %v4274 = vpop.f32.mrb[0].mxu0
      %v4275 = vpop.f32.mrb[0].mxu0
      %v4276 = vadd.f32 %v3273, %v4275
      %v4277 = vpop.f32.mrb[0].mxu0
      %4278 = vdwg.mxu0
      %v4279 = vadd.f32 %v4025, %v3637
      %v4280 = vadd.f32 %v4028, %v3640
      %v4281 = vadd.f32 %v4033, %v3645
      %v4282 = vadd.f32 %v4036, %v3648
      %v4283 = vadd.f32 %v4041, %v3653
      %v4284 = vadd.f32 %v4044, %v3656
      %v4285 = vadd.f32 %v4049, %v3661
      %v4286 = vadd.f32 %v4052, %v3664
      %v4287 = vadd.f32 %v4057, %v3669
      %v4288 = vadd.f32 %v4060, %v3672
      %v4289 = vadd.f32 %v4065, %v3677
      %v4290 = vadd.f32 %v4068, %v3680
      %v4291 = vadd.f32 %v4073, %v3685
      %v4292 = vadd.f32 %v4076, %v3688
      %v4293 = vadd.f32 %v4081, %v3693
      %v4294 = vadd.f32 %v4084, %v3696
      %v4295 = vadd.f32 %v4089, %v3701
      %v4296 = vadd.f32 %v4092, %v3704
      %v4297 = vadd.f32 %v4097, %v3709
      %v4298 = vadd.f32 %v4100, %v3712
      %v4299 = vadd.f32 %v4105, %v3717
      %v4300 = vadd.f32 %v4108, %v3720
      %v4301 = vadd.f32 %v4113, %v3725
      %v4302 = vadd.f32 %v4116, %v3728
      %v4303 = vadd.f32 %v4121, %v3733
      %v4304 = vadd.f32 %v4124, %v3736
      %v4305 = vadd.f32 %v4129, %v3741
      %v4306 = vadd.f32 %v4132, %v3744
      %v4307 = vadd.f32 %v4137, %v3749
      %v4308 = vadd.f32 %v4140, %v3752
      %v4309 = vadd.f32 %v4145, %v3757
      %v4310 = vadd.f32 %v4148, %v3760
      %v4311 = vadd.f32 %v4153, %v3765
      %v4312 = vadd.f32 %v4156, %v3768
      %v4313 = vadd.f32 %v4161, %v3773
      %v4314 = vadd.f32 %v4164, %v3776
      %v4315 = vadd.f32 %v4169, %v3781
      %v4316 = vadd.f32 %v4172, %v3784
      %v4317 = vadd.f32 %v4177, %v3789
      %v4318 = vadd.f32 %v4180, %v3792
      %v4319 = vadd.f32 %v4185, %v3797
      %v4320 = vadd.f32 %v4188, %v3800
      %v4321 = vadd.f32 %v4193, %v3805
      %v4322 = vadd.f32 %v4196, %v3808
      %v4323 = vadd.f32 %v4201, %v3813
      %v4324 = vadd.f32 %v4204, %v3816
      %v4325 = vadd.f32 %v4209, %v3821
      %v4326 = vadd.f32 %v4212, %v3824
      %v4327 = vadd.f32 %v4217, %v3829
      %v4328 = vadd.f32 %v4220, %v3832
      %v4329 = vadd.f32 %v4225, %v3837
      %v4330 = vadd.f32 %v4228, %v3840
      %v4331 = vadd.f32 %v4233, %v3845
      %v4332 = vadd.f32 %v4236, %v3848
      %v4333 = vadd.f32 %v4241, %v3853
      %v4334 = vadd.f32 %v4244, %v3856
      %v4335 = vadd.f32 %v4249, %v3861
      %v4336 = vadd.f32 %v4252, %v3864
      %v4337 = vadd.f32 %v4257, %v3869
      %v4338 = vadd.f32 %v4260, %v3872
      %v4339 = vadd.f32 %v4265, %v3877
      %v4340 = vadd.f32 %v4268, %v3880
      %v4341 = vadd.f32 %v4273, %v3885
      %v4342 = vadd.f32 %v4276, %v3888
      %v4343 = vld [vmem:[%s302] sm:$0x1]
      %v4345 = vlaneseq
      %v4346 = vshrl.u32 %v4345, 7
      %v4347 = vsub.s32 0, %v4346
      %v4348 = vrot.slane %v4343, %v4347
      %v4350 = vadd.f32 %v4279, %v4348
      %v4351 = vadd.f32 %v4280, %v4348
      %v4352 = vadd.f32 %v4281, %v4348
      %v4353 = vadd.f32 %v4282, %v4348
      %v4354 = vadd.f32 %v4283, %v4348
      %v4355 = vadd.f32 %v4284, %v4348
      %v4356 = vadd.f32 %v4285, %v4348
      %v4357 = vadd.f32 %v4286, %v4348
      %v4358 = vadd.f32 %v4287, %v4348
      %v4359 = vadd.f32 %v4288, %v4348
      %v4360 = vadd.f32 %v4289, %v4348
      %v4361 = vadd.f32 %v4290, %v4348
      %v4362 = vadd.f32 %v4291, %v4348
      %v4363 = vadd.f32 %v4292, %v4348
      %v4364 = vadd.f32 %v4293, %v4348
      %v4365 = vadd.f32 %v4294, %v4348
      %v4366 = vadd.f32 %v4295, %v4348
      %v4367 = vadd.f32 %v4296, %v4348
      %v4368 = vadd.f32 %v4297, %v4348
      %v4369 = vadd.f32 %v4298, %v4348
      %v4370 = vadd.f32 %v4299, %v4348
      %v4371 = vadd.f32 %v4300, %v4348
      %v4372 = vadd.f32 %v4301, %v4348
      %v4373 = vadd.f32 %v4302, %v4348
      %v4374 = vadd.f32 %v4303, %v4348
      %v4375 = vadd.f32 %v4304, %v4348
      %v4376 = vadd.f32 %v4305, %v4348
      %v4377 = vadd.f32 %v4306, %v4348
      %v4378 = vadd.f32 %v4307, %v4348
      %v4379 = vadd.f32 %v4308, %v4348
      %v4380 = vadd.f32 %v4309, %v4348
      %v4381 = vadd.f32 %v4310, %v4348
      %v4382 = vadd.f32 %v4311, %v4348
      %v4383 = vadd.f32 %v4312, %v4348
      %v4384 = vadd.f32 %v4313, %v4348
      %v4385 = vadd.f32 %v4314, %v4348
      %v4386 = vadd.f32 %v4315, %v4348
      %v4387 = vadd.f32 %v4316, %v4348
      %v4388 = vadd.f32 %v4317, %v4348
      %v4389 = vadd.f32 %v4318, %v4348
      %v4390 = vadd.f32 %v4319, %v4348
      %v4391 = vadd.f32 %v4320, %v4348
      %v4392 = vadd.f32 %v4321, %v4348
      %v4393 = vadd.f32 %v4322, %v4348
      %v4394 = vadd.f32 %v4323, %v4348
      %v4395 = vadd.f32 %v4324, %v4348
      %v4396 = vadd.f32 %v4325, %v4348
      %v4397 = vadd.f32 %v4326, %v4348
      %v4398 = vadd.f32 %v4327, %v4348
      %v4399 = vadd.f32 %v4328, %v4348
      %v4400 = vadd.f32 %v4329, %v4348
      %v4401 = vadd.f32 %v4330, %v4348
      %v4402 = vadd.f32 %v4331, %v4348
      %v4403 = vadd.f32 %v4332, %v4348
      %v4404 = vadd.f32 %v4333, %v4348
      %v4405 = vadd.f32 %v4334, %v4348
      %v4406 = vadd.f32 %v4335, %v4348
      %v4407 = vadd.f32 %v4336, %v4348
      %v4408 = vadd.f32 %v4337, %v4348
      %v4409 = vadd.f32 %v4338, %v4348
      %v4410 = vadd.f32 %v4339, %v4348
      %v4411 = vadd.f32 %v4340, %v4348
      %v4412 = vadd.f32 %v4341, %v4348
      %v4413 = vadd.f32 %v4342, %v4348
      %v4414 = vmul.f32 %v4350, 0.1
      %v4415 = vmul.f32 %v4351, 0.1
      %v4416 = vmul.f32 %v4352, 0.1
      %v4417 = vmul.f32 %v4353, 0.1
      %v4418 = vmul.f32 %v4354, 0.1
      %v4419 = vmul.f32 %v4355, 0.1
      %v4420 = vmul.f32 %v4356, 0.1
      %v4421 = vmul.f32 %v4357, 0.1
      %v4422 = vmul.f32 %v4358, 0.1
      %v4423 = vmul.f32 %v4359, 0.1
      %v4424 = vmul.f32 %v4360, 0.1
      %v4425 = vmul.f32 %v4361, 0.1
      %v4426 = vmul.f32 %v4362, 0.1
      %v4427 = vmul.f32 %v4363, 0.1
      %v4428 = vmul.f32 %v4364, 0.1
      %v4429 = vmul.f32 %v4365, 0.1
      %v4430 = vmul.f32 %v4366, 0.1
      %v4431 = vmul.f32 %v4367, 0.1
      %v4432 = vmul.f32 %v4368, 0.1
      %v4433 = vmul.f32 %v4369, 0.1
      %v4434 = vmul.f32 %v4370, 0.1
      %v4435 = vmul.f32 %v4371, 0.1
      %v4436 = vmul.f32 %v4372, 0.1
      %v4437 = vmul.f32 %v4373, 0.1
      %v4438 = vmul.f32 %v4374, 0.1
      %v4439 = vmul.f32 %v4375, 0.1
      %v4440 = vmul.f32 %v4376, 0.1
      %v4441 = vmul.f32 %v4377, 0.1
      %v4442 = vmul.f32 %v4378, 0.1
      %v4443 = vmul.f32 %v4379, 0.1
      %v4444 = vmul.f32 %v4380, 0.1
      %v4445 = vmul.f32 %v4381, 0.1
      %v4446 = vmul.f32 %v4382, 0.1
      %v4447 = vmul.f32 %v4383, 0.1
      %v4448 = vmul.f32 %v4384, 0.1
      %v4449 = vmul.f32 %v4385, 0.1
      %v4450 = vmul.f32 %v4386, 0.1
      %v4451 = vmul.f32 %v4387, 0.1
      %v4452 = vmul.f32 %v4388, 0.1
      %v4453 = vmul.f32 %v4389, 0.1
      %v4454 = vmul.f32 %v4390, 0.1
      %v4455 = vmul.f32 %v4391, 0.1
      %v4456 = vmul.f32 %v4392, 0.1
      %v4457 = vmul.f32 %v4393, 0.1
      %v4458 = vmul.f32 %v4394, 0.1
      %v4459 = vmul.f32 %v4395, 0.1
      %v4460 = vmul.f32 %v4396, 0.1
      %v4461 = vmul.f32 %v4397, 0.1
      %v4462 = vmul.f32 %v4398, 0.1
      %v4463 = vmul.f32 %v4399, 0.1
      %v4464 = vmul.f32 %v4400, 0.1
      %v4465 = vmul.f32 %v4401, 0.1
      %v4466 = vmul.f32 %v4402, 0.1
      %v4467 = vmul.f32 %v4403, 0.1
      %v4468 = vmul.f32 %v4404, 0.1
      %v4469 = vmul.f32 %v4405, 0.1
      %v4470 = vmul.f32 %v4406, 0.1
      %v4471 = vmul.f32 %v4407, 0.1
      %v4472 = vmul.f32 %v4408, 0.1
      %v4473 = vmul.f32 %v4409, 0.1
      %v4474 = vmul.f32 %v4410, 0.1
      %v4475 = vmul.f32 %v4411, 0.1
      %v4476 = vmul.f32 %v4412, 0.1
      %v4477 = vmul.f32 %v4413, 0.1
      %v4478 = vmax.f32 %v4350, %v4414
      %v4479 = vmax.f32 %v4351, %v4415
      %v4480 = vmax.f32 %v4352, %v4416
      %v4481 = vmax.f32 %v4353, %v4417
      %v4482 = vmax.f32 %v4354, %v4418
      %v4483 = vmax.f32 %v4355, %v4419
      %v4484 = vmax.f32 %v4356, %v4420
      %v4485 = vmax.f32 %v4357, %v4421
      %v4486 = vmax.f32 %v4358, %v4422
      %v4487 = vmax.f32 %v4359, %v4423
      %v4488 = vmax.f32 %v4360, %v4424
      %v4489 = vmax.f32 %v4361, %v4425
      %v4490 = vmax.f32 %v4362, %v4426
      %v4491 = vmax.f32 %v4363, %v4427
      %v4492 = vmax.f32 %v4364, %v4428
      %v4493 = vmax.f32 %v4365, %v4429
      %v4494 = vmax.f32 %v4366, %v4430
      %v4495 = vmax.f32 %v4367, %v4431
      %v4496 = vmax.f32 %v4368, %v4432
      %v4497 = vmax.f32 %v4369, %v4433
      %v4498 = vmax.f32 %v4370, %v4434
      %v4499 = vmax.f32 %v4371, %v4435
      %v4500 = vmax.f32 %v4372, %v4436
      %v4501 = vmax.f32 %v4373, %v4437
      %v4502 = vmax.f32 %v4374, %v4438
      %v4503 = vmax.f32 %v4375, %v4439
      %v4504 = vmax.f32 %v4376, %v4440
      %v4505 = vmax.f32 %v4377, %v4441
      %v4506 = vmax.f32 %v4378, %v4442
      %v4507 = vmax.f32 %v4379, %v4443
      %v4508 = vmax.f32 %v4380, %v4444
      %v4509 = vmax.f32 %v4381, %v4445
      %v4510 = vmax.f32 %v4382, %v4446
      %v4511 = vmax.f32 %v4383, %v4447
      %v4512 = vmax.f32 %v4384, %v4448
      %v4513 = vmax.f32 %v4385, %v4449
      %v4514 = vmax.f32 %v4386, %v4450
      %v4515 = vmax.f32 %v4387, %v4451
      %v4516 = vmax.f32 %v4388, %v4452
      %v4517 = vmax.f32 %v4389, %v4453
      %v4518 = vmax.f32 %v4390, %v4454
      %v4519 = vmax.f32 %v4391, %v4455
      %v4520 = vmax.f32 %v4392, %v4456
      %v4521 = vmax.f32 %v4393, %v4457
      %v4522 = vmax.f32 %v4394, %v4458
      %v4523 = vmax.f32 %v4395, %v4459
      %v4524 = vmax.f32 %v4396, %v4460
      %v4525 = vmax.f32 %v4397, %v4461
      %v4526 = vmax.f32 %v4398, %v4462
      %v4527 = vmax.f32 %v4399, %v4463
      %v4528 = vmax.f32 %v4400, %v4464
      %v4529 = vmax.f32 %v4401, %v4465
      %v4530 = vmax.f32 %v4402, %v4466
      %v4531 = vmax.f32 %v4403, %v4467
      %v4532 = vmax.f32 %v4404, %v4468
      %v4533 = vmax.f32 %v4405, %v4469
      %v4534 = vmax.f32 %v4406, %v4470
      %v4535 = vmax.f32 %v4407, %v4471
      %v4536 = vmax.f32 %v4408, %v4472
      %v4537 = vmax.f32 %v4409, %v4473
      %v4538 = vmax.f32 %v4410, %v4474
      %v4539 = vmax.f32 %v4411, %v4475
      %v4540 = vmax.f32 %v4412, %v4476
      %v4541 = vmax.f32 %v4413, %v4477
      %v4542 = vadd.f32 %v677, %v4478
      %v4543 = vadd.f32 %v678, %v4479
      %v4544 = vadd.f32 %v679, %v4480
      %v4545 = vadd.f32 %v680, %v4481
      %v4546 = vadd.f32 %v681, %v4482
      %v4547 = vadd.f32 %v682, %v4483
      %v4548 = vadd.f32 %v683, %v4484
      %v4549 = vadd.f32 %v684, %v4485
      %v4550 = vadd.f32 %v685, %v4486
      %v4551 = vadd.f32 %v686, %v4487
      %v4552 = vadd.f32 %v687, %v4488
      %v4553 = vadd.f32 %v688, %v4489
      %v4554 = vadd.f32 %v689, %v4490
      %v4555 = vadd.f32 %v690, %v4491
      %v4556 = vadd.f32 %v691, %v4492
      %v4557 = vadd.f32 %v692, %v4493
      %v4558 = vadd.f32 %v693, %v4494
      %v4559 = vadd.f32 %v694, %v4495
      %v4560 = vadd.f32 %v695, %v4496
      %v4561 = vadd.f32 %v696, %v4497
      %v4562 = vadd.f32 %v697, %v4498
      %v4563 = vadd.f32 %v698, %v4499
      %v4564 = vadd.f32 %v699, %v4500
      %v4565 = vadd.f32 %v700, %v4501
      %v4566 = vadd.f32 %v701, %v4502
      %v4567 = vadd.f32 %v702, %v4503
      %v4568 = vadd.f32 %v703, %v4504
      %v4569 = vadd.f32 %v704, %v4505
      %v4570 = vadd.f32 %v705, %v4506
      %v4571 = vadd.f32 %v706, %v4507
      %v4572 = vadd.f32 %v707, %v4508
      %v4573 = vadd.f32 %v708, %v4509
      %v4574 = vadd.f32 %v709, %v4510
      %v4575 = vadd.f32 %v710, %v4511
      %v4576 = vadd.f32 %v711, %v4512
      %v4577 = vadd.f32 %v712, %v4513
      %v4578 = vadd.f32 %v713, %v4514
      %v4579 = vadd.f32 %v714, %v4515
      %v4580 = vadd.f32 %v715, %v4516
      %v4581 = vadd.f32 %v716, %v4517
      %v4582 = vadd.f32 %v717, %v4518
      %v4583 = vadd.f32 %v718, %v4519
      %v4584 = vadd.f32 %v719, %v4520
      %v4585 = vadd.f32 %v720, %v4521
      %v4586 = vadd.f32 %v721, %v4522
      %v4587 = vadd.f32 %v722, %v4523
      %v4588 = vadd.f32 %v723, %v4524
      %v4589 = vadd.f32 %v724, %v4525
      %v4590 = vadd.f32 %v725, %v4526
      %v4591 = vadd.f32 %v726, %v4527
      %v4592 = vadd.f32 %v727, %v4528
      %v4593 = vadd.f32 %v728, %v4529
      %v4594 = vadd.f32 %v729, %v4530
      %v4595 = vadd.f32 %v730, %v4531
      %v4596 = vadd.f32 %v731, %v4532
      %v4597 = vadd.f32 %v732, %v4533
      %v4598 = vadd.f32 %v733, %v4534
      %v4599 = vadd.f32 %v734, %v4535
      %v4600 = vadd.f32 %v735, %v4536
      %v4601 = vadd.f32 %v736, %v4537
      %v4602 = vadd.f32 %v737, %v4538
      %v4603 = vadd.f32 %v738, %v4539
      %v4604 = vadd.f32 %v739, %v4540
      %v4605 = vadd.f32 %v740, %v4541
      %4606 = vst.msk [vmem:[%s308] sm:$0xff] %vm781, %v4542
      %4607 = vst.msk [vmem:[%s308 + $0x8] sm:$0xff] %vm781, %v4543
      %4608 = vst.msk [vmem:[%s308 + $0x10] sm:$0xff] %vm781, %v4544
      %4609 = vst.msk [vmem:[%s308 + $0x18] sm:$0xff] %vm781, %v4545
      %4610 = vst.msk [vmem:[%s308 + $0x20] sm:$0xff] %vm781, %v4546
      %4611 = vst.msk [vmem:[%s308 + $0x28] sm:$0xff] %vm781, %v4547
      %4612 = vst.msk [vmem:[%s308 + $0x30] sm:$0xff] %vm781, %v4548
      %4613 = vst.msk [vmem:[%s308 + $0x38] sm:$0xff] %vm781, %v4549
      %4614 = vst.msk [vmem:[%s308 + $0x40] sm:$0xff] %vm781, %v4550
      %4615 = vst.msk [vmem:[%s308 + $0x48] sm:$0xff] %vm781, %v4551
      %4616 = vst.msk [vmem:[%s308 + $0x50] sm:$0xff] %vm781, %v4552
      %4617 = vst.msk [vmem:[%s308 + $0x58] sm:$0xff] %vm781, %v4553
      %4618 = vst.msk [vmem:[%s308 + $0x60] sm:$0xff] %vm781, %v4554
      %4619 = vst.msk [vmem:[%s308 + $0x68] sm:$0xff] %vm781, %v4555
      %4620 = vst.msk [vmem:[%s308 + $0x70] sm:$0xff] %vm781, %v4556
      %4621 = vst.msk [vmem:[%s308 + $0x78] sm:$0xff] %vm781, %v4557
      %4622 = vst.msk [vmem:[%s308 + $0x80] sm:$0xff] %vm781, %v4558
      %4623 = vst.msk [vmem:[%s308 + $0x88] sm:$0xff] %vm781, %v4559
      %4624 = vst.msk [vmem:[%s308 + $0x90] sm:$0xff] %vm781, %v4560
      %4625 = vst.msk [vmem:[%s308 + $0x98] sm:$0xff] %vm781, %v4561
      %4626 = vst.msk [vmem:[%s308 + $0xa0] sm:$0xff] %vm781, %v4562
      %4627 = vst.msk [vmem:[%s308 + $0xa8] sm:$0xff] %vm781, %v4563
      %4628 = vst.msk [vmem:[%s308 + $0xb0] sm:$0xff] %vm781, %v4564
      %4629 = vst.msk [vmem:[%s308 + $0xb8] sm:$0xff] %vm781, %v4565
      %4630 = vst.msk [vmem:[%s308 + $0xc0] sm:$0xff] %vm781, %v4566
      %4631 = vst.msk [vmem:[%s308 + $0xc8] sm:$0xff] %vm781, %v4567
      %4632 = vst.msk [vmem:[%s308 + $0xd0] sm:$0xff] %vm781, %v4568
      %4633 = vst.msk [vmem:[%s308 + $0xd8] sm:$0xff] %vm781, %v4569
      %4634 = vst.msk [vmem:[%s308 + $0xe0] sm:$0xff] %vm781, %v4570
      %4635 = vst.msk [vmem:[%s308 + $0xe8] sm:$0xff] %vm781, %v4571
      %4636 = vst.msk [vmem:[%s308 + $0xf0] sm:$0xff] %vm781, %v4572
      %4637 = vst.msk [vmem:[%s308 + $0xf8] sm:$0xff] %vm781, %v4573
      %4638 = vst.msk [vmem:[%s308 + $0x100] sm:$0xff] %vm781, %v4574
      %4639 = vst.msk [vmem:[%s308 + $0x108] sm:$0xff] %vm781, %v4575
      %4640 = vst.msk [vmem:[%s308 + $0x110] sm:$0xff] %vm781, %v4576
      %4641 = vst.msk [vmem:[%s308 + $0x118] sm:$0xff] %vm781, %v4577
      %4642 = vst.msk [vmem:[%s308 + $0x120] sm:$0xff] %vm781, %v4578
      %4643 = vst.msk [vmem:[%s308 + $0x128] sm:$0xff] %vm781, %v4579
      %4644 = vst.msk [vmem:[%s308 + $0x130] sm:$0xff] %vm781, %v4580
      %4645 = vst.msk [vmem:[%s308 + $0x138] sm:$0xff] %vm781, %v4581
      %4646 = vst.msk [vmem:[%s308 + $0x140] sm:$0xff] %vm781, %v4582
      %4647 = vst.msk [vmem:[%s308 + $0x148] sm:$0xff] %vm781, %v4583
      %4648 = vst.msk [vmem:[%s308 + $0x150] sm:$0xff] %vm781, %v4584
      %4649 = vst.msk [vmem:[%s308 + $0x158] sm:$0xff] %vm781, %v4585
      %4650 = vst.msk [vmem:[%s308 + $0x160] sm:$0xff] %vm781, %v4586
      %4651 = vst.msk [vmem:[%s308 + $0x168] sm:$0xff] %vm781, %v4587
      %4652 = vst.msk [vmem:[%s308 + $0x170] sm:$0xff] %vm781, %v4588
      %4653 = vst.msk [vmem:[%s308 + $0x178] sm:$0xff] %vm781, %v4589
      %4654 = vst.msk [vmem:[%s308 + $0x180] sm:$0xff] %vm781, %v4590
      %4655 = vst.msk [vmem:[%s308 + $0x188] sm:$0xff] %vm781, %v4591
      %4656 = vst.msk [vmem:[%s308 + $0x190] sm:$0xff] %vm781, %v4592
      %4657 = vst.msk [vmem:[%s308 + $0x198] sm:$0xff] %vm781, %v4593
      %4658 = vst.msk [vmem:[%s308 + $0x1a0] sm:$0xff] %vm781, %v4594
      %4659 = vst.msk [vmem:[%s308 + $0x1a8] sm:$0xff] %vm781, %v4595
      %4660 = vst.msk [vmem:[%s308 + $0x1b0] sm:$0xff] %vm781, %v4596
      %4661 = vst.msk [vmem:[%s308 + $0x1b8] sm:$0xff] %vm781, %v4597
      %4662 = vst.msk [vmem:[%s308 + $0x1c0] sm:$0xff] %vm781, %v4598
      %4663 = vst.msk [vmem:[%s308 + $0x1c8] sm:$0xff] %vm781, %v4599
      %4664 = vst.msk [vmem:[%s308 + $0x1d0] sm:$0xff] %vm781, %v4600
      %4665 = vst.msk [vmem:[%s308 + $0x1d8] sm:$0xff] %vm781, %v4601
      %4666 = vst.msk [vmem:[%s308 + $0x1e0] sm:$0xff] %vm781, %v4602
      %4667 = vst.msk [vmem:[%s308 + $0x1e8] sm:$0xff] %vm781, %v4603
      %4668 = vst.msk [vmem:[%s308 + $0x1f0] sm:$0xff] %vm781, %v4604
      %4669 = vst.msk [vmem:[%s308 + $0x1f8] sm:$0xff] %vm781, %v4605
      %s4670 = smul.u32 2, %s20
      %p4671 = scmp.lt.s32.totalorder %s4670, 1
      %s4672 = scalar_select %p4671, %s4670, 1
      %s4673 = smul.addr %s4672, 32
      %s4674 = smul.addr %s4673, 8
      %s4675 = scalar_lea.vmem %s5, %s4674
      // Predicated region
      $region45: #{tpu_custom_call.1} parent=39 // pred_check
        %p4676 = pneg %p176
      $region46: #{tpu_custom_call.1} parent=39 // pred_check_branch
        %4678 = sbr.rel (%p4676) target = $region48
      $region47: #{tpu_custom_call.1} parent=39 // pred_region
        %s4679 = smul.u32 2, %s20
      $region48: #{tpu_custom_call.1} parent=39 // pred_fallthru
        _
      // Predicated region
      $region49: #{tpu_custom_call.1} parent=39 // pred_check
        %p4680 = pneg %p176
      $region50: #{tpu_custom_call.1} parent=39 // pred_check_branch
        %4682 = sbr.rel (%p4680) target = $region52
      $region51: #{tpu_custom_call.1} parent=39 // pred_region
        %s4683 = smul.u32 2, %s20
        %p4684 = scmp.lt.s32.totalorder %s4683, 1
        %s4685 = scalar_select %p4684, %s4683, 1
        %s4686 = smul.addr %s4685, 32
        %s4687 = smul.addr %s4686, 8
        %s4688 = scalar_lea.vmem %s5, %s4687
      $region52: #{tpu_custom_call.1} parent=39 // pred_fallthru
        _
    $region40: #{tpu_custom_call.1} parent=5 // pred_fallthru
      _
    %p4689 = scmp.le.s32.totalorder 2, %s11
    // Predicated region
    $region53: #{tpu_custom_call.1} parent=5 // pred_check
      %p4690 = pneg %p4689
    $region54: #{tpu_custom_call.1} parent=5 // pred_check_branch
      %4692 = sbr.rel (%p4690) target = $region56
    $region55: #{tpu_custom_call.1} parent=5 // pred_region
      %s4693 = ssub.s32 %s11, 2
    $region56: #{tpu_custom_call.1} parent=5 // pred_fallthru
      _
  $region6: #{tpu_custom_call.1} parent=0 // loop_footer
    %s15 = sadd.s32 1, %s11
  $region7: #{tpu_custom_call.1} parent=0 // loop_footer_branch
    %10 = sbr.rel target = $region3
  $region8: #{tpu_custom_call.1} parent=0 // loop_exit
    _

</llo_original>
